<compile_context>
chip_gen: v7x
topology: tpu7x:2x2x1
jax: 0.10.0
libtpu: 0.0.40
codegen_flags: <defaults>
</compile_context>

<pallas_src>
import functools
import math
import numpy as np
import jax
import jax.numpy as jnp
from jax.experimental import pallas as pl
from jax.experimental.pallas import tpu as pltpu

# ----- synthetic CAM configuration (matches module __init__ arithmetic) -----
CIN = 3                  # input image channels
H = W = 16               # spatial size
HW = H * W               # 256
CFEAT = 64               # backbone output channels == in_features_to_fc
EXP = int(0.5 + math.log(CFEAT, 2) / 2)
HID = 2 ** EXP           # hidden width of classifier (= 8 for CFEAT=64)
D_OUT = 4                # n_classes
K_IM2COL = 9 * CIN       # 27: 3x3 conv contraction dim
K_AUG = K_IM2COL + 1     # 28: extra ones-row folds the conv bias into the matmul

# row offsets inside the packed classifier parameter block
R_W1 = 0
R_B1 = R_W1 + CFEAT
R_W2 = R_B1 + 1
R_B2 = R_W2 + HID
R_W3 = R_B2 + 1
R_B3 = R_W3 + HID
MLP_ROWS = R_B3 + 1      # 83


def cam_kernel(p_ref, wc_ref, mlp_ref, out_ref, *, block_b):
    # p_ref:   (K_AUG, block_b*HW)  transposed+augmented im2col patches (K on sublanes)
    # wc_ref:  (CFEAT, K_AUG)       conv weight^T with the bias folded in as last column
    # mlp_ref: (MLP_ROWS, HID)      packed classifier parameters
    # out_ref: (block_b, D_OUT)
    p = p_ref[...]
    wc = wc_ref[...]

    # features: 3x3 conv as one MXU matmul (bias folded via ones-row) + ReLU.
    f = jnp.dot(wc, p, preferred_element_type=jnp.float32)       # (CFEAT, block_b*HW)
    f = jnp.maximum(f, 0.0)

    # classify(): adaptive_avg_pool2d((1,1)) per image.
    # Each image owns a vreg-aligned 256-lane slab; reduce it over lanes.
    cols = []
    for b in range(block_b):
        blk = f[:, b * HW:(b + 1) * HW]                           # (CFEAT, HW)
        cols.append(jnp.mean(blk, axis=1, keepdims=True))         # (CFEAT, 1)
    pooled = jnp.concatenate(cols, axis=1).T                      # (block_b, CFEAT)

    # 3-layer MLP classifier (Dropout p=0.5 is identity in eval mode).
    m = mlp_ref[...]
    w1 = m[R_W1:R_W1 + CFEAT, :]            # (CFEAT, HID)
    b1 = m[R_B1:R_B1 + 1, :]                # (1, HID)
    w2 = m[R_W2:R_W2 + HID, :]              # (HID, HID)
    b2 = m[R_B2:R_B2 + 1, :]                # (1, HID)
    w3 = m[R_W3:R_W3 + HID, :D_OUT]         # (HID, D_OUT)
    b3 = m[R_B3:R_B3 + 1, :D_OUT]           # (1, D_OUT)

    h = jnp.maximum(jnp.dot(pooled, w1, preferred_element_type=jnp.float32) + b1, 0.0)
    h = jnp.maximum(jnp.dot(h, w2, preferred_element_type=jnp.float32) + b2, 0.0)
    o = jnp.dot(h, w3, preferred_element_type=jnp.float32) + b3
    out_ref[...] = o.astype(out_ref.dtype)


def _im2col_t(x_nhwc):
    """(N, H, W, CIN) -> (K_AUG, N*H*W) transposed patches for a 3x3 SAME conv (glue)."""
    n = x_nhwc.shape[0]
    xpad = jnp.pad(x_nhwc, ((0, 0), (1, 1), (1, 1), (0, 0)))
    cols = []
    for dh in range(3):
        for dw in range(3):
            cols.append(xpad[:, dh:dh + H, dw:dw + W, :])
    patches = jnp.concatenate(cols, axis=-1)                      # (N, H, W, 27), k=(dh,dw,cin)
    pk = patches.reshape(n, HW, K_IM2COL)
    pk = jnp.transpose(pk, (2, 0, 1)).reshape(K_IM2COL, n * HW)   # (27, N*HW)
    ones_row = jnp.ones((1, n * HW), pk.dtype)                    # folds conv bias into matmul
    return jnp.concatenate([pk, ones_row], axis=0)                # (28, N*HW)


def _pick_batch_block(n):
    """Images per grid step: multiple of 8, VMEM-safe cap, >=2 grid steps once n > 8."""
    b = -(-n // 2)           # ceil(n/2)
    b = -(-b // 8) * 8       # round up to a multiple of 8 (sublane tiling of output block)
    return max(8, min(64, b))


def cam_forward(x_nchw, params):
    n = x_nchw.shape[0]
    blk = _pick_batch_block(n)
    g = -(-n // blk)
    n_pad = g * blk

    x_nhwc = jnp.transpose(x_nchw, (0, 2, 3, 1)).astype(jnp.float32)   # NCHW -> NHWC
    if n_pad != n:
        x_nhwc = jnp.pad(x_nhwc, ((0, n_pad - n), (0, 0), (0, 0), (0, 0)))
    patches_t = _im2col_t(x_nhwc)                                      # (K_AUG, n_pad*HW)

    out = pl.pallas_call(
        functools.partial(cam_kernel, block_b=blk),
        out_shape=jax.ShapeDtypeStruct((n_pad, D_OUT), jnp.float32),
        grid=(g,),
        in_specs=[
            pl.BlockSpec((K_AUG, blk * HW), lambda i: (0, i)),     # per-step image block
            pl.BlockSpec((CFEAT, K_AUG), lambda i: (0, 0)),        # conv weights (resident)
            pl.BlockSpec((MLP_ROWS, HID), lambda i: (0, 0)),       # packed classifier params
        ],
        out_specs=pl.BlockSpec((blk, D_OUT), lambda i: (i, 0)),
        compiler_params=pltpu.CompilerParams(
            dimension_semantics=("parallel",),
            vmem_limit_bytes=32 * 1024 * 1024),
    )(patches_t, params["wc_aug"], params["mlp_pack"])
    return out[:n]                                                     # (N, D_OUT)


def reference_forward(x_nchw, params):
    """Pure-JAX reference (same math) for a correctness check."""
    x = jnp.transpose(x_nchw, (0, 2, 3, 1))
    f = jax.lax.conv_general_dilated(
        x, params["conv_w_hwio"], (1, 1), "SAME",
        dimension_numbers=("NHWC", "HWIO", "NHWC")) + params["conv_b"][0]
    f = jnp.maximum(f, 0.0)
    pooled = f.mean(axis=(1, 2))
    h = jnp.maximum(pooled @ params["w1"] + params["b1"][0], 0.0)
    h = jnp.maximum(h @ params["w2"] + params["b2"][0], 0.0)
    return h @ params["w3"] + params["b3"][0]


def init_params(key):
    """Deterministic PyTorch-style (kaiming-uniform-ish) init + packed kernel operands."""
    ks = jax.random.split(key, 8)

    def unif(k, shape, fan_in):
        bound = 1.0 / math.sqrt(fan_in)
        return jax.random.uniform(k, shape, jnp.float32, -bound, bound)

    conv_w_hwio = unif(ks[0], (3, 3, CIN, CFEAT), 9 * CIN)
    conv_b = unif(ks[1], (1, CFEAT), 9 * CIN)
    w1 = unif(ks[2], (CFEAT, HID), CFEAT)
    b1 = unif(ks[3], (1, HID), CFEAT)
    w2 = unif(ks[4], (HID, HID), HID)
    b2 = unif(ks[5], (1, HID), HID)
    w3 = unif(ks[6], (HID, D_OUT), HID)
    b3 = unif(ks[7], (1, D_OUT), HID)

    # conv weight transposed (CFEAT, 27) with the bias as an extra 28th column
    wc_aug = jnp.concatenate(
        [conv_w_hwio.reshape(K_IM2COL, CFEAT).T, conv_b.reshape(CFEAT, 1)], axis=1)

    # pack all classifier params into one (MLP_ROWS, HID) array
    pad_cols = HID - D_OUT
    mlp_pack = jnp.concatenate([
        w1, b1, w2, b2,
        jnp.pad(w3, ((0, 0), (0, pad_cols))),
        jnp.pad(b3, ((0, 0), (0, pad_cols))),
    ], axis=0)
    assert wc_aug.shape == (CFEAT, K_AUG)
    assert mlp_pack.shape == (MLP_ROWS, HID)

    return {
        "conv_w_hwio": conv_w_hwio, "conv_b": conv_b,
        "w1": w1, "b1": b1, "w2": w2, "b2": b2, "w3": w3, "b3": b3,
        "wc_aug": wc_aug, "mlp_pack": mlp_pack,
    }


if __name__ == "__main__":
    key = jax.random.PRNGKey(0)
    k_x, k_p = jax.random.split(key)
    n_batch = 20   # exercises >1 grid step (B=16 -> 2 steps) and batch padding
    x = jax.random.normal(k_x, (n_batch, CIN, H, W), jnp.float32)   # NCHW, like PyTorch
    params = init_params(k_p)

    out = jax.block_until_ready(cam_forward(x, params))
    ref = jax.block_until_ready(reference_forward(x, params))

    assert out.shape == (n_batch, D_OUT), out.shape
    if not np.allclose(np.asarray(out), np.asarray(ref), rtol=1e-4, atol=1e-4):
        raise AssertionError("Pallas CAM output mismatch vs JAX reference")

    print("KERNEL_OK")
</pallas_src>

<mosaic_0001>
module attributes {stable_mosaic.version = 11 : i64} {
  func.func @cam_kernel(%arg0: i32, %arg1: memref<28x4096xf32, #tpu.memory_space<vmem>>, %arg2: memref<64x28xf32, #tpu.memory_space<vmem>>, %arg3: memref<83x8xf32, #tpu.memory_space<vmem>>, %arg4: memref<16x4xf32, #tpu.memory_space<vmem>>) attributes {dimension_semantics = [#tpu.dimension_semantics<parallel>], iteration_bounds = array<i64: 2>, scalar_prefetch = 0 : i64, scratch_operands = 0 : i64, tpu.core_type = #tpu.core_type<tc>, window_params = [{transform_indices = @transform_0, window_bounds = array<i64: 28, 4096>}, {pipeline_mode = #tpu.pipeline_mode<synchronous>, transform_indices = @transform_1, window_bounds = array<i64: 64, 28>}, {pipeline_mode = #tpu.pipeline_mode<synchronous>, transform_indices = @transform_2, window_bounds = array<i64: 83, 8>}, {transform_indices = @transform_3, window_bounds = array<i64: 16, 4>}]} {
    %c0 = arith.constant 0 : index
    %c0_0 = arith.constant 0 : index
    %0 = vector.load %arg1[%c0, %c0_0] : memref<28x4096xf32, #tpu.memory_space<vmem>>, vector<28x4096xf32>
    %c0_1 = arith.constant 0 : index
    %c0_2 = arith.constant 0 : index
    %1 = vector.load %arg2[%c0_1, %c0_2] : memref<64x28xf32, #tpu.memory_space<vmem>>, vector<64x28xf32>
    %cst = arith.constant dense<0.000000e+00> : vector<64x4096xf32>
    %2 = tpu.matmul %1, %0, %cst {dimension_numbers = #tpu.dot_dimension_numbers<[1], [0], [0], [1], [0, 0, 1, 1], [], []>} : vector<64x28xf32>, vector<28x4096xf32>, vector<64x4096xf32> -> vector<64x4096xf32>
    %cst_3 = arith.constant 0.000000e+00 : f32
    %3 = vector.broadcast %cst_3 : f32 to vector<64x4096xf32>
    %4 = arith.maximumf %2, %3 : vector<64x4096xf32>
    %5 = vector.extract_strided_slice %4 {offsets = [0, 0], sizes = [64, 256], strides = [1, 1]} : vector<64x4096xf32> to vector<64x256xf32>
    %cst_4 = arith.constant dense<0.000000e+00> : vector<64xf32>
    %6 = vector.multi_reduction <add>, %5, %cst_4 [1] : vector<64x256xf32> to vector<64xf32>
    %7 = vector.shape_cast %6 : vector<64xf32> to vector<64x1xf32>
    %cst_5 = arith.constant 2.560000e+02 : f32
    %8 = vector.broadcast %cst_5 : f32 to vector<64x1xf32>
    %9 = arith.divf %7, %8 : vector<64x1xf32>
    %10 = vector.extract_strided_slice %4 {offsets = [0, 256], sizes = [64, 256], strides = [1, 1]} : vector<64x4096xf32> to vector<64x256xf32>
    %cst_6 = arith.constant dense<0.000000e+00> : vector<64xf32>
    %11 = vector.multi_reduction <add>, %10, %cst_6 [1] : vector<64x256xf32> to vector<64xf32>
    %12 = vector.shape_cast %11 : vector<64xf32> to vector<64x1xf32>
    %cst_7 = arith.constant 2.560000e+02 : f32
    %13 = vector.broadcast %cst_7 : f32 to vector<64x1xf32>
    %14 = arith.divf %12, %13 : vector<64x1xf32>
    %15 = vector.extract_strided_slice %4 {offsets = [0, 512], sizes = [64, 256], strides = [1, 1]} : vector<64x4096xf32> to vector<64x256xf32>
    %cst_8 = arith.constant dense<0.000000e+00> : vector<64xf32>
    %16 = vector.multi_reduction <add>, %15, %cst_8 [1] : vector<64x256xf32> to vector<64xf32>
    %17 = vector.shape_cast %16 : vector<64xf32> to vector<64x1xf32>
    %cst_9 = arith.constant 2.560000e+02 : f32
    %18 = vector.broadcast %cst_9 : f32 to vector<64x1xf32>
    %19 = arith.divf %17, %18 : vector<64x1xf32>
    %20 = vector.extract_strided_slice %4 {offsets = [0, 768], sizes = [64, 256], strides = [1, 1]} : vector<64x4096xf32> to vector<64x256xf32>
    %cst_10 = arith.constant dense<0.000000e+00> : vector<64xf32>
    %21 = vector.multi_reduction <add>, %20, %cst_10 [1] : vector<64x256xf32> to vector<64xf32>
    %22 = vector.shape_cast %21 : vector<64xf32> to vector<64x1xf32>
    %cst_11 = arith.constant 2.560000e+02 : f32
    %23 = vector.broadcast %cst_11 : f32 to vector<64x1xf32>
    %24 = arith.divf %22, %23 : vector<64x1xf32>
    %25 = vector.extract_strided_slice %4 {offsets = [0, 1024], sizes = [64, 256], strides = [1, 1]} : vector<64x4096xf32> to vector<64x256xf32>
    %cst_12 = arith.constant dense<0.000000e+00> : vector<64xf32>
    %26 = vector.multi_reduction <add>, %25, %cst_12 [1] : vector<64x256xf32> to vector<64xf32>
    %27 = vector.shape_cast %26 : vector<64xf32> to vector<64x1xf32>
    %cst_13 = arith.constant 2.560000e+02 : f32
    %28 = vector.broadcast %cst_13 : f32 to vector<64x1xf32>
    %29 = arith.divf %27, %28 : vector<64x1xf32>
    %30 = vector.extract_strided_slice %4 {offsets = [0, 1280], sizes = [64, 256], strides = [1, 1]} : vector<64x4096xf32> to vector<64x256xf32>
    %cst_14 = arith.constant dense<0.000000e+00> : vector<64xf32>
    %31 = vector.multi_reduction <add>, %30, %cst_14 [1] : vector<64x256xf32> to vector<64xf32>
    %32 = vector.shape_cast %31 : vector<64xf32> to vector<64x1xf32>
    %cst_15 = arith.constant 2.560000e+02 : f32
    %33 = vector.broadcast %cst_15 : f32 to vector<64x1xf32>
    %34 = arith.divf %32, %33 : vector<64x1xf32>
    %35 = vector.extract_strided_slice %4 {offsets = [0, 1536], sizes = [64, 256], strides = [1, 1]} : vector<64x4096xf32> to vector<64x256xf32>
    %cst_16 = arith.constant dense<0.000000e+00> : vector<64xf32>
    %36 = vector.multi_reduction <add>, %35, %cst_16 [1] : vector<64x256xf32> to vector<64xf32>
    %37 = vector.shape_cast %36 : vector<64xf32> to vector<64x1xf32>
    %cst_17 = arith.constant 2.560000e+02 : f32
    %38 = vector.broadcast %cst_17 : f32 to vector<64x1xf32>
    %39 = arith.divf %37, %38 : vector<64x1xf32>
    %40 = vector.extract_strided_slice %4 {offsets = [0, 1792], sizes = [64, 256], strides = [1, 1]} : vector<64x4096xf32> to vector<64x256xf32>
    %cst_18 = arith.constant dense<0.000000e+00> : vector<64xf32>
    %41 = vector.multi_reduction <add>, %40, %cst_18 [1] : vector<64x256xf32> to vector<64xf32>
    %42 = vector.shape_cast %41 : vector<64xf32> to vector<64x1xf32>
    %cst_19 = arith.constant 2.560000e+02 : f32
    %43 = vector.broadcast %cst_19 : f32 to vector<64x1xf32>
    %44 = arith.divf %42, %43 : vector<64x1xf32>
    %45 = vector.extract_strided_slice %4 {offsets = [0, 2048], sizes = [64, 256], strides = [1, 1]} : vector<64x4096xf32> to vector<64x256xf32>
    %cst_20 = arith.constant dense<0.000000e+00> : vector<64xf32>
    %46 = vector.multi_reduction <add>, %45, %cst_20 [1] : vector<64x256xf32> to vector<64xf32>
    %47 = vector.shape_cast %46 : vector<64xf32> to vector<64x1xf32>
    %cst_21 = arith.constant 2.560000e+02 : f32
    %48 = vector.broadcast %cst_21 : f32 to vector<64x1xf32>
    %49 = arith.divf %47, %48 : vector<64x1xf32>
    %50 = vector.extract_strided_slice %4 {offsets = [0, 2304], sizes = [64, 256], strides = [1, 1]} : vector<64x4096xf32> to vector<64x256xf32>
    %cst_22 = arith.constant dense<0.000000e+00> : vector<64xf32>
    %51 = vector.multi_reduction <add>, %50, %cst_22 [1] : vector<64x256xf32> to vector<64xf32>
    %52 = vector.shape_cast %51 : vector<64xf32> to vector<64x1xf32>
    %cst_23 = arith.constant 2.560000e+02 : f32
    %53 = vector.broadcast %cst_23 : f32 to vector<64x1xf32>
    %54 = arith.divf %52, %53 : vector<64x1xf32>
    %55 = vector.extract_strided_slice %4 {offsets = [0, 2560], sizes = [64, 256], strides = [1, 1]} : vector<64x4096xf32> to vector<64x256xf32>
    %cst_24 = arith.constant dense<0.000000e+00> : vector<64xf32>
    %56 = vector.multi_reduction <add>, %55, %cst_24 [1] : vector<64x256xf32> to vector<64xf32>
    %57 = vector.shape_cast %56 : vector<64xf32> to vector<64x1xf32>
    %cst_25 = arith.constant 2.560000e+02 : f32
    %58 = vector.broadcast %cst_25 : f32 to vector<64x1xf32>
    %59 = arith.divf %57, %58 : vector<64x1xf32>
    %60 = vector.extract_strided_slice %4 {offsets = [0, 2816], sizes = [64, 256], strides = [1, 1]} : vector<64x4096xf32> to vector<64x256xf32>
    %cst_26 = arith.constant dense<0.000000e+00> : vector<64xf32>
    %61 = vector.multi_reduction <add>, %60, %cst_26 [1] : vector<64x256xf32> to vector<64xf32>
    %62 = vector.shape_cast %61 : vector<64xf32> to vector<64x1xf32>
    %cst_27 = arith.constant 2.560000e+02 : f32
    %63 = vector.broadcast %cst_27 : f32 to vector<64x1xf32>
    %64 = arith.divf %62, %63 : vector<64x1xf32>
    %65 = vector.extract_strided_slice %4 {offsets = [0, 3072], sizes = [64, 256], strides = [1, 1]} : vector<64x4096xf32> to vector<64x256xf32>
    %cst_28 = arith.constant dense<0.000000e+00> : vector<64xf32>
    %66 = vector.multi_reduction <add>, %65, %cst_28 [1] : vector<64x256xf32> to vector<64xf32>
    %67 = vector.shape_cast %66 : vector<64xf32> to vector<64x1xf32>
    %cst_29 = arith.constant 2.560000e+02 : f32
    %68 = vector.broadcast %cst_29 : f32 to vector<64x1xf32>
    %69 = arith.divf %67, %68 : vector<64x1xf32>
    %70 = vector.extract_strided_slice %4 {offsets = [0, 3328], sizes = [64, 256], strides = [1, 1]} : vector<64x4096xf32> to vector<64x256xf32>
    %cst_30 = arith.constant dense<0.000000e+00> : vector<64xf32>
    %71 = vector.multi_reduction <add>, %70, %cst_30 [1] : vector<64x256xf32> to vector<64xf32>
    %72 = vector.shape_cast %71 : vector<64xf32> to vector<64x1xf32>
    %cst_31 = arith.constant 2.560000e+02 : f32
    %73 = vector.broadcast %cst_31 : f32 to vector<64x1xf32>
    %74 = arith.divf %72, %73 : vector<64x1xf32>
    %75 = vector.extract_strided_slice %4 {offsets = [0, 3584], sizes = [64, 256], strides = [1, 1]} : vector<64x4096xf32> to vector<64x256xf32>
    %cst_32 = arith.constant dense<0.000000e+00> : vector<64xf32>
    %76 = vector.multi_reduction <add>, %75, %cst_32 [1] : vector<64x256xf32> to vector<64xf32>
    %77 = vector.shape_cast %76 : vector<64xf32> to vector<64x1xf32>
    %cst_33 = arith.constant 2.560000e+02 : f32
    %78 = vector.broadcast %cst_33 : f32 to vector<64x1xf32>
    %79 = arith.divf %77, %78 : vector<64x1xf32>
    %80 = vector.extract_strided_slice %4 {offsets = [0, 3840], sizes = [64, 256], strides = [1, 1]} : vector<64x4096xf32> to vector<64x256xf32>
    %cst_34 = arith.constant dense<0.000000e+00> : vector<64xf32>
    %81 = vector.multi_reduction <add>, %80, %cst_34 [1] : vector<64x256xf32> to vector<64xf32>
    %82 = vector.shape_cast %81 : vector<64xf32> to vector<64x1xf32>
    %cst_35 = arith.constant 2.560000e+02 : f32
    %83 = vector.broadcast %cst_35 : f32 to vector<64x1xf32>
    %84 = arith.divf %82, %83 : vector<64x1xf32>
    %85 = tpu.concatenate %9, %14, %19, %24, %29, %34, %39, %44, %49, %54, %59, %64, %69, %74, %79, %84 in 1 : vector<64x1xf32>, vector<64x1xf32>, vector<64x1xf32>, vector<64x1xf32>, vector<64x1xf32>, vector<64x1xf32>, vector<64x1xf32>, vector<64x1xf32>, vector<64x1xf32>, vector<64x1xf32>, vector<64x1xf32>, vector<64x1xf32>, vector<64x1xf32>, vector<64x1xf32>, vector<64x1xf32>, vector<64x1xf32> -> vector<64x16xf32>
    %86 = tpu.transpose %85, [1, 0] : vector<64x16xf32> -> vector<16x64xf32>
    %c0_36 = arith.constant 0 : index
    %c0_37 = arith.constant 0 : index
    %87 = vector.load %arg3[%c0_36, %c0_37] : memref<83x8xf32, #tpu.memory_space<vmem>>, vector<83x8xf32>
    %88 = vector.extract_strided_slice %87 {offsets = [0, 0], sizes = [64, 8], strides = [1, 1]} : vector<83x8xf32> to vector<64x8xf32>
    %89 = vector.extract_strided_slice %87 {offsets = [64, 0], sizes = [1, 8], strides = [1, 1]} : vector<83x8xf32> to vector<1x8xf32>
    %90 = vector.extract_strided_slice %87 {offsets = [65, 0], sizes = [8, 8], strides = [1, 1]} : vector<83x8xf32> to vector<8x8xf32>
    %91 = vector.extract_strided_slice %87 {offsets = [73, 0], sizes = [1, 8], strides = [1, 1]} : vector<83x8xf32> to vector<1x8xf32>
    %92 = vector.extract_strided_slice %87 {offsets = [74, 0], sizes = [8, 4], strides = [1, 1]} : vector<83x8xf32> to vector<8x4xf32>
    %93 = vector.extract_strided_slice %87 {offsets = [82, 0], sizes = [1, 4], strides = [1, 1]} : vector<83x8xf32> to vector<1x4xf32>
    %cst_38 = arith.constant dense<0.000000e+00> : vector<16x8xf32>
    %94 = tpu.matmul %86, %88, %cst_38 {dimension_numbers = #tpu.dot_dimension_numbers<[1], [0], [0], [1], [0, 0, 1, 1], [], []>} : vector<16x64xf32>, vector<64x8xf32>, vector<16x8xf32> -> vector<16x8xf32>
    %95 = vector.broadcast %89 : vector<1x8xf32> to vector<16x8xf32>
    %96 = arith.addf %94, %95 : vector<16x8xf32>
    %cst_39 = arith.constant 0.000000e+00 : f32
    %97 = vector.broadcast %cst_39 : f32 to vector<16x8xf32>
    %98 = arith.maximumf %96, %97 : vector<16x8xf32>
    %cst_40 = arith.constant dense<0.000000e+00> : vector<16x8xf32>
    %99 = tpu.matmul %98, %90, %cst_40 {dimension_numbers = #tpu.dot_dimension_numbers<[1], [0], [0], [1], [0, 0, 1, 1], [], []>} : vector<16x8xf32>, vector<8x8xf32>, vector<16x8xf32> -> vector<16x8xf32>
    %100 = vector.broadcast %91 : vector<1x8xf32> to vector<16x8xf32>
    %101 = arith.addf %99, %100 : vector<16x8xf32>
    %cst_41 = arith.constant 0.000000e+00 : f32
    %102 = vector.broadcast %cst_41 : f32 to vector<16x8xf32>
    %103 = arith.maximumf %101, %102 : vector<16x8xf32>
    %cst_42 = arith.constant dense<0.000000e+00> : vector<16x4xf32>
    %104 = tpu.matmul %103, %92, %cst_42 {dimension_numbers = #tpu.dot_dimension_numbers<[1], [0], [0], [1], [0, 0, 1, 1], [], []>} : vector<16x8xf32>, vector<8x4xf32>, vector<16x4xf32> -> vector<16x4xf32>
    %105 = vector.broadcast %93 : vector<1x4xf32> to vector<16x4xf32>
    %106 = arith.addf %104, %105 : vector<16x4xf32>
    %c0_43 = arith.constant 0 : index
    %c0_44 = arith.constant 0 : index
    %107 = vector.load %arg4[%c0_43, %c0_44] : memref<16x4xf32, #tpu.memory_space<vmem>>, vector<16x4xf32>
    tpu.vector_store %arg4[%c0_43, %c0_44], %106 {strides = array<i32>} : memref<16x4xf32, #tpu.memory_space<vmem>>, vector<16x4xf32>,
    return
  }
  func.func @transform_0(%arg0: i32) -> (i32, i32) {
    %c0_i32 = arith.constant 0 : i32
    %c0_i32_0 = arith.constant 0 : i32
    return %c0_i32, %arg0 : i32, i32
  }
  func.func @transform_1(%arg0: i32) -> (i32, i32) {
    %c0_i32 = arith.constant 0 : i32
    %c0_i32_0 = arith.constant 0 : i32
    %c0_i32_1 = arith.constant 0 : i32
    return %c0_i32, %c0_i32_0 : i32, i32
  }
  func.func @transform_2(%arg0: i32) -> (i32, i32) {
    %c0_i32 = arith.constant 0 : i32
    %c0_i32_0 = arith.constant 0 : i32
    %c0_i32_1 = arith.constant 0 : i32
    return %c0_i32, %c0_i32_0 : i32, i32
  }
  func.func @transform_3(%arg0: i32) -> (i32, i32) {
    %c0_i32 = arith.constant 0 : i32
    %c0_i32_0 = arith.constant 0 : i32
    return %arg0, %c0_i32 : i32, i32
  }
}

</mosaic_0001>

<llo_original>
// kernel: tpu_custom_call.1
$region0: #{tpu_custom_call.1}
  #allocation0 [shape = 'u32[]', space=smem, size = 0x4, offset = 0x4, fixed_abs, tag = 'smem constant byte address 0x4 - core index']
  #allocation1 [shape = 'u32[144,128]{1,0:T(1,128)}', space=vmem, size = 0x12000, scoped, tag = 'internal scratch']
  %s0 = inlined_call_operand.hbm [shape: f32[28,8192], index: 0, kind: input, shape index: {}]
  %s1 = inlined_call_operand.vmem [shape: f32[64,28], index: 1, kind: input, shape index: {}]
  %s2 = inlined_call_operand.vmem [shape: f32[83,8], index: 2, kind: input, shape index: {}]
  %s3 = inlined_call_operand.vmem [shape: f32[32,4], index: 3, kind: output, shape index: {}]
  %s4 = sld [smem:[#allocation0]]
  $region49: #{tpu_custom_call.1} parent=0
    _
  %s6 = ssub.s32 1, %s4
  %s7 = scalar_select 0, %s6, %s4
  $region1: #{tpu_custom_call.1} parent=0
    #allocation2 [shape = 'u8[1048576]{0}', space=vmem, size = 0x100000, scoped, tag = 'input window, operand 0']
    #allocation3 [shape = 's32[2]{0}', space=sflag, size = 0x8, scoped, tag = 'scoped memory for tpu_custom_call.1']
    %8 = vsyncpa [#allocation3], 0
    %s9 = scalar_lea.sflag [#allocation3], 1
    %10 = vsyncpa %s9, 0
    loop: start=0, step=1, limit=4
    $region2: #{tpu_custom_call.1} parent=1 // loop_pre_header
      _
    $region3: #{tpu_custom_call.1} parent=1 // loop_header
      %s12 = sphi 0, %s16
      %p13 = scmp.ge.s32.totalorder %s12, 4
      %s22 = sphi 0, %s24
      %s25 = sphi 0, %s22
      %s26 = sphi 0, %s25
      %s42 = sphi 0, %s26
      %s46 = sphi 0, %s46
      %s48 = sphi 0, %s46
      %s49 = sphi 0, %s48
      %s63 = sphi 0, %s49
      %s67 = sphi 0, %s67
      %s69 = sphi 0, %s67
      %s70 = sphi 0, %s69
      %s84 = sphi 0, %s70
      %s90 = sphi 0, %s92
      %s93 = sphi 0, %s90
      %s94 = sphi 0, %s93
      %s110 = sphi 0, %s94
    $region4: #{tpu_custom_call.1} parent=1 // loop_header_branch
      %15 = sbr.rel (%p13) target = $region8
    $region5: #{tpu_custom_call.1} parent=1 // loop_body
      %s17 = ssub.s32 %s12, 1
      %s18 = ssub.s32 %s12, 2
      %s19 = sadd.s32 %s12, 1
      %s20 = ssub.s32 %s12, %s19
      %p21 = scmp.eq.s32.totalorder %s20, 0
      %s23 = sadd.s32 %s22, 1
      %s24 = scalar_select %p21, %s22, %s23
      %p27 = pneg %p21
      %p28 = scmp.eq.s32.totalorder %s12, 1
      %p29 = por %p27, %p28
      %p30 = scmp.ne.s32.totalorder %s22, %s25
      %p31 = scmp.eq.s32.totalorder %s12, 0
      %p32 = por %p30, %p31
      %p33 = scmp.ne.s32.totalorder %s22, %s25
      %p34 = scmp.eq.s32.totalorder %s17, 1
      %p35 = por %p33, %p34
      %p36 = scmp.ne.s32.totalorder %s25, %s26
      %p37 = scmp.eq.s32.totalorder %s17, 0
      %p38 = por %p36, %p37
      %p39 = scmp.ne.s32.totalorder %s25, %s26
      %p40 = scmp.eq.s32.totalorder %s18, 1
      %p41 = por %p39, %p40
      %p43 = scmp.ne.s32.totalorder %s26, %s42
      %p44 = scmp.eq.s32.totalorder %s18, 0
      %p45 = por %p43, %p44
      %s47 = sadd.s32 %s46, 1
      %p50 = scmp.eq.s32.totalorder %s12, 1
      %p51 = scmp.ne.s32.totalorder %s46, %s48
      %p52 = scmp.eq.s32.totalorder %s12, 0
      %p53 = por %p51, %p52
      %p54 = scmp.ne.s32.totalorder %s46, %s48
      %p55 = scmp.eq.s32.totalorder %s17, 1
      %p56 = por %p54, %p55
      %p57 = scmp.ne.s32.totalorder %s48, %s49
      %p58 = scmp.eq.s32.totalorder %s17, 0
      %p59 = por %p57, %p58
      %p60 = scmp.ne.s32.totalorder %s48, %s49
      %p61 = scmp.eq.s32.totalorder %s18, 1
      %p62 = por %p60, %p61
      %p64 = scmp.ne.s32.totalorder %s49, %s63
      %p65 = scmp.eq.s32.totalorder %s18, 0
      %p66 = por %p64, %p65
      %s68 = sadd.s32 %s67, 1
      %p71 = scmp.eq.s32.totalorder %s12, 1
      %p72 = scmp.ne.s32.totalorder %s67, %s69
      %p73 = scmp.eq.s32.totalorder %s12, 0
      %p74 = por %p72, %p73
      %p75 = scmp.ne.s32.totalorder %s67, %s69
      %p76 = scmp.eq.s32.totalorder %s17, 1
      %p77 = por %p75, %p76
      %p78 = scmp.ne.s32.totalorder %s69, %s70
      %p79 = scmp.eq.s32.totalorder %s17, 0
      %p80 = por %p78, %p79
      %p81 = scmp.ne.s32.totalorder %s69, %s70
      %p82 = scmp.eq.s32.totalorder %s18, 1
      %p83 = por %p81, %p82
      %p85 = scmp.ne.s32.totalorder %s70, %s84
      %p86 = scmp.eq.s32.totalorder %s18, 0
      %p87 = por %p85, %p86
      %s88 = ssub.s32 %s12, %s19
      %p89 = scmp.eq.s32.totalorder %s88, 0
      %s91 = sadd.s32 %s90, 1
      %s92 = scalar_select %p89, %s90, %s91
      %p95 = pneg %p89
      %p96 = scmp.eq.s32.totalorder %s12, 1
      %p97 = por %p95, %p96
      %p98 = scmp.ne.s32.totalorder %s90, %s93
      %p99 = scmp.eq.s32.totalorder %s12, 0
      %p100 = por %p98, %p99
      %p101 = scmp.ne.s32.totalorder %s90, %s93
      %p102 = scmp.eq.s32.totalorder %s17, 1
      %p103 = por %p101, %p102
      %p104 = scmp.ne.s32.totalorder %s93, %s94
      %p105 = scmp.eq.s32.totalorder %s17, 0
      %p106 = por %p104, %p105
      %p107 = scmp.ne.s32.totalorder %s93, %s94
      %p108 = scmp.eq.s32.totalorder %s18, 1
      %p109 = por %p107, %p108
      %p111 = scmp.ne.s32.totalorder %s94, %s110
      %p112 = scmp.eq.s32.totalorder %s18, 0
      %p113 = por %p111, %p112
      %p114 = scmp.le.s32.totalorder 1, %s12
      %p115 = scmp.lt.s32.totalorder %s12, 3
      %p116 = pnand %p114, %p115
      %p117 = pneg %p116
      // Predicated region
      $region9: #{tpu_custom_call.1} parent=5 // pred_check
        _
      $region10: #{tpu_custom_call.1} parent=5 // pred_check_branch
        %119 = sbr.rel (%p116) target = $region12
      $region11: #{tpu_custom_call.1} parent=5 // pred_region
        %s120 = ssub.s32 %s12, 1
        // Predicated region
        $region13: #{tpu_custom_call.1} parent=11 // pred_check
          %p121 = pneg %p59
        $region14: #{tpu_custom_call.1} parent=11 // pred_check_branch
          %123 = sbr.rel (%p121) target = $region16
        $region15: #{tpu_custom_call.1} parent=11 // pred_region
          _
        $region16: #{tpu_custom_call.1} parent=11 // pred_fallthru
          _
        // Predicated region
        $region17: #{tpu_custom_call.1} parent=11 // pred_check
          %p124 = pneg %p80
        $region18: #{tpu_custom_call.1} parent=11 // pred_check_branch
          %126 = sbr.rel (%p124) target = $region20
        $region19: #{tpu_custom_call.1} parent=11 // pred_region
          _
        $region20: #{tpu_custom_call.1} parent=11 // pred_fallthru
          _
      $region12: #{tpu_custom_call.1} parent=5 // pred_fallthru
        _
      %p127 = scmp.lt.s32.totalorder %s12, 2
      // Predicated region
      $region21: #{tpu_custom_call.1} parent=5 // pred_check
        %p128 = pneg %p127
      $region22: #{tpu_custom_call.1} parent=5 // pred_check_branch
        %130 = sbr.rel (%p128) target = $region24
      $region23: #{tpu_custom_call.1} parent=5 // pred_region
        // Predicated region
        $region25: #{tpu_custom_call.1} parent=23 // pred_check
          %p131 = pneg %p32
        $region26: #{tpu_custom_call.1} parent=23 // pred_check_branch
          %133 = sbr.rel (%p131) target = $region28
        $region27: #{tpu_custom_call.1} parent=23 // pred_region
          %s134 = sand.u32 %s22, 1
          %s135 = scalar_lea.sflag [#allocation3], %s134
          %s136 = sand.u32 %s22, 1
          %s137 = smul.addr %s136, 1024
          %s138 = scalar_lea.vmem [#allocation2], %s137
          %s139 = smul.u32 32, %s12
          %s141 = ssub.s32 16384, 16384
          %142 = vsyncadd %s135, %s141
          %s143 = smul.addr %s139, 128
          %s144 = scalar_lea.hbm %s0, %s143
          %s145 = sshll.u32 %s138, 4
          %s146 = int_to_ptr.vmem [resolvable:$true] %s145
          %151 = dma.hbm_to_vmem [thread:$0]  %s144, 16384, %s146, %s135, 8192, 4096, 256
        $region28: #{tpu_custom_call.1} parent=23 // pred_fallthru
          _
      $region24: #{tpu_custom_call.1} parent=5 // pred_fallthru
        _
      %p152 = scmp.le.s32.totalorder 1, %s12
      %p153 = scmp.lt.s32.totalorder %s12, 3
      %p154 = pnand %p152, %p153
      %p155 = pneg %p154
      // Predicated region
      $region29: #{tpu_custom_call.1} parent=5 // pred_check
        _
      $region30: #{tpu_custom_call.1} parent=5 // pred_check_branch
        %157 = sbr.rel (%p154) target = $region32
      $region31: #{tpu_custom_call.1} parent=5 // pred_region
        %s158 = ssub.s32 %s12, 1
        %s159 = sand.u32 %s25, 1
        %s160 = scalar_lea.sflag [#allocation3], %s159
        %s161 = sand.u32 %s25, 1
        %s162 = smul.addr %s161, 1024
        %s163 = scalar_lea.vmem [#allocation2], %s162
        // Predicated region
        $region33: #{tpu_custom_call.1} parent=31 // pred_check
          %p164 = pneg %p38
        $region34: #{tpu_custom_call.1} parent=31 // pred_check_branch
          %166 = sbr.rel (%p164) target = $region36
        $region35: #{tpu_custom_call.1} parent=31 // pred_region
          %167 = dma.done %s160, 16384
        $region36: #{tpu_custom_call.1} parent=31 // pred_fallthru
          _
        %s168 = sand.u32 %s25, 1
        %s169 = scalar_lea.sflag [#allocation3], %s168
        %s170 = sand.u32 %s25, 1
        %s171 = smul.addr %s170, 1024
        %s172 = scalar_lea.vmem [#allocation2], %s171
        %p173 = pneg %p38
        %p174 = pneg %p35
        %p175 = pneg %p59
        %p176 = pneg %p56
        %p177 = pneg %p80
        %p178 = pneg %p77
        %p179 = pneg %p106
        %p180 = pneg %p103
        %s181 = smul.u32 2, %s17
        %p182 = scmp.lt.s32.totalorder %s181, 3
        %s183 = scalar_select %p182, %s181, 3
        %s184 = smul.addr %s183, 8
        %s185 = scalar_lea.vmem %s3, %s184
        %s186 = smul.u32 32, %s17
        %s187 = smul.u32 2, %s17
        %p188 = scmp.lt.s32.totalorder %s187, 3
        %s189 = scalar_select %p188, %s187, 3
        %s190 = smul.addr %s189, 8
        %s191 = scalar_lea.vmem %s3, %s190
        %s192 = smul.u32 2, %s17
        %v193 = vld [vmem:[%s163] sm:$0xff]
        %v194 = vld [vmem:[%s163 + $0x8] sm:$0xff]
        %v195 = vld [vmem:[%s163 + $0x10] sm:$0xff]
        %v196 = vld [vmem:[%s163 + $0x18] sm:$0xff]
        %v197 = vld [vmem:[%s163 + $0x20] sm:$0xff]
        %v198 = vld [vmem:[%s163 + $0x28] sm:$0xff]
        %v199 = vld [vmem:[%s163 + $0x30] sm:$0xff]
        %v200 = vld [vmem:[%s163 + $0x38] sm:$0xff]
        %v201 = vld [vmem:[%s163 + $0x40] sm:$0xff]
        %v202 = vld [vmem:[%s163 + $0x48] sm:$0xff]
        %v203 = vld [vmem:[%s163 + $0x50] sm:$0xff]
        %v204 = vld [vmem:[%s163 + $0x58] sm:$0xff]
        %v205 = vld [vmem:[%s163 + $0x60] sm:$0xff]
        %v206 = vld [vmem:[%s163 + $0x68] sm:$0xff]
        %v207 = vld [vmem:[%s163 + $0x70] sm:$0xff]
        %v208 = vld [vmem:[%s163 + $0x78] sm:$0xff]
        %v209 = vld [vmem:[%s163 + $0x80] sm:$0xff]
        %v210 = vld [vmem:[%s163 + $0x88] sm:$0xff]
        %v211 = vld [vmem:[%s163 + $0x90] sm:$0xff]
        %v212 = vld [vmem:[%s163 + $0x98] sm:$0xff]
        %v213 = vld [vmem:[%s163 + $0xa0] sm:$0xff]
        %v214 = vld [vmem:[%s163 + $0xa8] sm:$0xff]
        %v215 = vld [vmem:[%s163 + $0xb0] sm:$0xff]
        %v216 = vld [vmem:[%s163 + $0xb8] sm:$0xff]
        %v217 = vld [vmem:[%s163 + $0xc0] sm:$0xff]
        %v218 = vld [vmem:[%s163 + $0xc8] sm:$0xff]
        %v219 = vld [vmem:[%s163 + $0xd0] sm:$0xff]
        %v220 = vld [vmem:[%s163 + $0xd8] sm:$0xff]
        %v221 = vld [vmem:[%s163 + $0xe0] sm:$0xff]
        %v222 = vld [vmem:[%s163 + $0xe8] sm:$0xff]
        %v223 = vld [vmem:[%s163 + $0xf0] sm:$0xff]
        %v224 = vld [vmem:[%s163 + $0xf8] sm:$0xff]
        %v225 = vld [vmem:[%s163 + $0x100] sm:$0xff]
        %v226 = vld [vmem:[%s163 + $0x108] sm:$0xff]
        %v227 = vld [vmem:[%s163 + $0x110] sm:$0xff]
        %v228 = vld [vmem:[%s163 + $0x118] sm:$0xff]
        %v229 = vld [vmem:[%s163 + $0x120] sm:$0xff]
        %v230 = vld [vmem:[%s163 + $0x128] sm:$0xff]
        %v231 = vld [vmem:[%s163 + $0x130] sm:$0xff]
        %v232 = vld [vmem:[%s163 + $0x138] sm:$0xff]
        %v233 = vld [vmem:[%s163 + $0x140] sm:$0xff]
        %v234 = vld [vmem:[%s163 + $0x148] sm:$0xff]
        %v235 = vld [vmem:[%s163 + $0x150] sm:$0xff]
        %v236 = vld [vmem:[%s163 + $0x158] sm:$0xff]
        %v237 = vld [vmem:[%s163 + $0x160] sm:$0xff]
        %v238 = vld [vmem:[%s163 + $0x168] sm:$0xff]
        %v239 = vld [vmem:[%s163 + $0x170] sm:$0xff]
        %v240 = vld [vmem:[%s163 + $0x178] sm:$0xff]
        %v241 = vld [vmem:[%s163 + $0x180] sm:$0xff]
        %v242 = vld [vmem:[%s163 + $0x188] sm:$0xff]
        %v243 = vld [vmem:[%s163 + $0x190] sm:$0xff]
        %v244 = vld [vmem:[%s163 + $0x198] sm:$0xff]
        %v245 = vld [vmem:[%s163 + $0x1a0] sm:$0xff]
        %v246 = vld [vmem:[%s163 + $0x1a8] sm:$0xff]
        %v247 = vld [vmem:[%s163 + $0x1b0] sm:$0xff]
        %v248 = vld [vmem:[%s163 + $0x1b8] sm:$0xff]
        %v249 = vld [vmem:[%s163 + $0x1c0] sm:$0xff]
        %v250 = vld [vmem:[%s163 + $0x1c8] sm:$0xff]
        %v251 = vld [vmem:[%s163 + $0x1d0] sm:$0xff]
        %v252 = vld [vmem:[%s163 + $0x1d8] sm:$0xff]
        %v253 = vld [vmem:[%s163 + $0x1e0] sm:$0xff]
        %v254 = vld [vmem:[%s163 + $0x1e8] sm:$0xff]
        %v255 = vld [vmem:[%s163 + $0x1f0] sm:$0xff]
        %v256 = vld [vmem:[%s163 + $0x1f8] sm:$0xff]
        %v257 = vld [vmem:[%s163 + $0x200] sm:$0xff]
        %v258 = vld [vmem:[%s163 + $0x208] sm:$0xff]
        %v259 = vld [vmem:[%s163 + $0x210] sm:$0xff]
        %v260 = vld [vmem:[%s163 + $0x218] sm:$0xff]
        %v261 = vld [vmem:[%s163 + $0x220] sm:$0xff]
        %v262 = vld [vmem:[%s163 + $0x228] sm:$0xff]
        %v263 = vld [vmem:[%s163 + $0x230] sm:$0xff]
        %v264 = vld [vmem:[%s163 + $0x238] sm:$0xff]
        %v265 = vld [vmem:[%s163 + $0x240] sm:$0xff]
        %v266 = vld [vmem:[%s163 + $0x248] sm:$0xff]
        %v267 = vld [vmem:[%s163 + $0x250] sm:$0xff]
        %v268 = vld [vmem:[%s163 + $0x258] sm:$0xff]
        %v269 = vld [vmem:[%s163 + $0x260] sm:$0xff]
        %v270 = vld [vmem:[%s163 + $0x268] sm:$0xff]
        %v271 = vld [vmem:[%s163 + $0x270] sm:$0xff]
        %v272 = vld [vmem:[%s163 + $0x278] sm:$0xff]
        %v273 = vld [vmem:[%s163 + $0x280] sm:$0xff]
        %v274 = vld [vmem:[%s163 + $0x288] sm:$0xff]
        %v275 = vld [vmem:[%s163 + $0x290] sm:$0xff]
        %v276 = vld [vmem:[%s163 + $0x298] sm:$0xff]
        %v277 = vld [vmem:[%s163 + $0x2a0] sm:$0xff]
        %v278 = vld [vmem:[%s163 + $0x2a8] sm:$0xff]
        %v279 = vld [vmem:[%s163 + $0x2b0] sm:$0xff]
        %v280 = vld [vmem:[%s163 + $0x2b8] sm:$0xff]
        %v281 = vld [vmem:[%s163 + $0x2c0] sm:$0xff]
        %v282 = vld [vmem:[%s163 + $0x2c8] sm:$0xff]
        %v283 = vld [vmem:[%s163 + $0x2d0] sm:$0xff]
        %v284 = vld [vmem:[%s163 + $0x2d8] sm:$0xff]
        %v285 = vld [vmem:[%s163 + $0x2e0] sm:$0xff]
        %v286 = vld [vmem:[%s163 + $0x2e8] sm:$0xff]
        %v287 = vld [vmem:[%s163 + $0x2f0] sm:$0xff]
        %v288 = vld [vmem:[%s163 + $0x2f8] sm:$0xff]
        %v289 = vld [vmem:[%s163 + $0x300] sm:$0xf]
        %v290 = vld [vmem:[%s163 + $0x308] sm:$0xf]
        %v291 = vld [vmem:[%s163 + $0x310] sm:$0xf]
        %v292 = vld [vmem:[%s163 + $0x318] sm:$0xf]
        %v293 = vld [vmem:[%s163 + $0x320] sm:$0xf]
        %v294 = vld [vmem:[%s163 + $0x328] sm:$0xf]
        %v295 = vld [vmem:[%s163 + $0x330] sm:$0xf]
        %v296 = vld [vmem:[%s163 + $0x338] sm:$0xf]
        %v297 = vld [vmem:[%s163 + $0x340] sm:$0xf]
        %v298 = vld [vmem:[%s163 + $0x348] sm:$0xf]
        %v299 = vld [vmem:[%s163 + $0x350] sm:$0xf]
        %v300 = vld [vmem:[%s163 + $0x358] sm:$0xf]
        %v301 = vld [vmem:[%s163 + $0x360] sm:$0xf]
        %v302 = vld [vmem:[%s163 + $0x368] sm:$0xf]
        %v303 = vld [vmem:[%s163 + $0x370] sm:$0xf]
        %v304 = vld [vmem:[%s163 + $0x378] sm:$0xf]
        %v305 = vld [vmem:[%s163 + $0x380] sm:$0xf]
        %v306 = vld [vmem:[%s163 + $0x388] sm:$0xf]
        %v307 = vld [vmem:[%s163 + $0x390] sm:$0xf]
        %v308 = vld [vmem:[%s163 + $0x398] sm:$0xf]
        %v309 = vld [vmem:[%s163 + $0x3a0] sm:$0xf]
        %v310 = vld [vmem:[%s163 + $0x3a8] sm:$0xf]
        %v311 = vld [vmem:[%s163 + $0x3b0] sm:$0xf]
        %v312 = vld [vmem:[%s163 + $0x3b8] sm:$0xf]
        %v313 = vld [vmem:[%s163 + $0x3c0] sm:$0xf]
        %v314 = vld [vmem:[%s163 + $0x3c8] sm:$0xf]
        %v315 = vld [vmem:[%s163 + $0x3d0] sm:$0xf]
        %v316 = vld [vmem:[%s163 + $0x3d8] sm:$0xf]
        %v317 = vld [vmem:[%s163 + $0x3e0] sm:$0xf]
        %v318 = vld [vmem:[%s163 + $0x3e8] sm:$0xf]
        %v319 = vld [vmem:[%s163 + $0x3f0] sm:$0xf]
        %v320 = vld [vmem:[%s163 + $0x3f8] sm:$0xf]
        %v321 = vld [vmem:[%s1] sm:$0xff]
        %v322 = vld [vmem:[%s1 + $0x8] sm:$0xff]
        %v323 = vld [vmem:[%s1 + $0x10] sm:$0xff]
        %v324 = vld [vmem:[%s1 + $0x18] sm:$0xff]
        %v325 = vld [vmem:[%s1 + $0x20] sm:$0xff]
        %v326 = vld [vmem:[%s1 + $0x28] sm:$0xff]
        %v327 = vld [vmem:[%s1 + $0x30] sm:$0xff]
        %v328 = vld [vmem:[%s1 + $0x38] sm:$0xff]
        %vm329 = vcmask 228352
        %v331 = vsel %vm329, %v321, 0
        %v334 = vsel %vm329, %v322, 0
        %v337 = vsel %vm329, %v323, 0
        %v340 = vsel %vm329, %v324, 0
        %v343 = vsel %vm329, %v325, 0
        %v346 = vsel %vm329, %v326, 0
        %v349 = vsel %vm329, %v327, 0
        %v352 = vsel %vm329, %v328, 0
        %vm354 = vcmask 1043456
        %v356 = vsel %vm354, %v289, 0
        %v359 = vsel %vm354, %v290, 0
        %v362 = vsel %vm354, %v291, 0
        %v365 = vsel %vm354, %v292, 0
        %v368 = vsel %vm354, %v293, 0
        %v371 = vsel %vm354, %v294, 0
        %v374 = vsel %vm354, %v295, 0
        %v377 = vsel %vm354, %v296, 0
        %v380 = vsel %vm354, %v297, 0
        %v383 = vsel %vm354, %v298, 0
        %v386 = vsel %vm354, %v299, 0
        %v389 = vsel %vm354, %v300, 0
        %v392 = vsel %vm354, %v301, 0
        %v395 = vsel %vm354, %v302, 0
        %v398 = vsel %vm354, %v303, 0
        %v401 = vsel %vm354, %v304, 0
        %v404 = vsel %vm354, %v305, 0
        %v407 = vsel %vm354, %v306, 0
        %v410 = vsel %vm354, %v307, 0
        %v413 = vsel %vm354, %v308, 0
        %v416 = vsel %vm354, %v309, 0
        %v419 = vsel %vm354, %v310, 0
        %v422 = vsel %vm354, %v311, 0
        %v425 = vsel %vm354, %v312, 0
        %v428 = vsel %vm354, %v313, 0
        %v431 = vsel %vm354, %v314, 0
        %v434 = vsel %vm354, %v315, 0
        %v437 = vsel %vm354, %v316, 0
        %v440 = vsel %vm354, %v317, 0
        %v443 = vsel %vm354, %v318, 0
        %v446 = vsel %vm354, %v319, 0
        %v449 = vsel %vm354, %v320, 0
        %451 = vmatprep.subr.mxu0 %v194
        %452 = vmatpush1.msra.mxu0 %v193
        %453 = vmatprep.subr.mxu0 %v226
        %454 = vmatpush1.msra.mxu0 %v225
        %455 = vmatprep.subr.mxu0 %v258
        %456 = vmatpush1.msra.mxu0 %v257
        %457 = vmatprep.subr.mxu0 %v359
        %458 = vmatpush1.msra.mxu0 %v356
        %459 = vmatprep.subr.mxu0 0.0
        %460 = vmatpush1.msra.mxu0 0.0
        %461 = vmatprep.subr.mxu0 0.0
        %462 = vmatpush1.msra.mxu0 0.0
        %463 = vmatprep.subr.mxu0 0.0
        %464 = vmatpush1.msra.mxu0 0.0
        %465 = vmatprep.subr.mxu0 0.0
        %466 = vmatpush1.msra.mxu0 0.0
        %467 = vmatprep.subr.mxu0 0.0
        %468 = vmatpush1.msra.mxu0 0.0
        %469 = vmatprep.subr.mxu0 0.0
        %470 = vmatpush1.msra.mxu0 0.0
        %471 = vmatprep.subr.mxu0 0.0
        %472 = vmatpush1.msra.mxu0 0.0
        %473 = vmatprep.subr.mxu0 0.0
        %474 = vmatpush1.msra.mxu0 0.0
        %475 = vmatprep.subr.mxu0 0.0
        %476 = vmatpush1.msra.mxu0 0.0
        %477 = vmatprep.subr.mxu0 0.0
        %478 = vmatpush1.msra.mxu0 0.0
        %479 = vmatprep.subr.mxu0 0.0
        %480 = vmatpush1.msra.mxu0 0.0
        %481 = vmatprep.subr.mxu0 0.0
        %482 = vmatpush1.msra.mxu0 0.0
        %483 = vmatprep.subr.mxu0 0.0
        %484 = vmatpush1.msra.mxu0 0.0
        %485 = vmatprep.subr.mxu0 0.0
        %486 = vmatpush1.msra.mxu0 0.0
        %487 = vmatprep.subr.mxu0 0.0
        %488 = vmatpush1.msra.mxu0 0.0
        %489 = vmatprep.subr.mxu0 0.0
        %490 = vmatpush1.msra.mxu0 0.0
        %491 = vmatprep.subr.mxu0 0.0
        %492 = vmatpush1.msra.mxu0 0.0
        %493 = vmatprep.subr.mxu0 0.0
        %494 = vmatpush1.msra.mxu0 0.0
        %495 = vmatprep.subr.mxu0 0.0
        %496 = vmatpush1.msra.mxu0 0.0
        %497 = vmatprep.subr.mxu0 0.0
        %498 = vmatpush1.msra.mxu0 0.0
        %499 = vmatprep.subr.mxu0 0.0
        %500 = vmatpush1.msra.mxu0 0.0
        %501 = vmatprep.subr.mxu0 0.0
        %502 = vmatpush1.msra.mxu0 0.0
        %503 = vmatprep.subr.mxu0 0.0
        %504 = vmatpush1.msra.mxu0 0.0
        %505 = vmatprep.subr.mxu0 0.0
        %506 = vmatpush1.msra.mxu0 0.0
        %507 = vmatprep.subr.mxu0 0.0
        %508 = vmatpush1.msra.mxu0 0.0
        %509 = vmatprep.subr.mxu0 0.0
        %510 = vmatpush1.msra.mxu0 0.0
        %511 = vmatprep.subr.mxu0 0.0
        %512 = vmatpush1.msra.mxu0 0.0
        %513 = vmatprep.subr.mxu0 0.0
        %514 = vmatpush1.msra.mxu0 0.0
        %515 = vmatprep.mubr.f32.mxu0 0.0
        %516 = vmatmul.mubr.f32.gmra.mrb[0].mxu0 %v331
        %v517 = vpop.f32.mrb[0].mxu0
        %v518 = vadd.f32 0.0, %v517
        %v519 = vpop.f32.mrb[0].mxu0
        %v520 = vadd.f32 0.0, %v519
        %521 = vmatprep.mubr.f32.mxu0 0.0
        %522 = vmatmul.mubr.f32.gmra.mrb[0].mxu0 %v334
        %v523 = vpop.f32.mrb[0].mxu0
        %v524 = vadd.f32 0.0, %v523
        %v525 = vpop.f32.mrb[0].mxu0
        %v526 = vadd.f32 0.0, %v525
        %527 = vmatprep.mubr.f32.mxu0 0.0
        %528 = vmatmul.mubr.f32.gmra.mrb[0].mxu0 %v337
        %v529 = vpop.f32.mrb[0].mxu0
        %v530 = vadd.f32 0.0, %v529
        %v531 = vpop.f32.mrb[0].mxu0
        %v532 = vadd.f32 0.0, %v531
        %533 = vmatprep.mubr.f32.mxu0 0.0
        %534 = vmatmul.mubr.f32.gmra.mrb[0].mxu0 %v340
        %v535 = vpop.f32.mrb[0].mxu0
        %v536 = vadd.f32 0.0, %v535
        %v537 = vpop.f32.mrb[0].mxu0
        %v538 = vadd.f32 0.0, %v537
        %539 = vmatprep.mubr.f32.mxu0 0.0
        %540 = vmatmul.mubr.f32.gmra.mrb[0].mxu0 %v343
        %v541 = vpop.f32.mrb[0].mxu0
        %v542 = vadd.f32 0.0, %v541
        %v543 = vpop.f32.mrb[0].mxu0
        %v544 = vadd.f32 0.0, %v543
        %545 = vmatprep.mubr.f32.mxu0 0.0
        %546 = vmatmul.mubr.f32.gmra.mrb[0].mxu0 %v346
        %v547 = vpop.f32.mrb[0].mxu0
        %v548 = vadd.f32 0.0, %v547
        %v549 = vpop.f32.mrb[0].mxu0
        %v550 = vadd.f32 0.0, %v549
        %551 = vmatprep.mubr.f32.mxu0 0.0
        %552 = vmatmul.mubr.f32.gmra.mrb[0].mxu0 %v349
        %v553 = vpop.f32.mrb[0].mxu0
        %v554 = vadd.f32 0.0, %v553
        %v555 = vpop.f32.mrb[0].mxu0
        %v556 = vadd.f32 0.0, %v555
        %557 = vmatprep.mubr.f32.mxu0 0.0
        %558 = vmatmul.mubr.f32.gmra.mrb[0].mxu0 %v352
        %v559 = vpop.f32.mrb[0].mxu0
        %v560 = vadd.f32 0.0, %v559
        %v561 = vpop.f32.mrb[0].mxu0
        %v562 = vadd.f32 0.0, %v561
        %563 = vdwg.mxu0
        %564 = vmatprep.subr.mxu0 %v196
        %565 = vmatpush1.msra.mxu0 %v195
        %566 = vmatprep.subr.mxu0 %v228
        %567 = vmatpush1.msra.mxu0 %v227
        %568 = vmatprep.subr.mxu0 %v260
        %569 = vmatpush1.msra.mxu0 %v259
        %570 = vmatprep.subr.mxu0 %v365
        %571 = vmatpush1.msra.mxu0 %v362
        %572 = vmatprep.subr.mxu0 0.0
        %573 = vmatpush1.msra.mxu0 0.0
        %574 = vmatprep.subr.mxu0 0.0
        %575 = vmatpush1.msra.mxu0 0.0
        %576 = vmatprep.subr.mxu0 0.0
        %577 = vmatpush1.msra.mxu0 0.0
        %578 = vmatprep.subr.mxu0 0.0
        %579 = vmatpush1.msra.mxu0 0.0
        %580 = vmatprep.subr.mxu0 0.0
        %581 = vmatpush1.msra.mxu0 0.0
        %582 = vmatprep.subr.mxu0 0.0
        %583 = vmatpush1.msra.mxu0 0.0
        %584 = vmatprep.subr.mxu0 0.0
        %585 = vmatpush1.msra.mxu0 0.0
        %586 = vmatprep.subr.mxu0 0.0
        %587 = vmatpush1.msra.mxu0 0.0
        %588 = vmatprep.subr.mxu0 0.0
        %589 = vmatpush1.msra.mxu0 0.0
        %590 = vmatprep.subr.mxu0 0.0
        %591 = vmatpush1.msra.mxu0 0.0
        %592 = vmatprep.subr.mxu0 0.0
        %593 = vmatpush1.msra.mxu0 0.0
        %594 = vmatprep.subr.mxu0 0.0
        %595 = vmatpush1.msra.mxu0 0.0
        %596 = vmatprep.subr.mxu0 0.0
        %597 = vmatpush1.msra.mxu0 0.0
        %598 = vmatprep.subr.mxu0 0.0
        %599 = vmatpush1.msra.mxu0 0.0
        %600 = vmatprep.subr.mxu0 0.0
        %601 = vmatpush1.msra.mxu0 0.0
        %602 = vmatprep.subr.mxu0 0.0
        %603 = vmatpush1.msra.mxu0 0.0
        %604 = vmatprep.subr.mxu0 0.0
        %605 = vmatpush1.msra.mxu0 0.0
        %606 = vmatprep.subr.mxu0 0.0
        %607 = vmatpush1.msra.mxu0 0.0
        %608 = vmatprep.subr.mxu0 0.0
        %609 = vmatpush1.msra.mxu0 0.0
        %610 = vmatprep.subr.mxu0 0.0
        %611 = vmatpush1.msra.mxu0 0.0
        %612 = vmatprep.subr.mxu0 0.0
        %613 = vmatpush1.msra.mxu0 0.0
        %614 = vmatprep.subr.mxu0 0.0
        %615 = vmatpush1.msra.mxu0 0.0
        %616 = vmatprep.subr.mxu0 0.0
        %617 = vmatpush1.msra.mxu0 0.0
        %618 = vmatprep.subr.mxu0 0.0
        %619 = vmatpush1.msra.mxu0 0.0
        %620 = vmatprep.subr.mxu0 0.0
        %621 = vmatpush1.msra.mxu0 0.0
        %622 = vmatprep.subr.mxu0 0.0
        %623 = vmatpush1.msra.mxu0 0.0
        %624 = vmatprep.subr.mxu0 0.0
        %625 = vmatpush1.msra.mxu0 0.0
        %626 = vmatprep.subr.mxu0 0.0
        %627 = vmatpush1.msra.mxu0 0.0
        %628 = vmatprep.mubr.f32.mxu0 0.0
        %629 = vmatmul.mubr.f32.gmra.mrb[0].mxu0 %v331
        %v630 = vpop.f32.mrb[0].mxu0
        %v631 = vadd.f32 0.0, %v630
        %v632 = vpop.f32.mrb[0].mxu0
        %v633 = vadd.f32 0.0, %v632
        %634 = vmatprep.mubr.f32.mxu0 0.0
        %635 = vmatmul.mubr.f32.gmra.mrb[0].mxu0 %v334
        %v636 = vpop.f32.mrb[0].mxu0
        %v637 = vadd.f32 0.0, %v636
        %v638 = vpop.f32.mrb[0].mxu0
        %v639 = vadd.f32 0.0, %v638
        %640 = vmatprep.mubr.f32.mxu0 0.0
        %641 = vmatmul.mubr.f32.gmra.mrb[0].mxu0 %v337
        %v642 = vpop.f32.mrb[0].mxu0
        %v643 = vadd.f32 0.0, %v642
        %v644 = vpop.f32.mrb[0].mxu0
        %v645 = vadd.f32 0.0, %v644
        %646 = vmatprep.mubr.f32.mxu0 0.0
        %647 = vmatmul.mubr.f32.gmra.mrb[0].mxu0 %v340
        %v648 = vpop.f32.mrb[0].mxu0
        %v649 = vadd.f32 0.0, %v648
        %v650 = vpop.f32.mrb[0].mxu0
        %v651 = vadd.f32 0.0, %v650
        %652 = vmatprep.mubr.f32.mxu0 0.0
        %653 = vmatmul.mubr.f32.gmra.mrb[0].mxu0 %v343
        %v654 = vpop.f32.mrb[0].mxu0
        %v655 = vadd.f32 0.0, %v654
        %v656 = vpop.f32.mrb[0].mxu0
        %v657 = vadd.f32 0.0, %v656
        %658 = vmatprep.mubr.f32.mxu0 0.0
        %659 = vmatmul.mubr.f32.gmra.mrb[0].mxu0 %v346
        %v660 = vpop.f32.mrb[0].mxu0
        %v661 = vadd.f32 0.0, %v660
        %v662 = vpop.f32.mrb[0].mxu0
        %v663 = vadd.f32 0.0, %v662
        %664 = vmatprep.mubr.f32.mxu0 0.0
        %665 = vmatmul.mubr.f32.gmra.mrb[0].mxu0 %v349
        %v666 = vpop.f32.mrb[0].mxu0
        %v667 = vadd.f32 0.0, %v666
        %v668 = vpop.f32.mrb[0].mxu0
        %v669 = vadd.f32 0.0, %v668
        %670 = vmatprep.mubr.f32.mxu0 0.0
        %671 = vmatmul.mubr.f32.gmra.mrb[0].mxu0 %v352
        %v672 = vpop.f32.mrb[0].mxu0
        %v673 = vadd.f32 0.0, %v672
        %v674 = vpop.f32.mrb[0].mxu0
        %v675 = vadd.f32 0.0, %v674
        %676 = vdwg.mxu0
        %677 = vmatprep.subr.mxu0 %v198
        %678 = vmatpush1.msra.mxu0 %v197
        %679 = vmatprep.subr.mxu0 %v230
        %680 = vmatpush1.msra.mxu0 %v229
        %681 = vmatprep.subr.mxu0 %v262
        %682 = vmatpush1.msra.mxu0 %v261
        %683 = vmatprep.subr.mxu0 %v371
        %684 = vmatpush1.msra.mxu0 %v368
        %685 = vmatprep.subr.mxu0 0.0
        %686 = vmatpush1.msra.mxu0 0.0
        %687 = vmatprep.subr.mxu0 0.0
        %688 = vmatpush1.msra.mxu0 0.0
        %689 = vmatprep.subr.mxu0 0.0
        %690 = vmatpush1.msra.mxu0 0.0
        %691 = vmatprep.subr.mxu0 0.0
        %692 = vmatpush1.msra.mxu0 0.0
        %693 = vmatprep.subr.mxu0 0.0
        %694 = vmatpush1.msra.mxu0 0.0
        %695 = vmatprep.subr.mxu0 0.0
        %696 = vmatpush1.msra.mxu0 0.0
        %697 = vmatprep.subr.mxu0 0.0
        %698 = vmatpush1.msra.mxu0 0.0
        %699 = vmatprep.subr.mxu0 0.0
        %700 = vmatpush1.msra.mxu0 0.0
        %701 = vmatprep.subr.mxu0 0.0
        %702 = vmatpush1.msra.mxu0 0.0
        %703 = vmatprep.subr.mxu0 0.0
        %704 = vmatpush1.msra.mxu0 0.0
        %705 = vmatprep.subr.mxu0 0.0
        %706 = vmatpush1.msra.mxu0 0.0
        %707 = vmatprep.subr.mxu0 0.0
        %708 = vmatpush1.msra.mxu0 0.0
        %709 = vmatprep.subr.mxu0 0.0
        %710 = vmatpush1.msra.mxu0 0.0
        %711 = vmatprep.subr.mxu0 0.0
        %712 = vmatpush1.msra.mxu0 0.0
        %713 = vmatprep.subr.mxu0 0.0
        %714 = vmatpush1.msra.mxu0 0.0
        %715 = vmatprep.subr.mxu0 0.0
        %716 = vmatpush1.msra.mxu0 0.0
        %717 = vmatprep.subr.mxu0 0.0
        %718 = vmatpush1.msra.mxu0 0.0
        %719 = vmatprep.subr.mxu0 0.0
        %720 = vmatpush1.msra.mxu0 0.0
        %721 = vmatprep.subr.mxu0 0.0
        %722 = vmatpush1.msra.mxu0 0.0
        %723 = vmatprep.subr.mxu0 0.0
        %724 = vmatpush1.msra.mxu0 0.0
        %725 = vmatprep.subr.mxu0 0.0
        %726 = vmatpush1.msra.mxu0 0.0
        %727 = vmatprep.subr.mxu0 0.0
        %728 = vmatpush1.msra.mxu0 0.0
        %729 = vmatprep.subr.mxu0 0.0
        %730 = vmatpush1.msra.mxu0 0.0
        %731 = vmatprep.subr.mxu0 0.0
        %732 = vmatpush1.msra.mxu0 0.0
        %733 = vmatprep.subr.mxu0 0.0
        %734 = vmatpush1.msra.mxu0 0.0
        %735 = vmatprep.subr.mxu0 0.0
        %736 = vmatpush1.msra.mxu0 0.0
        %737 = vmatprep.subr.mxu0 0.0
        %738 = vmatpush1.msra.mxu0 0.0
        %739 = vmatprep.subr.mxu0 0.0
        %740 = vmatpush1.msra.mxu0 0.0
        %741 = vmatprep.mubr.f32.mxu0 0.0
        %742 = vmatmul.mubr.f32.gmra.mrb[0].mxu0 %v331
        %v743 = vpop.f32.mrb[0].mxu0
        %v744 = vadd.f32 0.0, %v743
        %v745 = vpop.f32.mrb[0].mxu0
        %v746 = vadd.f32 0.0, %v745
        %747 = vmatprep.mubr.f32.mxu0 0.0
        %748 = vmatmul.mubr.f32.gmra.mrb[0].mxu0 %v334
        %v749 = vpop.f32.mrb[0].mxu0
        %v750 = vadd.f32 0.0, %v749
        %v751 = vpop.f32.mrb[0].mxu0
        %v752 = vadd.f32 0.0, %v751
        %753 = vmatprep.mubr.f32.mxu0 0.0
        %754 = vmatmul.mubr.f32.gmra.mrb[0].mxu0 %v337
        %v755 = vpop.f32.mrb[0].mxu0
        %v756 = vadd.f32 0.0, %v755
        %v757 = vpop.f32.mrb[0].mxu0
        %v758 = vadd.f32 0.0, %v757
        %759 = vmatprep.mubr.f32.mxu0 0.0
        %760 = vmatmul.mubr.f32.gmra.mrb[0].mxu0 %v340
        %v761 = vpop.f32.mrb[0].mxu0
        %v762 = vadd.f32 0.0, %v761
        %v763 = vpop.f32.mrb[0].mxu0
        %v764 = vadd.f32 0.0, %v763
        %765 = vmatprep.mubr.f32.mxu0 0.0
        %766 = vmatmul.mubr.f32.gmra.mrb[0].mxu0 %v343
        %v767 = vpop.f32.mrb[0].mxu0
        %v768 = vadd.f32 0.0, %v767
        %v769 = vpop.f32.mrb[0].mxu0
        %v770 = vadd.f32 0.0, %v769
        %771 = vmatprep.mubr.f32.mxu0 0.0
        %772 = vmatmul.mubr.f32.gmra.mrb[0].mxu0 %v346
        %v773 = vpop.f32.mrb[0].mxu0
        %v774 = vadd.f32 0.0, %v773
        %v775 = vpop.f32.mrb[0].mxu0
        %v776 = vadd.f32 0.0, %v775
        %777 = vmatprep.mubr.f32.mxu0 0.0
        %778 = vmatmul.mubr.f32.gmra.mrb[0].mxu0 %v349
        %v779 = vpop.f32.mrb[0].mxu0
        %v780 = vadd.f32 0.0, %v779
        %v781 = vpop.f32.mrb[0].mxu0
        %v782 = vadd.f32 0.0, %v781
        %783 = vmatprep.mubr.f32.mxu0 0.0
        %784 = vmatmul.mubr.f32.gmra.mrb[0].mxu0 %v352
        %v785 = vpop.f32.mrb[0].mxu0
        %v786 = vadd.f32 0.0, %v785
        %v787 = vpop.f32.mrb[0].mxu0
        %v788 = vadd.f32 0.0, %v787
        %789 = vdwg.mxu0
        %790 = vmatprep.subr.mxu0 %v200
        %791 = vmatpush1.msra.mxu0 %v199
        %792 = vmatprep.subr.mxu0 %v232
        %793 = vmatpush1.msra.mxu0 %v231
        %794 = vmatprep.subr.mxu0 %v264
        %795 = vmatpush1.msra.mxu0 %v263
        %796 = vmatprep.subr.mxu0 %v377
        %797 = vmatpush1.msra.mxu0 %v374
        %798 = vmatprep.subr.mxu0 0.0
        %799 = vmatpush1.msra.mxu0 0.0
        %800 = vmatprep.subr.mxu0 0.0
        %801 = vmatpush1.msra.mxu0 0.0
        %802 = vmatprep.subr.mxu0 0.0
        %803 = vmatpush1.msra.mxu0 0.0
        %804 = vmatprep.subr.mxu0 0.0
        %805 = vmatpush1.msra.mxu0 0.0
        %806 = vmatprep.subr.mxu0 0.0
        %807 = vmatpush1.msra.mxu0 0.0
        %808 = vmatprep.subr.mxu0 0.0
        %809 = vmatpush1.msra.mxu0 0.0
        %810 = vmatprep.subr.mxu0 0.0
        %811 = vmatpush1.msra.mxu0 0.0
        %812 = vmatprep.subr.mxu0 0.0
        %813 = vmatpush1.msra.mxu0 0.0
        %814 = vmatprep.subr.mxu0 0.0
        %815 = vmatpush1.msra.mxu0 0.0
        %816 = vmatprep.subr.mxu0 0.0
        %817 = vmatpush1.msra.mxu0 0.0
        %818 = vmatprep.subr.mxu0 0.0
        %819 = vmatpush1.msra.mxu0 0.0
        %820 = vmatprep.subr.mxu0 0.0
        %821 = vmatpush1.msra.mxu0 0.0
        %822 = vmatprep.subr.mxu0 0.0
        %823 = vmatpush1.msra.mxu0 0.0
        %824 = vmatprep.subr.mxu0 0.0
        %825 = vmatpush1.msra.mxu0 0.0
        %826 = vmatprep.subr.mxu0 0.0
        %827 = vmatpush1.msra.mxu0 0.0
        %828 = vmatprep.subr.mxu0 0.0
        %829 = vmatpush1.msra.mxu0 0.0
        %830 = vmatprep.subr.mxu0 0.0
        %831 = vmatpush1.msra.mxu0 0.0
        %832 = vmatprep.subr.mxu0 0.0
        %833 = vmatpush1.msra.mxu0 0.0
        %834 = vmatprep.subr.mxu0 0.0
        %835 = vmatpush1.msra.mxu0 0.0
        %836 = vmatprep.subr.mxu0 0.0
        %837 = vmatpush1.msra.mxu0 0.0
        %838 = vmatprep.subr.mxu0 0.0
        %839 = vmatpush1.msra.mxu0 0.0
        %840 = vmatprep.subr.mxu0 0.0
        %841 = vmatpush1.msra.mxu0 0.0
        %842 = vmatprep.subr.mxu0 0.0
        %843 = vmatpush1.msra.mxu0 0.0
        %844 = vmatprep.subr.mxu0 0.0
        %845 = vmatpush1.msra.mxu0 0.0
        %846 = vmatprep.subr.mxu0 0.0
        %847 = vmatpush1.msra.mxu0 0.0
        %848 = vmatprep.subr.mxu0 0.0
        %849 = vmatpush1.msra.mxu0 0.0
        %850 = vmatprep.subr.mxu0 0.0
        %851 = vmatpush1.msra.mxu0 0.0
        %852 = vmatprep.subr.mxu0 0.0
        %853 = vmatpush1.msra.mxu0 0.0
        %854 = vmatprep.mubr.f32.mxu0 0.0
        %855 = vmatmul.mubr.f32.gmra.mrb[0].mxu0 %v331
        %v856 = vpop.f32.mrb[0].mxu0
        %v857 = vadd.f32 0.0, %v856
        %v858 = vpop.f32.mrb[0].mxu0
        %v859 = vadd.f32 0.0, %v858
        %860 = vmatprep.mubr.f32.mxu0 0.0
        %861 = vmatmul.mubr.f32.gmra.mrb[0].mxu0 %v334
        %v862 = vpop.f32.mrb[0].mxu0
        %v863 = vadd.f32 0.0, %v862
        %v864 = vpop.f32.mrb[0].mxu0
        %v865 = vadd.f32 0.0, %v864
        %866 = vmatprep.mubr.f32.mxu0 0.0
        %867 = vmatmul.mubr.f32.gmra.mrb[0].mxu0 %v337
        %v868 = vpop.f32.mrb[0].mxu0
        %v869 = vadd.f32 0.0, %v868
        %v870 = vpop.f32.mrb[0].mxu0
        %v871 = vadd.f32 0.0, %v870
        %872 = vmatprep.mubr.f32.mxu0 0.0
        %873 = vmatmul.mubr.f32.gmra.mrb[0].mxu0 %v340
        %v874 = vpop.f32.mrb[0].mxu0
        %v875 = vadd.f32 0.0, %v874
        %v876 = vpop.f32.mrb[0].mxu0
        %v877 = vadd.f32 0.0, %v876
        %878 = vmatprep.mubr.f32.mxu0 0.0
        %879 = vmatmul.mubr.f32.gmra.mrb[0].mxu0 %v343
        %v880 = vpop.f32.mrb[0].mxu0
        %v881 = vadd.f32 0.0, %v880
        %v882 = vpop.f32.mrb[0].mxu0
        %v883 = vadd.f32 0.0, %v882
        %884 = vmatprep.mubr.f32.mxu0 0.0
        %885 = vmatmul.mubr.f32.gmra.mrb[0].mxu0 %v346
        %v886 = vpop.f32.mrb[0].mxu0
        %v887 = vadd.f32 0.0, %v886
        %v888 = vpop.f32.mrb[0].mxu0
        %v889 = vadd.f32 0.0, %v888
        %890 = vmatprep.mubr.f32.mxu0 0.0
        %891 = vmatmul.mubr.f32.gmra.mrb[0].mxu0 %v349
        %v892 = vpop.f32.mrb[0].mxu0
        %v893 = vadd.f32 0.0, %v892
        %v894 = vpop.f32.mrb[0].mxu0
        %v895 = vadd.f32 0.0, %v894
        %896 = vmatprep.mubr.f32.mxu0 0.0
        %897 = vmatmul.mubr.f32.gmra.mrb[0].mxu0 %v352
        %v898 = vpop.f32.mrb[0].mxu0
        %v899 = vadd.f32 0.0, %v898
        %v900 = vpop.f32.mrb[0].mxu0
        %v901 = vadd.f32 0.0, %v900
        %902 = vdwg.mxu0
        %903 = vmatprep.subr.mxu0 %v202
        %904 = vmatpush1.msra.mxu0 %v201
        %905 = vmatprep.subr.mxu0 %v234
        %906 = vmatpush1.msra.mxu0 %v233
        %907 = vmatprep.subr.mxu0 %v266
        %908 = vmatpush1.msra.mxu0 %v265
        %909 = vmatprep.subr.mxu0 %v383
        %910 = vmatpush1.msra.mxu0 %v380
        %911 = vmatprep.subr.mxu0 0.0
        %912 = vmatpush1.msra.mxu0 0.0
        %913 = vmatprep.subr.mxu0 0.0
        %914 = vmatpush1.msra.mxu0 0.0
        %915 = vmatprep.subr.mxu0 0.0
        %916 = vmatpush1.msra.mxu0 0.0
        %917 = vmatprep.subr.mxu0 0.0
        %918 = vmatpush1.msra.mxu0 0.0
        %919 = vmatprep.subr.mxu0 0.0
        %920 = vmatpush1.msra.mxu0 0.0
        %921 = vmatprep.subr.mxu0 0.0
        %922 = vmatpush1.msra.mxu0 0.0
        %923 = vmatprep.subr.mxu0 0.0
        %924 = vmatpush1.msra.mxu0 0.0
        %925 = vmatprep.subr.mxu0 0.0
        %926 = vmatpush1.msra.mxu0 0.0
        %927 = vmatprep.subr.mxu0 0.0
        %928 = vmatpush1.msra.mxu0 0.0
        %929 = vmatprep.subr.mxu0 0.0
        %930 = vmatpush1.msra.mxu0 0.0
        %931 = vmatprep.subr.mxu0 0.0
        %932 = vmatpush1.msra.mxu0 0.0
        %933 = vmatprep.subr.mxu0 0.0
        %934 = vmatpush1.msra.mxu0 0.0
        %935 = vmatprep.subr.mxu0 0.0
        %936 = vmatpush1.msra.mxu0 0.0
        %937 = vmatprep.subr.mxu0 0.0
        %938 = vmatpush1.msra.mxu0 0.0
        %939 = vmatprep.subr.mxu0 0.0
        %940 = vmatpush1.msra.mxu0 0.0
        %941 = vmatprep.subr.mxu0 0.0
        %942 = vmatpush1.msra.mxu0 0.0
        %943 = vmatprep.subr.mxu0 0.0
        %944 = vmatpush1.msra.mxu0 0.0
        %945 = vmatprep.subr.mxu0 0.0
        %946 = vmatpush1.msra.mxu0 0.0
        %947 = vmatprep.subr.mxu0 0.0
        %948 = vmatpush1.msra.mxu0 0.0
        %949 = vmatprep.subr.mxu0 0.0
        %950 = vmatpush1.msra.mxu0 0.0
        %951 = vmatprep.subr.mxu0 0.0
        %952 = vmatpush1.msra.mxu0 0.0
        %953 = vmatprep.subr.mxu0 0.0
        %954 = vmatpush1.msra.mxu0 0.0
        %955 = vmatprep.subr.mxu0 0.0
        %956 = vmatpush1.msra.mxu0 0.0
        %957 = vmatprep.subr.mxu0 0.0
        %958 = vmatpush1.msra.mxu0 0.0
        %959 = vmatprep.subr.mxu0 0.0
        %960 = vmatpush1.msra.mxu0 0.0
        %961 = vmatprep.subr.mxu0 0.0
        %962 = vmatpush1.msra.mxu0 0.0
        %963 = vmatprep.subr.mxu0 0.0
        %964 = vmatpush1.msra.mxu0 0.0
        %965 = vmatprep.subr.mxu0 0.0
        %966 = vmatpush1.msra.mxu0 0.0
        %967 = vmatprep.mubr.f32.mxu0 0.0
        %968 = vmatmul.mubr.f32.gmra.mrb[0].mxu0 %v331
        %v969 = vpop.f32.mrb[0].mxu0
        %v970 = vadd.f32 0.0, %v969
        %v971 = vpop.f32.mrb[0].mxu0
        %v972 = vadd.f32 0.0, %v971
        %973 = vmatprep.mubr.f32.mxu0 0.0
        %974 = vmatmul.mubr.f32.gmra.mrb[0].mxu0 %v334
        %v975 = vpop.f32.mrb[0].mxu0
        %v976 = vadd.f32 0.0, %v975
        %v977 = vpop.f32.mrb[0].mxu0
        %v978 = vadd.f32 0.0, %v977
        %979 = vmatprep.mubr.f32.mxu0 0.0
        %980 = vmatmul.mubr.f32.gmra.mrb[0].mxu0 %v337
        %v981 = vpop.f32.mrb[0].mxu0
        %v982 = vadd.f32 0.0, %v981
        %v983 = vpop.f32.mrb[0].mxu0
        %v984 = vadd.f32 0.0, %v983
        %985 = vmatprep.mubr.f32.mxu0 0.0
        %986 = vmatmul.mubr.f32.gmra.mrb[0].mxu0 %v340
        %v987 = vpop.f32.mrb[0].mxu0
        %v988 = vadd.f32 0.0, %v987
        %v989 = vpop.f32.mrb[0].mxu0
        %v990 = vadd.f32 0.0, %v989
        %991 = vmatprep.mubr.f32.mxu0 0.0
        %992 = vmatmul.mubr.f32.gmra.mrb[0].mxu0 %v343
        %v993 = vpop.f32.mrb[0].mxu0
        %v994 = vadd.f32 0.0, %v993
        %v995 = vpop.f32.mrb[0].mxu0
        %v996 = vadd.f32 0.0, %v995
        %997 = vmatprep.mubr.f32.mxu0 0.0
        %998 = vmatmul.mubr.f32.gmra.mrb[0].mxu0 %v346
        %v999 = vpop.f32.mrb[0].mxu0
        %v1000 = vadd.f32 0.0, %v999
        %v1001 = vpop.f32.mrb[0].mxu0
        %v1002 = vadd.f32 0.0, %v1001
        %1003 = vmatprep.mubr.f32.mxu0 0.0
        %1004 = vmatmul.mubr.f32.gmra.mrb[0].mxu0 %v349
        %v1005 = vpop.f32.mrb[0].mxu0
        %v1006 = vadd.f32 0.0, %v1005
        %v1007 = vpop.f32.mrb[0].mxu0
        %v1008 = vadd.f32 0.0, %v1007
        %1009 = vmatprep.mubr.f32.mxu0 0.0
        %1010 = vmatmul.mubr.f32.gmra.mrb[0].mxu0 %v352
        %v1011 = vpop.f32.mrb[0].mxu0
        %v1012 = vadd.f32 0.0, %v1011
        %v1013 = vpop.f32.mrb[0].mxu0
        %v1014 = vadd.f32 0.0, %v1013
        %1015 = vdwg.mxu0
        %1016 = vmatprep.subr.mxu0 %v204
        %1017 = vmatpush1.msra.mxu0 %v203
        %1018 = vmatprep.subr.mxu0 %v236
        %1019 = vmatpush1.msra.mxu0 %v235
        %1020 = vmatprep.subr.mxu0 %v268
        %1021 = vmatpush1.msra.mxu0 %v267
        %1022 = vmatprep.subr.mxu0 %v389
        %1023 = vmatpush1.msra.mxu0 %v386
        %1024 = vmatprep.subr.mxu0 0.0
        %1025 = vmatpush1.msra.mxu0 0.0
        %1026 = vmatprep.subr.mxu0 0.0
        %1027 = vmatpush1.msra.mxu0 0.0
        %1028 = vmatprep.subr.mxu0 0.0
        %1029 = vmatpush1.msra.mxu0 0.0
        %1030 = vmatprep.subr.mxu0 0.0
        %1031 = vmatpush1.msra.mxu0 0.0
        %1032 = vmatprep.subr.mxu0 0.0
        %1033 = vmatpush1.msra.mxu0 0.0
        %1034 = vmatprep.subr.mxu0 0.0
        %1035 = vmatpush1.msra.mxu0 0.0
        %1036 = vmatprep.subr.mxu0 0.0
        %1037 = vmatpush1.msra.mxu0 0.0
        %1038 = vmatprep.subr.mxu0 0.0
        %1039 = vmatpush1.msra.mxu0 0.0
        %1040 = vmatprep.subr.mxu0 0.0
        %1041 = vmatpush1.msra.mxu0 0.0
        %1042 = vmatprep.subr.mxu0 0.0
        %1043 = vmatpush1.msra.mxu0 0.0
        %1044 = vmatprep.subr.mxu0 0.0
        %1045 = vmatpush1.msra.mxu0 0.0
        %1046 = vmatprep.subr.mxu0 0.0
        %1047 = vmatpush1.msra.mxu0 0.0
        %1048 = vmatprep.subr.mxu0 0.0
        %1049 = vmatpush1.msra.mxu0 0.0
        %1050 = vmatprep.subr.mxu0 0.0
        %1051 = vmatpush1.msra.mxu0 0.0
        %1052 = vmatprep.subr.mxu0 0.0
        %1053 = vmatpush1.msra.mxu0 0.0
        %1054 = vmatprep.subr.mxu0 0.0
        %1055 = vmatpush1.msra.mxu0 0.0
        %1056 = vmatprep.subr.mxu0 0.0
        %1057 = vmatpush1.msra.mxu0 0.0
        %1058 = vmatprep.subr.mxu0 0.0
        %1059 = vmatpush1.msra.mxu0 0.0
        %1060 = vmatprep.subr.mxu0 0.0
        %1061 = vmatpush1.msra.mxu0 0.0
        %1062 = vmatprep.subr.mxu0 0.0
        %1063 = vmatpush1.msra.mxu0 0.0
        %1064 = vmatprep.subr.mxu0 0.0
        %1065 = vmatpush1.msra.mxu0 0.0
        %1066 = vmatprep.subr.mxu0 0.0
        %1067 = vmatpush1.msra.mxu0 0.0
        %1068 = vmatprep.subr.mxu0 0.0
        %1069 = vmatpush1.msra.mxu0 0.0
        %1070 = vmatprep.subr.mxu0 0.0
        %1071 = vmatpush1.msra.mxu0 0.0
        %1072 = vmatprep.subr.mxu0 0.0
        %1073 = vmatpush1.msra.mxu0 0.0
        %1074 = vmatprep.subr.mxu0 0.0
        %1075 = vmatpush1.msra.mxu0 0.0
        %1076 = vmatprep.subr.mxu0 0.0
        %1077 = vmatpush1.msra.mxu0 0.0
        %1078 = vmatprep.subr.mxu0 0.0
        %1079 = vmatpush1.msra.mxu0 0.0
        %1080 = vmatprep.mubr.f32.mxu0 0.0
        %1081 = vmatmul.mubr.f32.gmra.mrb[0].mxu0 %v331
        %v1082 = vpop.f32.mrb[0].mxu0
        %v1083 = vadd.f32 0.0, %v1082
        %v1084 = vpop.f32.mrb[0].mxu0
        %v1085 = vadd.f32 0.0, %v1084
        %1086 = vmatprep.mubr.f32.mxu0 0.0
        %1087 = vmatmul.mubr.f32.gmra.mrb[0].mxu0 %v334
        %v1088 = vpop.f32.mrb[0].mxu0
        %v1089 = vadd.f32 0.0, %v1088
        %v1090 = vpop.f32.mrb[0].mxu0
        %v1091 = vadd.f32 0.0, %v1090
        %1092 = vmatprep.mubr.f32.mxu0 0.0
        %1093 = vmatmul.mubr.f32.gmra.mrb[0].mxu0 %v337
        %v1094 = vpop.f32.mrb[0].mxu0
        %v1095 = vadd.f32 0.0, %v1094
        %v1096 = vpop.f32.mrb[0].mxu0
        %v1097 = vadd.f32 0.0, %v1096
        %1098 = vmatprep.mubr.f32.mxu0 0.0
        %1099 = vmatmul.mubr.f32.gmra.mrb[0].mxu0 %v340
        %v1100 = vpop.f32.mrb[0].mxu0
        %v1101 = vadd.f32 0.0, %v1100
        %v1102 = vpop.f32.mrb[0].mxu0
        %v1103 = vadd.f32 0.0, %v1102
        %1104 = vmatprep.mubr.f32.mxu0 0.0
        %1105 = vmatmul.mubr.f32.gmra.mrb[0].mxu0 %v343
        %v1106 = vpop.f32.mrb[0].mxu0
        %v1107 = vadd.f32 0.0, %v1106
        %v1108 = vpop.f32.mrb[0].mxu0
        %v1109 = vadd.f32 0.0, %v1108
        %1110 = vmatprep.mubr.f32.mxu0 0.0
        %1111 = vmatmul.mubr.f32.gmra.mrb[0].mxu0 %v346
        %v1112 = vpop.f32.mrb[0].mxu0
        %v1113 = vadd.f32 0.0, %v1112
        %v1114 = vpop.f32.mrb[0].mxu0
        %v1115 = vadd.f32 0.0, %v1114
        %1116 = vmatprep.mubr.f32.mxu0 0.0
        %1117 = vmatmul.mubr.f32.gmra.mrb[0].mxu0 %v349
        %v1118 = vpop.f32.mrb[0].mxu0
        %v1119 = vadd.f32 0.0, %v1118
        %v1120 = vpop.f32.mrb[0].mxu0
        %v1121 = vadd.f32 0.0, %v1120
        %1122 = vmatprep.mubr.f32.mxu0 0.0
        %1123 = vmatmul.mubr.f32.gmra.mrb[0].mxu0 %v352
        %v1124 = vpop.f32.mrb[0].mxu0
        %v1125 = vadd.f32 0.0, %v1124
        %v1126 = vpop.f32.mrb[0].mxu0
        %v1127 = vadd.f32 0.0, %v1126
        %1128 = vdwg.mxu0
        %1129 = vmatprep.subr.mxu0 %v206
        %1130 = vmatpush1.msra.mxu0 %v205
        %1131 = vmatprep.subr.mxu0 %v238
        %1132 = vmatpush1.msra.mxu0 %v237
        %1133 = vmatprep.subr.mxu0 %v270
        %1134 = vmatpush1.msra.mxu0 %v269
        %1135 = vmatprep.subr.mxu0 %v395
        %1136 = vmatpush1.msra.mxu0 %v392
        %1137 = vmatprep.subr.mxu0 0.0
        %1138 = vmatpush1.msra.mxu0 0.0
        %1139 = vmatprep.subr.mxu0 0.0
        %1140 = vmatpush1.msra.mxu0 0.0
        %1141 = vmatprep.subr.mxu0 0.0
        %1142 = vmatpush1.msra.mxu0 0.0
        %1143 = vmatprep.subr.mxu0 0.0
        %1144 = vmatpush1.msra.mxu0 0.0
        %1145 = vmatprep.subr.mxu0 0.0
        %1146 = vmatpush1.msra.mxu0 0.0
        %1147 = vmatprep.subr.mxu0 0.0
        %1148 = vmatpush1.msra.mxu0 0.0
        %1149 = vmatprep.subr.mxu0 0.0
        %1150 = vmatpush1.msra.mxu0 0.0
        %1151 = vmatprep.subr.mxu0 0.0
        %1152 = vmatpush1.msra.mxu0 0.0
        %1153 = vmatprep.subr.mxu0 0.0
        %1154 = vmatpush1.msra.mxu0 0.0
        %1155 = vmatprep.subr.mxu0 0.0
        %1156 = vmatpush1.msra.mxu0 0.0
        %1157 = vmatprep.subr.mxu0 0.0
        %1158 = vmatpush1.msra.mxu0 0.0
        %1159 = vmatprep.subr.mxu0 0.0
        %1160 = vmatpush1.msra.mxu0 0.0
        %1161 = vmatprep.subr.mxu0 0.0
        %1162 = vmatpush1.msra.mxu0 0.0
        %1163 = vmatprep.subr.mxu0 0.0
        %1164 = vmatpush1.msra.mxu0 0.0
        %1165 = vmatprep.subr.mxu0 0.0
        %1166 = vmatpush1.msra.mxu0 0.0
        %1167 = vmatprep.subr.mxu0 0.0
        %1168 = vmatpush1.msra.mxu0 0.0
        %1169 = vmatprep.subr.mxu0 0.0
        %1170 = vmatpush1.msra.mxu0 0.0
        %1171 = vmatprep.subr.mxu0 0.0
        %1172 = vmatpush1.msra.mxu0 0.0
        %1173 = vmatprep.subr.mxu0 0.0
        %1174 = vmatpush1.msra.mxu0 0.0
        %1175 = vmatprep.subr.mxu0 0.0
        %1176 = vmatpush1.msra.mxu0 0.0
        %1177 = vmatprep.subr.mxu0 0.0
        %1178 = vmatpush1.msra.mxu0 0.0
        %1179 = vmatprep.subr.mxu0 0.0
        %1180 = vmatpush1.msra.mxu0 0.0
        %1181 = vmatprep.subr.mxu0 0.0
        %1182 = vmatpush1.msra.mxu0 0.0
        %1183 = vmatprep.subr.mxu0 0.0
        %1184 = vmatpush1.msra.mxu0 0.0
        %1185 = vmatprep.subr.mxu0 0.0
        %1186 = vmatpush1.msra.mxu0 0.0
        %1187 = vmatprep.subr.mxu0 0.0
        %1188 = vmatpush1.msra.mxu0 0.0
        %1189 = vmatprep.subr.mxu0 0.0
        %1190 = vmatpush1.msra.mxu0 0.0
        %1191 = vmatprep.subr.mxu0 0.0
        %1192 = vmatpush1.msra.mxu0 0.0
        %1193 = vmatprep.mubr.f32.mxu0 0.0
        %1194 = vmatmul.mubr.f32.gmra.mrb[0].mxu0 %v331
        %v1195 = vpop.f32.mrb[0].mxu0
        %v1196 = vadd.f32 0.0, %v1195
        %v1197 = vpop.f32.mrb[0].mxu0
        %v1198 = vadd.f32 0.0, %v1197
        %1199 = vmatprep.mubr.f32.mxu0 0.0
        %1200 = vmatmul.mubr.f32.gmra.mrb[0].mxu0 %v334
        %v1201 = vpop.f32.mrb[0].mxu0
        %v1202 = vadd.f32 0.0, %v1201
        %v1203 = vpop.f32.mrb[0].mxu0
        %v1204 = vadd.f32 0.0, %v1203
        %1205 = vmatprep.mubr.f32.mxu0 0.0
        %1206 = vmatmul.mubr.f32.gmra.mrb[0].mxu0 %v337
        %v1207 = vpop.f32.mrb[0].mxu0
        %v1208 = vadd.f32 0.0, %v1207
        %v1209 = vpop.f32.mrb[0].mxu0
        %v1210 = vadd.f32 0.0, %v1209
        %1211 = vmatprep.mubr.f32.mxu0 0.0
        %1212 = vmatmul.mubr.f32.gmra.mrb[0].mxu0 %v340
        %v1213 = vpop.f32.mrb[0].mxu0
        %v1214 = vadd.f32 0.0, %v1213
        %v1215 = vpop.f32.mrb[0].mxu0
        %v1216 = vadd.f32 0.0, %v1215
        %1217 = vmatprep.mubr.f32.mxu0 0.0
        %1218 = vmatmul.mubr.f32.gmra.mrb[0].mxu0 %v343
        %v1219 = vpop.f32.mrb[0].mxu0
        %v1220 = vadd.f32 0.0, %v1219
        %v1221 = vpop.f32.mrb[0].mxu0
        %v1222 = vadd.f32 0.0, %v1221
        %1223 = vmatprep.mubr.f32.mxu0 0.0
        %1224 = vmatmul.mubr.f32.gmra.mrb[0].mxu0 %v346
        %v1225 = vpop.f32.mrb[0].mxu0
        %v1226 = vadd.f32 0.0, %v1225
        %v1227 = vpop.f32.mrb[0].mxu0
        %v1228 = vadd.f32 0.0, %v1227
        %1229 = vmatprep.mubr.f32.mxu0 0.0
        %1230 = vmatmul.mubr.f32.gmra.mrb[0].mxu0 %v349
        %v1231 = vpop.f32.mrb[0].mxu0
        %v1232 = vadd.f32 0.0, %v1231
        %v1233 = vpop.f32.mrb[0].mxu0
        %v1234 = vadd.f32 0.0, %v1233
        %1235 = vmatprep.mubr.f32.mxu0 0.0
        %1236 = vmatmul.mubr.f32.gmra.mrb[0].mxu0 %v352
        %v1237 = vpop.f32.mrb[0].mxu0
        %v1238 = vadd.f32 0.0, %v1237
        %v1239 = vpop.f32.mrb[0].mxu0
        %v1240 = vadd.f32 0.0, %v1239
        %1241 = vdwg.mxu0
        %1242 = vmatprep.subr.mxu0 %v208
        %1243 = vmatpush1.msra.mxu0 %v207
        %1244 = vmatprep.subr.mxu0 %v240
        %1245 = vmatpush1.msra.mxu0 %v239
        %1246 = vmatprep.subr.mxu0 %v272
        %1247 = vmatpush1.msra.mxu0 %v271
        %1248 = vmatprep.subr.mxu0 %v401
        %1249 = vmatpush1.msra.mxu0 %v398
        %1250 = vmatprep.subr.mxu0 0.0
        %1251 = vmatpush1.msra.mxu0 0.0
        %1252 = vmatprep.subr.mxu0 0.0
        %1253 = vmatpush1.msra.mxu0 0.0
        %1254 = vmatprep.subr.mxu0 0.0
        %1255 = vmatpush1.msra.mxu0 0.0
        %1256 = vmatprep.subr.mxu0 0.0
        %1257 = vmatpush1.msra.mxu0 0.0
        %1258 = vmatprep.subr.mxu0 0.0
        %1259 = vmatpush1.msra.mxu0 0.0
        %1260 = vmatprep.subr.mxu0 0.0
        %1261 = vmatpush1.msra.mxu0 0.0
        %1262 = vmatprep.subr.mxu0 0.0
        %1263 = vmatpush1.msra.mxu0 0.0
        %1264 = vmatprep.subr.mxu0 0.0
        %1265 = vmatpush1.msra.mxu0 0.0
        %1266 = vmatprep.subr.mxu0 0.0
        %1267 = vmatpush1.msra.mxu0 0.0
        %1268 = vmatprep.subr.mxu0 0.0
        %1269 = vmatpush1.msra.mxu0 0.0
        %1270 = vmatprep.subr.mxu0 0.0
        %1271 = vmatpush1.msra.mxu0 0.0
        %1272 = vmatprep.subr.mxu0 0.0
        %1273 = vmatpush1.msra.mxu0 0.0
        %1274 = vmatprep.subr.mxu0 0.0
        %1275 = vmatpush1.msra.mxu0 0.0
        %1276 = vmatprep.subr.mxu0 0.0
        %1277 = vmatpush1.msra.mxu0 0.0
        %1278 = vmatprep.subr.mxu0 0.0
        %1279 = vmatpush1.msra.mxu0 0.0
        %1280 = vmatprep.subr.mxu0 0.0
        %1281 = vmatpush1.msra.mxu0 0.0
        %1282 = vmatprep.subr.mxu0 0.0
        %1283 = vmatpush1.msra.mxu0 0.0
        %1284 = vmatprep.subr.mxu0 0.0
        %1285 = vmatpush1.msra.mxu0 0.0
        %1286 = vmatprep.subr.mxu0 0.0
        %1287 = vmatpush1.msra.mxu0 0.0
        %1288 = vmatprep.subr.mxu0 0.0
        %1289 = vmatpush1.msra.mxu0 0.0
        %1290 = vmatprep.subr.mxu0 0.0
        %1291 = vmatpush1.msra.mxu0 0.0
        %1292 = vmatprep.subr.mxu0 0.0
        %1293 = vmatpush1.msra.mxu0 0.0
        %1294 = vmatprep.subr.mxu0 0.0
        %1295 = vmatpush1.msra.mxu0 0.0
        %1296 = vmatprep.subr.mxu0 0.0
        %1297 = vmatpush1.msra.mxu0 0.0
        %1298 = vmatprep.subr.mxu0 0.0
        %1299 = vmatpush1.msra.mxu0 0.0
        %1300 = vmatprep.subr.mxu0 0.0
        %1301 = vmatpush1.msra.mxu0 0.0
        %1302 = vmatprep.subr.mxu0 0.0
        %1303 = vmatpush1.msra.mxu0 0.0
        %1304 = vmatprep.subr.mxu0 0.0
        %1305 = vmatpush1.msra.mxu0 0.0
        %1306 = vmatprep.mubr.f32.mxu0 0.0
        %1307 = vmatmul.mubr.f32.gmra.mrb[0].mxu0 %v331
        %v1308 = vpop.f32.mrb[0].mxu0
        %v1309 = vadd.f32 0.0, %v1308
        %v1310 = vpop.f32.mrb[0].mxu0
        %v1311 = vadd.f32 0.0, %v1310
        %1312 = vmatprep.mubr.f32.mxu0 0.0
        %1313 = vmatmul.mubr.f32.gmra.mrb[0].mxu0 %v334
        %v1314 = vpop.f32.mrb[0].mxu0
        %v1315 = vadd.f32 0.0, %v1314
        %v1316 = vpop.f32.mrb[0].mxu0
        %v1317 = vadd.f32 0.0, %v1316
        %1318 = vmatprep.mubr.f32.mxu0 0.0
        %1319 = vmatmul.mubr.f32.gmra.mrb[0].mxu0 %v337
        %v1320 = vpop.f32.mrb[0].mxu0
        %v1321 = vadd.f32 0.0, %v1320
        %v1322 = vpop.f32.mrb[0].mxu0
        %v1323 = vadd.f32 0.0, %v1322
        %1324 = vmatprep.mubr.f32.mxu0 0.0
        %1325 = vmatmul.mubr.f32.gmra.mrb[0].mxu0 %v340
        %v1326 = vpop.f32.mrb[0].mxu0
        %v1327 = vadd.f32 0.0, %v1326
        %v1328 = vpop.f32.mrb[0].mxu0
        %v1329 = vadd.f32 0.0, %v1328
        %1330 = vmatprep.mubr.f32.mxu0 0.0
        %1331 = vmatmul.mubr.f32.gmra.mrb[0].mxu0 %v343
        %v1332 = vpop.f32.mrb[0].mxu0
        %v1333 = vadd.f32 0.0, %v1332
        %v1334 = vpop.f32.mrb[0].mxu0
        %v1335 = vadd.f32 0.0, %v1334
        %1336 = vmatprep.mubr.f32.mxu0 0.0
        %1337 = vmatmul.mubr.f32.gmra.mrb[0].mxu0 %v346
        %v1338 = vpop.f32.mrb[0].mxu0
        %v1339 = vadd.f32 0.0, %v1338
        %v1340 = vpop.f32.mrb[0].mxu0
        %v1341 = vadd.f32 0.0, %v1340
        %1342 = vmatprep.mubr.f32.mxu0 0.0
        %1343 = vmatmul.mubr.f32.gmra.mrb[0].mxu0 %v349
        %v1344 = vpop.f32.mrb[0].mxu0
        %v1345 = vadd.f32 0.0, %v1344
        %v1346 = vpop.f32.mrb[0].mxu0
        %v1347 = vadd.f32 0.0, %v1346
        %1348 = vmatprep.mubr.f32.mxu0 0.0
        %1349 = vmatmul.mubr.f32.gmra.mrb[0].mxu0 %v352
        %v1350 = vpop.f32.mrb[0].mxu0
        %v1351 = vadd.f32 0.0, %v1350
        %v1352 = vpop.f32.mrb[0].mxu0
        %v1353 = vadd.f32 0.0, %v1352
        %1354 = vdwg.mxu0
        %1355 = vmatprep.subr.mxu0 %v210
        %1356 = vmatpush1.msra.mxu0 %v209
        %1357 = vmatprep.subr.mxu0 %v242
        %1358 = vmatpush1.msra.mxu0 %v241
        %1359 = vmatprep.subr.mxu0 %v274
        %1360 = vmatpush1.msra.mxu0 %v273
        %1361 = vmatprep.subr.mxu0 %v407
        %1362 = vmatpush1.msra.mxu0 %v404
        %1363 = vmatprep.subr.mxu0 0.0
        %1364 = vmatpush1.msra.mxu0 0.0
        %1365 = vmatprep.subr.mxu0 0.0
        %1366 = vmatpush1.msra.mxu0 0.0
        %1367 = vmatprep.subr.mxu0 0.0
        %1368 = vmatpush1.msra.mxu0 0.0
        %1369 = vmatprep.subr.mxu0 0.0
        %1370 = vmatpush1.msra.mxu0 0.0
        %1371 = vmatprep.subr.mxu0 0.0
        %1372 = vmatpush1.msra.mxu0 0.0
        %1373 = vmatprep.subr.mxu0 0.0
        %1374 = vmatpush1.msra.mxu0 0.0
        %1375 = vmatprep.subr.mxu0 0.0
        %1376 = vmatpush1.msra.mxu0 0.0
        %1377 = vmatprep.subr.mxu0 0.0
        %1378 = vmatpush1.msra.mxu0 0.0
        %1379 = vmatprep.subr.mxu0 0.0
        %1380 = vmatpush1.msra.mxu0 0.0
        %1381 = vmatprep.subr.mxu0 0.0
        %1382 = vmatpush1.msra.mxu0 0.0
        %1383 = vmatprep.subr.mxu0 0.0
        %1384 = vmatpush1.msra.mxu0 0.0
        %1385 = vmatprep.subr.mxu0 0.0
        %1386 = vmatpush1.msra.mxu0 0.0
        %1387 = vmatprep.subr.mxu0 0.0
        %1388 = vmatpush1.msra.mxu0 0.0
        %1389 = vmatprep.subr.mxu0 0.0
        %1390 = vmatpush1.msra.mxu0 0.0
        %1391 = vmatprep.subr.mxu0 0.0
        %1392 = vmatpush1.msra.mxu0 0.0
        %1393 = vmatprep.subr.mxu0 0.0
        %1394 = vmatpush1.msra.mxu0 0.0
        %1395 = vmatprep.subr.mxu0 0.0
        %1396 = vmatpush1.msra.mxu0 0.0
        %1397 = vmatprep.subr.mxu0 0.0
        %1398 = vmatpush1.msra.mxu0 0.0
        %1399 = vmatprep.subr.mxu0 0.0
        %1400 = vmatpush1.msra.mxu0 0.0
        %1401 = vmatprep.subr.mxu0 0.0
        %1402 = vmatpush1.msra.mxu0 0.0
        %1403 = vmatprep.subr.mxu0 0.0
        %1404 = vmatpush1.msra.mxu0 0.0
        %1405 = vmatprep.subr.mxu0 0.0
        %1406 = vmatpush1.msra.mxu0 0.0
        %1407 = vmatprep.subr.mxu0 0.0
        %1408 = vmatpush1.msra.mxu0 0.0
        %1409 = vmatprep.subr.mxu0 0.0
        %1410 = vmatpush1.msra.mxu0 0.0
        %1411 = vmatprep.subr.mxu0 0.0
        %1412 = vmatpush1.msra.mxu0 0.0
        %1413 = vmatprep.subr.mxu0 0.0
        %1414 = vmatpush1.msra.mxu0 0.0
        %1415 = vmatprep.subr.mxu0 0.0
        %1416 = vmatpush1.msra.mxu0 0.0
        %1417 = vmatprep.subr.mxu0 0.0
        %1418 = vmatpush1.msra.mxu0 0.0
        %1419 = vmatprep.mubr.f32.mxu0 0.0
        %1420 = vmatmul.mubr.f32.gmra.mrb[0].mxu0 %v331
        %v1421 = vpop.f32.mrb[0].mxu0
        %v1422 = vadd.f32 0.0, %v1421
        %v1423 = vpop.f32.mrb[0].mxu0
        %v1424 = vadd.f32 0.0, %v1423
        %1425 = vmatprep.mubr.f32.mxu0 0.0
        %1426 = vmatmul.mubr.f32.gmra.mrb[0].mxu0 %v334
        %v1427 = vpop.f32.mrb[0].mxu0
        %v1428 = vadd.f32 0.0, %v1427
        %v1429 = vpop.f32.mrb[0].mxu0
        %v1430 = vadd.f32 0.0, %v1429
        %1431 = vmatprep.mubr.f32.mxu0 0.0
        %1432 = vmatmul.mubr.f32.gmra.mrb[0].mxu0 %v337
        %v1433 = vpop.f32.mrb[0].mxu0
        %v1434 = vadd.f32 0.0, %v1433
        %v1435 = vpop.f32.mrb[0].mxu0
        %v1436 = vadd.f32 0.0, %v1435
        %1437 = vmatprep.mubr.f32.mxu0 0.0
        %1438 = vmatmul.mubr.f32.gmra.mrb[0].mxu0 %v340
        %v1439 = vpop.f32.mrb[0].mxu0
        %v1440 = vadd.f32 0.0, %v1439
        %v1441 = vpop.f32.mrb[0].mxu0
        %v1442 = vadd.f32 0.0, %v1441
        %1443 = vmatprep.mubr.f32.mxu0 0.0
        %1444 = vmatmul.mubr.f32.gmra.mrb[0].mxu0 %v343
        %v1445 = vpop.f32.mrb[0].mxu0
        %v1446 = vadd.f32 0.0, %v1445
        %v1447 = vpop.f32.mrb[0].mxu0
        %v1448 = vadd.f32 0.0, %v1447
        %1449 = vmatprep.mubr.f32.mxu0 0.0
        %1450 = vmatmul.mubr.f32.gmra.mrb[0].mxu0 %v346
        %v1451 = vpop.f32.mrb[0].mxu0
        %v1452 = vadd.f32 0.0, %v1451
        %v1453 = vpop.f32.mrb[0].mxu0
        %v1454 = vadd.f32 0.0, %v1453
        %1455 = vmatprep.mubr.f32.mxu0 0.0
        %1456 = vmatmul.mubr.f32.gmra.mrb[0].mxu0 %v349
        %v1457 = vpop.f32.mrb[0].mxu0
        %v1458 = vadd.f32 0.0, %v1457
        %v1459 = vpop.f32.mrb[0].mxu0
        %v1460 = vadd.f32 0.0, %v1459
        %1461 = vmatprep.mubr.f32.mxu0 0.0
        %1462 = vmatmul.mubr.f32.gmra.mrb[0].mxu0 %v352
        %v1463 = vpop.f32.mrb[0].mxu0
        %v1464 = vadd.f32 0.0, %v1463
        %v1465 = vpop.f32.mrb[0].mxu0
        %v1466 = vadd.f32 0.0, %v1465
        %1467 = vdwg.mxu0
        %1468 = vmatprep.subr.mxu0 %v212
        %1469 = vmatpush1.msra.mxu0 %v211
        %1470 = vmatprep.subr.mxu0 %v244
        %1471 = vmatpush1.msra.mxu0 %v243
        %1472 = vmatprep.subr.mxu0 %v276
        %1473 = vmatpush1.msra.mxu0 %v275
        %1474 = vmatprep.subr.mxu0 %v413
        %1475 = vmatpush1.msra.mxu0 %v410
        %1476 = vmatprep.subr.mxu0 0.0
        %1477 = vmatpush1.msra.mxu0 0.0
        %1478 = vmatprep.subr.mxu0 0.0
        %1479 = vmatpush1.msra.mxu0 0.0
        %1480 = vmatprep.subr.mxu0 0.0
        %1481 = vmatpush1.msra.mxu0 0.0
        %1482 = vmatprep.subr.mxu0 0.0
        %1483 = vmatpush1.msra.mxu0 0.0
        %1484 = vmatprep.subr.mxu0 0.0
        %1485 = vmatpush1.msra.mxu0 0.0
        %1486 = vmatprep.subr.mxu0 0.0
        %1487 = vmatpush1.msra.mxu0 0.0
        %1488 = vmatprep.subr.mxu0 0.0
        %1489 = vmatpush1.msra.mxu0 0.0
        %1490 = vmatprep.subr.mxu0 0.0
        %1491 = vmatpush1.msra.mxu0 0.0
        %1492 = vmatprep.subr.mxu0 0.0
        %1493 = vmatpush1.msra.mxu0 0.0
        %1494 = vmatprep.subr.mxu0 0.0
        %1495 = vmatpush1.msra.mxu0 0.0
        %1496 = vmatprep.subr.mxu0 0.0
        %1497 = vmatpush1.msra.mxu0 0.0
        %1498 = vmatprep.subr.mxu0 0.0
        %1499 = vmatpush1.msra.mxu0 0.0
        %1500 = vmatprep.subr.mxu0 0.0
        %1501 = vmatpush1.msra.mxu0 0.0
        %1502 = vmatprep.subr.mxu0 0.0
        %1503 = vmatpush1.msra.mxu0 0.0
        %1504 = vmatprep.subr.mxu0 0.0
        %1505 = vmatpush1.msra.mxu0 0.0
        %1506 = vmatprep.subr.mxu0 0.0
        %1507 = vmatpush1.msra.mxu0 0.0
        %1508 = vmatprep.subr.mxu0 0.0
        %1509 = vmatpush1.msra.mxu0 0.0
        %1510 = vmatprep.subr.mxu0 0.0
        %1511 = vmatpush1.msra.mxu0 0.0
        %1512 = vmatprep.subr.mxu0 0.0
        %1513 = vmatpush1.msra.mxu0 0.0
        %1514 = vmatprep.subr.mxu0 0.0
        %1515 = vmatpush1.msra.mxu0 0.0
        %1516 = vmatprep.subr.mxu0 0.0
        %1517 = vmatpush1.msra.mxu0 0.0
        %1518 = vmatprep.subr.mxu0 0.0
        %1519 = vmatpush1.msra.mxu0 0.0
        %1520 = vmatprep.subr.mxu0 0.0
        %1521 = vmatpush1.msra.mxu0 0.0
        %1522 = vmatprep.subr.mxu0 0.0
        %1523 = vmatpush1.msra.mxu0 0.0
        %1524 = vmatprep.subr.mxu0 0.0
        %1525 = vmatpush1.msra.mxu0 0.0
        %1526 = vmatprep.subr.mxu0 0.0
        %1527 = vmatpush1.msra.mxu0 0.0
        %1528 = vmatprep.subr.mxu0 0.0
        %1529 = vmatpush1.msra.mxu0 0.0
        %1530 = vmatprep.subr.mxu0 0.0
        %1531 = vmatpush1.msra.mxu0 0.0
        %1532 = vmatprep.mubr.f32.mxu0 0.0
        %1533 = vmatmul.mubr.f32.gmra.mrb[0].mxu0 %v331
        %v1534 = vpop.f32.mrb[0].mxu0
        %v1535 = vadd.f32 0.0, %v1534
        %v1536 = vpop.f32.mrb[0].mxu0
        %v1537 = vadd.f32 0.0, %v1536
        %1538 = vmatprep.mubr.f32.mxu0 0.0
        %1539 = vmatmul.mubr.f32.gmra.mrb[0].mxu0 %v334
        %v1540 = vpop.f32.mrb[0].mxu0
        %v1541 = vadd.f32 0.0, %v1540
        %v1542 = vpop.f32.mrb[0].mxu0
        %v1543 = vadd.f32 0.0, %v1542
        %1544 = vmatprep.mubr.f32.mxu0 0.0
        %1545 = vmatmul.mubr.f32.gmra.mrb[0].mxu0 %v337
        %v1546 = vpop.f32.mrb[0].mxu0
        %v1547 = vadd.f32 0.0, %v1546
        %v1548 = vpop.f32.mrb[0].mxu0
        %v1549 = vadd.f32 0.0, %v1548
        %1550 = vmatprep.mubr.f32.mxu0 0.0
        %1551 = vmatmul.mubr.f32.gmra.mrb[0].mxu0 %v340
        %v1552 = vpop.f32.mrb[0].mxu0
        %v1553 = vadd.f32 0.0, %v1552
        %v1554 = vpop.f32.mrb[0].mxu0
        %v1555 = vadd.f32 0.0, %v1554
        %1556 = vmatprep.mubr.f32.mxu0 0.0
        %1557 = vmatmul.mubr.f32.gmra.mrb[0].mxu0 %v343
        %v1558 = vpop.f32.mrb[0].mxu0
        %v1559 = vadd.f32 0.0, %v1558
        %v1560 = vpop.f32.mrb[0].mxu0
        %v1561 = vadd.f32 0.0, %v1560
        %1562 = vmatprep.mubr.f32.mxu0 0.0
        %1563 = vmatmul.mubr.f32.gmra.mrb[0].mxu0 %v346
        %v1564 = vpop.f32.mrb[0].mxu0
        %v1565 = vadd.f32 0.0, %v1564
        %v1566 = vpop.f32.mrb[0].mxu0
        %v1567 = vadd.f32 0.0, %v1566
        %1568 = vmatprep.mubr.f32.mxu0 0.0
        %1569 = vmatmul.mubr.f32.gmra.mrb[0].mxu0 %v349
        %v1570 = vpop.f32.mrb[0].mxu0
        %v1571 = vadd.f32 0.0, %v1570
        %v1572 = vpop.f32.mrb[0].mxu0
        %v1573 = vadd.f32 0.0, %v1572
        %1574 = vmatprep.mubr.f32.mxu0 0.0
        %1575 = vmatmul.mubr.f32.gmra.mrb[0].mxu0 %v352
        %v1576 = vpop.f32.mrb[0].mxu0
        %v1577 = vadd.f32 0.0, %v1576
        %v1578 = vpop.f32.mrb[0].mxu0
        %v1579 = vadd.f32 0.0, %v1578
        %1580 = vdwg.mxu0
        %1581 = vmatprep.subr.mxu0 %v214
        %1582 = vmatpush1.msra.mxu0 %v213
        %1583 = vmatprep.subr.mxu0 %v246
        %1584 = vmatpush1.msra.mxu0 %v245
        %1585 = vmatprep.subr.mxu0 %v278
        %1586 = vmatpush1.msra.mxu0 %v277
        %1587 = vmatprep.subr.mxu0 %v419
        %1588 = vmatpush1.msra.mxu0 %v416
        %1589 = vmatprep.subr.mxu0 0.0
        %1590 = vmatpush1.msra.mxu0 0.0
        %1591 = vmatprep.subr.mxu0 0.0
        %1592 = vmatpush1.msra.mxu0 0.0
        %1593 = vmatprep.subr.mxu0 0.0
        %1594 = vmatpush1.msra.mxu0 0.0
        %1595 = vmatprep.subr.mxu0 0.0
        %1596 = vmatpush1.msra.mxu0 0.0
        %1597 = vmatprep.subr.mxu0 0.0
        %1598 = vmatpush1.msra.mxu0 0.0
        %1599 = vmatprep.subr.mxu0 0.0
        %1600 = vmatpush1.msra.mxu0 0.0
        %1601 = vmatprep.subr.mxu0 0.0
        %1602 = vmatpush1.msra.mxu0 0.0
        %1603 = vmatprep.subr.mxu0 0.0
        %1604 = vmatpush1.msra.mxu0 0.0
        %1605 = vmatprep.subr.mxu0 0.0
        %1606 = vmatpush1.msra.mxu0 0.0
        %1607 = vmatprep.subr.mxu0 0.0
        %1608 = vmatpush1.msra.mxu0 0.0
        %1609 = vmatprep.subr.mxu0 0.0
        %1610 = vmatpush1.msra.mxu0 0.0
        %1611 = vmatprep.subr.mxu0 0.0
        %1612 = vmatpush1.msra.mxu0 0.0
        %1613 = vmatprep.subr.mxu0 0.0
        %1614 = vmatpush1.msra.mxu0 0.0
        %1615 = vmatprep.subr.mxu0 0.0
        %1616 = vmatpush1.msra.mxu0 0.0
        %1617 = vmatprep.subr.mxu0 0.0
        %1618 = vmatpush1.msra.mxu0 0.0
        %1619 = vmatprep.subr.mxu0 0.0
        %1620 = vmatpush1.msra.mxu0 0.0
        %1621 = vmatprep.subr.mxu0 0.0
        %1622 = vmatpush1.msra.mxu0 0.0
        %1623 = vmatprep.subr.mxu0 0.0
        %1624 = vmatpush1.msra.mxu0 0.0
        %1625 = vmatprep.subr.mxu0 0.0
        %1626 = vmatpush1.msra.mxu0 0.0
        %1627 = vmatprep.subr.mxu0 0.0
        %1628 = vmatpush1.msra.mxu0 0.0
        %1629 = vmatprep.subr.mxu0 0.0
        %1630 = vmatpush1.msra.mxu0 0.0
        %1631 = vmatprep.subr.mxu0 0.0
        %1632 = vmatpush1.msra.mxu0 0.0
        %1633 = vmatprep.subr.mxu0 0.0
        %1634 = vmatpush1.msra.mxu0 0.0
        %1635 = vmatprep.subr.mxu0 0.0
        %1636 = vmatpush1.msra.mxu0 0.0
        %1637 = vmatprep.subr.mxu0 0.0
        %1638 = vmatpush1.msra.mxu0 0.0
        %1639 = vmatprep.subr.mxu0 0.0
        %1640 = vmatpush1.msra.mxu0 0.0
        %1641 = vmatprep.subr.mxu0 0.0
        %1642 = vmatpush1.msra.mxu0 0.0
        %1643 = vmatprep.subr.mxu0 0.0
        %1644 = vmatpush1.msra.mxu0 0.0
        %1645 = vmatprep.mubr.f32.mxu0 0.0
        %1646 = vmatmul.mubr.f32.gmra.mrb[0].mxu0 %v331
        %v1647 = vpop.f32.mrb[0].mxu0
        %v1648 = vadd.f32 0.0, %v1647
        %v1649 = vpop.f32.mrb[0].mxu0
        %v1650 = vadd.f32 0.0, %v1649
        %1651 = vmatprep.mubr.f32.mxu0 0.0
        %1652 = vmatmul.mubr.f32.gmra.mrb[0].mxu0 %v334
        %v1653 = vpop.f32.mrb[0].mxu0
        %v1654 = vadd.f32 0.0, %v1653
        %v1655 = vpop.f32.mrb[0].mxu0
        %v1656 = vadd.f32 0.0, %v1655
        %1657 = vmatprep.mubr.f32.mxu0 0.0
        %1658 = vmatmul.mubr.f32.gmra.mrb[0].mxu0 %v337
        %v1659 = vpop.f32.mrb[0].mxu0
        %v1660 = vadd.f32 0.0, %v1659
        %v1661 = vpop.f32.mrb[0].mxu0
        %v1662 = vadd.f32 0.0, %v1661
        %1663 = vmatprep.mubr.f32.mxu0 0.0
        %1664 = vmatmul.mubr.f32.gmra.mrb[0].mxu0 %v340
        %v1665 = vpop.f32.mrb[0].mxu0
        %v1666 = vadd.f32 0.0, %v1665
        %v1667 = vpop.f32.mrb[0].mxu0
        %v1668 = vadd.f32 0.0, %v1667
        %1669 = vmatprep.mubr.f32.mxu0 0.0
        %1670 = vmatmul.mubr.f32.gmra.mrb[0].mxu0 %v343
        %v1671 = vpop.f32.mrb[0].mxu0
        %v1672 = vadd.f32 0.0, %v1671
        %v1673 = vpop.f32.mrb[0].mxu0
        %v1674 = vadd.f32 0.0, %v1673
        %1675 = vmatprep.mubr.f32.mxu0 0.0
        %1676 = vmatmul.mubr.f32.gmra.mrb[0].mxu0 %v346
        %v1677 = vpop.f32.mrb[0].mxu0
        %v1678 = vadd.f32 0.0, %v1677
        %v1679 = vpop.f32.mrb[0].mxu0
        %v1680 = vadd.f32 0.0, %v1679
        %1681 = vmatprep.mubr.f32.mxu0 0.0
        %1682 = vmatmul.mubr.f32.gmra.mrb[0].mxu0 %v349
        %v1683 = vpop.f32.mrb[0].mxu0
        %v1684 = vadd.f32 0.0, %v1683
        %v1685 = vpop.f32.mrb[0].mxu0
        %v1686 = vadd.f32 0.0, %v1685
        %1687 = vmatprep.mubr.f32.mxu0 0.0
        %1688 = vmatmul.mubr.f32.gmra.mrb[0].mxu0 %v352
        %v1689 = vpop.f32.mrb[0].mxu0
        %v1690 = vadd.f32 0.0, %v1689
        %v1691 = vpop.f32.mrb[0].mxu0
        %v1692 = vadd.f32 0.0, %v1691
        %1693 = vdwg.mxu0
        %1694 = vmatprep.subr.mxu0 %v216
        %1695 = vmatpush1.msra.mxu0 %v215
        %1696 = vmatprep.subr.mxu0 %v248
        %1697 = vmatpush1.msra.mxu0 %v247
        %1698 = vmatprep.subr.mxu0 %v280
        %1699 = vmatpush1.msra.mxu0 %v279
        %1700 = vmatprep.subr.mxu0 %v425
        %1701 = vmatpush1.msra.mxu0 %v422
        %1702 = vmatprep.subr.mxu0 0.0
        %1703 = vmatpush1.msra.mxu0 0.0
        %1704 = vmatprep.subr.mxu0 0.0
        %1705 = vmatpush1.msra.mxu0 0.0
        %1706 = vmatprep.subr.mxu0 0.0
        %1707 = vmatpush1.msra.mxu0 0.0
        %1708 = vmatprep.subr.mxu0 0.0
        %1709 = vmatpush1.msra.mxu0 0.0
        %1710 = vmatprep.subr.mxu0 0.0
        %1711 = vmatpush1.msra.mxu0 0.0
        %1712 = vmatprep.subr.mxu0 0.0
        %1713 = vmatpush1.msra.mxu0 0.0
        %1714 = vmatprep.subr.mxu0 0.0
        %1715 = vmatpush1.msra.mxu0 0.0
        %1716 = vmatprep.subr.mxu0 0.0
        %1717 = vmatpush1.msra.mxu0 0.0
        %1718 = vmatprep.subr.mxu0 0.0
        %1719 = vmatpush1.msra.mxu0 0.0
        %1720 = vmatprep.subr.mxu0 0.0
        %1721 = vmatpush1.msra.mxu0 0.0
        %1722 = vmatprep.subr.mxu0 0.0
        %1723 = vmatpush1.msra.mxu0 0.0
        %1724 = vmatprep.subr.mxu0 0.0
        %1725 = vmatpush1.msra.mxu0 0.0
        %1726 = vmatprep.subr.mxu0 0.0
        %1727 = vmatpush1.msra.mxu0 0.0
        %1728 = vmatprep.subr.mxu0 0.0
        %1729 = vmatpush1.msra.mxu0 0.0
        %1730 = vmatprep.subr.mxu0 0.0
        %1731 = vmatpush1.msra.mxu0 0.0
        %1732 = vmatprep.subr.mxu0 0.0
        %1733 = vmatpush1.msra.mxu0 0.0
        %1734 = vmatprep.subr.mxu0 0.0
        %1735 = vmatpush1.msra.mxu0 0.0
        %1736 = vmatprep.subr.mxu0 0.0
        %1737 = vmatpush1.msra.mxu0 0.0
        %1738 = vmatprep.subr.mxu0 0.0
        %1739 = vmatpush1.msra.mxu0 0.0
        %1740 = vmatprep.subr.mxu0 0.0
        %1741 = vmatpush1.msra.mxu0 0.0
        %1742 = vmatprep.subr.mxu0 0.0
        %1743 = vmatpush1.msra.mxu0 0.0
        %1744 = vmatprep.subr.mxu0 0.0
        %1745 = vmatpush1.msra.mxu0 0.0
        %1746 = vmatprep.subr.mxu0 0.0
        %1747 = vmatpush1.msra.mxu0 0.0
        %1748 = vmatprep.subr.mxu0 0.0
        %1749 = vmatpush1.msra.mxu0 0.0
        %1750 = vmatprep.subr.mxu0 0.0
        %1751 = vmatpush1.msra.mxu0 0.0
        %1752 = vmatprep.subr.mxu0 0.0
        %1753 = vmatpush1.msra.mxu0 0.0
        %1754 = vmatprep.subr.mxu0 0.0
        %1755 = vmatpush1.msra.mxu0 0.0
        %1756 = vmatprep.subr.mxu0 0.0
        %1757 = vmatpush1.msra.mxu0 0.0
        %1758 = vmatprep.mubr.f32.mxu0 0.0
        %1759 = vmatmul.mubr.f32.gmra.mrb[0].mxu0 %v331
        %v1760 = vpop.f32.mrb[0].mxu0
        %v1761 = vadd.f32 0.0, %v1760
        %v1762 = vpop.f32.mrb[0].mxu0
        %v1763 = vadd.f32 0.0, %v1762
        %1764 = vmatprep.mubr.f32.mxu0 0.0
        %1765 = vmatmul.mubr.f32.gmra.mrb[0].mxu0 %v334
        %v1766 = vpop.f32.mrb[0].mxu0
        %v1767 = vadd.f32 0.0, %v1766
        %v1768 = vpop.f32.mrb[0].mxu0
        %v1769 = vadd.f32 0.0, %v1768
        %1770 = vmatprep.mubr.f32.mxu0 0.0
        %1771 = vmatmul.mubr.f32.gmra.mrb[0].mxu0 %v337
        %v1772 = vpop.f32.mrb[0].mxu0
        %v1773 = vadd.f32 0.0, %v1772
        %v1774 = vpop.f32.mrb[0].mxu0
        %v1775 = vadd.f32 0.0, %v1774
        %1776 = vmatprep.mubr.f32.mxu0 0.0
        %1777 = vmatmul.mubr.f32.gmra.mrb[0].mxu0 %v340
        %v1778 = vpop.f32.mrb[0].mxu0
        %v1779 = vadd.f32 0.0, %v1778
        %v1780 = vpop.f32.mrb[0].mxu0
        %v1781 = vadd.f32 0.0, %v1780
        %1782 = vmatprep.mubr.f32.mxu0 0.0
        %1783 = vmatmul.mubr.f32.gmra.mrb[0].mxu0 %v343
        %v1784 = vpop.f32.mrb[0].mxu0
        %v1785 = vadd.f32 0.0, %v1784
        %v1786 = vpop.f32.mrb[0].mxu0
        %v1787 = vadd.f32 0.0, %v1786
        %1788 = vmatprep.mubr.f32.mxu0 0.0
        %1789 = vmatmul.mubr.f32.gmra.mrb[0].mxu0 %v346
        %v1790 = vpop.f32.mrb[0].mxu0
        %v1791 = vadd.f32 0.0, %v1790
        %v1792 = vpop.f32.mrb[0].mxu0
        %v1793 = vadd.f32 0.0, %v1792
        %1794 = vmatprep.mubr.f32.mxu0 0.0
        %1795 = vmatmul.mubr.f32.gmra.mrb[0].mxu0 %v349
        %v1796 = vpop.f32.mrb[0].mxu0
        %v1797 = vadd.f32 0.0, %v1796
        %v1798 = vpop.f32.mrb[0].mxu0
        %v1799 = vadd.f32 0.0, %v1798
        %1800 = vmatprep.mubr.f32.mxu0 0.0
        %1801 = vmatmul.mubr.f32.gmra.mrb[0].mxu0 %v352
        %v1802 = vpop.f32.mrb[0].mxu0
        %v1803 = vadd.f32 0.0, %v1802
        %v1804 = vpop.f32.mrb[0].mxu0
        %v1805 = vadd.f32 0.0, %v1804
        %1806 = vdwg.mxu0
        %1807 = vmatprep.subr.mxu0 %v218
        %1808 = vmatpush1.msra.mxu0 %v217
        %1809 = vmatprep.subr.mxu0 %v250
        %1810 = vmatpush1.msra.mxu0 %v249
        %1811 = vmatprep.subr.mxu0 %v282
        %1812 = vmatpush1.msra.mxu0 %v281
        %1813 = vmatprep.subr.mxu0 %v431
        %1814 = vmatpush1.msra.mxu0 %v428
        %1815 = vmatprep.subr.mxu0 0.0
        %1816 = vmatpush1.msra.mxu0 0.0
        %1817 = vmatprep.subr.mxu0 0.0
        %1818 = vmatpush1.msra.mxu0 0.0
        %1819 = vmatprep.subr.mxu0 0.0
        %1820 = vmatpush1.msra.mxu0 0.0
        %1821 = vmatprep.subr.mxu0 0.0
        %1822 = vmatpush1.msra.mxu0 0.0
        %1823 = vmatprep.subr.mxu0 0.0
        %1824 = vmatpush1.msra.mxu0 0.0
        %1825 = vmatprep.subr.mxu0 0.0
        %1826 = vmatpush1.msra.mxu0 0.0
        %1827 = vmatprep.subr.mxu0 0.0
        %1828 = vmatpush1.msra.mxu0 0.0
        %1829 = vmatprep.subr.mxu0 0.0
        %1830 = vmatpush1.msra.mxu0 0.0
        %1831 = vmatprep.subr.mxu0 0.0
        %1832 = vmatpush1.msra.mxu0 0.0
        %1833 = vmatprep.subr.mxu0 0.0
        %1834 = vmatpush1.msra.mxu0 0.0
        %1835 = vmatprep.subr.mxu0 0.0
        %1836 = vmatpush1.msra.mxu0 0.0
        %1837 = vmatprep.subr.mxu0 0.0
        %1838 = vmatpush1.msra.mxu0 0.0
        %1839 = vmatprep.subr.mxu0 0.0
        %1840 = vmatpush1.msra.mxu0 0.0
        %1841 = vmatprep.subr.mxu0 0.0
        %1842 = vmatpush1.msra.mxu0 0.0
        %1843 = vmatprep.subr.mxu0 0.0
        %1844 = vmatpush1.msra.mxu0 0.0
        %1845 = vmatprep.subr.mxu0 0.0
        %1846 = vmatpush1.msra.mxu0 0.0
        %1847 = vmatprep.subr.mxu0 0.0
        %1848 = vmatpush1.msra.mxu0 0.0
        %1849 = vmatprep.subr.mxu0 0.0
        %1850 = vmatpush1.msra.mxu0 0.0
        %1851 = vmatprep.subr.mxu0 0.0
        %1852 = vmatpush1.msra.mxu0 0.0
        %1853 = vmatprep.subr.mxu0 0.0
        %1854 = vmatpush1.msra.mxu0 0.0
        %1855 = vmatprep.subr.mxu0 0.0
        %1856 = vmatpush1.msra.mxu0 0.0
        %1857 = vmatprep.subr.mxu0 0.0
        %1858 = vmatpush1.msra.mxu0 0.0
        %1859 = vmatprep.subr.mxu0 0.0
        %1860 = vmatpush1.msra.mxu0 0.0
        %1861 = vmatprep.subr.mxu0 0.0
        %1862 = vmatpush1.msra.mxu0 0.0
        %1863 = vmatprep.subr.mxu0 0.0
        %1864 = vmatpush1.msra.mxu0 0.0
        %1865 = vmatprep.subr.mxu0 0.0
        %1866 = vmatpush1.msra.mxu0 0.0
        %1867 = vmatprep.subr.mxu0 0.0
        %1868 = vmatpush1.msra.mxu0 0.0
        %1869 = vmatprep.subr.mxu0 0.0
        %1870 = vmatpush1.msra.mxu0 0.0
        %1871 = vmatprep.mubr.f32.mxu0 0.0
        %1872 = vmatmul.mubr.f32.gmra.mrb[0].mxu0 %v331
        %v1873 = vpop.f32.mrb[0].mxu0
        %v1874 = vadd.f32 0.0, %v1873
        %v1875 = vpop.f32.mrb[0].mxu0
        %v1876 = vadd.f32 0.0, %v1875
        %1877 = vmatprep.mubr.f32.mxu0 0.0
        %1878 = vmatmul.mubr.f32.gmra.mrb[0].mxu0 %v334
        %v1879 = vpop.f32.mrb[0].mxu0
        %v1880 = vadd.f32 0.0, %v1879
        %v1881 = vpop.f32.mrb[0].mxu0
        %v1882 = vadd.f32 0.0, %v1881
        %1883 = vmatprep.mubr.f32.mxu0 0.0
        %1884 = vmatmul.mubr.f32.gmra.mrb[0].mxu0 %v337
        %v1885 = vpop.f32.mrb[0].mxu0
        %v1886 = vadd.f32 0.0, %v1885
        %v1887 = vpop.f32.mrb[0].mxu0
        %v1888 = vadd.f32 0.0, %v1887
        %1889 = vmatprep.mubr.f32.mxu0 0.0
        %1890 = vmatmul.mubr.f32.gmra.mrb[0].mxu0 %v340
        %v1891 = vpop.f32.mrb[0].mxu0
        %v1892 = vadd.f32 0.0, %v1891
        %v1893 = vpop.f32.mrb[0].mxu0
        %v1894 = vadd.f32 0.0, %v1893
        %1895 = vmatprep.mubr.f32.mxu0 0.0
        %1896 = vmatmul.mubr.f32.gmra.mrb[0].mxu0 %v343
        %v1897 = vpop.f32.mrb[0].mxu0
        %v1898 = vadd.f32 0.0, %v1897
        %v1899 = vpop.f32.mrb[0].mxu0
        %v1900 = vadd.f32 0.0, %v1899
        %1901 = vmatprep.mubr.f32.mxu0 0.0
        %1902 = vmatmul.mubr.f32.gmra.mrb[0].mxu0 %v346
        %v1903 = vpop.f32.mrb[0].mxu0
        %v1904 = vadd.f32 0.0, %v1903
        %v1905 = vpop.f32.mrb[0].mxu0
        %v1906 = vadd.f32 0.0, %v1905
        %1907 = vmatprep.mubr.f32.mxu0 0.0
        %1908 = vmatmul.mubr.f32.gmra.mrb[0].mxu0 %v349
        %v1909 = vpop.f32.mrb[0].mxu0
        %v1910 = vadd.f32 0.0, %v1909
        %v1911 = vpop.f32.mrb[0].mxu0
        %v1912 = vadd.f32 0.0, %v1911
        %1913 = vmatprep.mubr.f32.mxu0 0.0
        %1914 = vmatmul.mubr.f32.gmra.mrb[0].mxu0 %v352
        %v1915 = vpop.f32.mrb[0].mxu0
        %v1916 = vadd.f32 0.0, %v1915
        %v1917 = vpop.f32.mrb[0].mxu0
        %v1918 = vadd.f32 0.0, %v1917
        %1919 = vdwg.mxu0
        %1920 = vmatprep.subr.mxu0 %v220
        %1921 = vmatpush1.msra.mxu0 %v219
        %1922 = vmatprep.subr.mxu0 %v252
        %1923 = vmatpush1.msra.mxu0 %v251
        %1924 = vmatprep.subr.mxu0 %v284
        %1925 = vmatpush1.msra.mxu0 %v283
        %1926 = vmatprep.subr.mxu0 %v437
        %1927 = vmatpush1.msra.mxu0 %v434
        %1928 = vmatprep.subr.mxu0 0.0
        %1929 = vmatpush1.msra.mxu0 0.0
        %1930 = vmatprep.subr.mxu0 0.0
        %1931 = vmatpush1.msra.mxu0 0.0
        %1932 = vmatprep.subr.mxu0 0.0
        %1933 = vmatpush1.msra.mxu0 0.0
        %1934 = vmatprep.subr.mxu0 0.0
        %1935 = vmatpush1.msra.mxu0 0.0
        %1936 = vmatprep.subr.mxu0 0.0
        %1937 = vmatpush1.msra.mxu0 0.0
        %1938 = vmatprep.subr.mxu0 0.0
        %1939 = vmatpush1.msra.mxu0 0.0
        %1940 = vmatprep.subr.mxu0 0.0
        %1941 = vmatpush1.msra.mxu0 0.0
        %1942 = vmatprep.subr.mxu0 0.0
        %1943 = vmatpush1.msra.mxu0 0.0
        %1944 = vmatprep.subr.mxu0 0.0
        %1945 = vmatpush1.msra.mxu0 0.0
        %1946 = vmatprep.subr.mxu0 0.0
        %1947 = vmatpush1.msra.mxu0 0.0
        %1948 = vmatprep.subr.mxu0 0.0
        %1949 = vmatpush1.msra.mxu0 0.0
        %1950 = vmatprep.subr.mxu0 0.0
        %1951 = vmatpush1.msra.mxu0 0.0
        %1952 = vmatprep.subr.mxu0 0.0
        %1953 = vmatpush1.msra.mxu0 0.0
        %1954 = vmatprep.subr.mxu0 0.0
        %1955 = vmatpush1.msra.mxu0 0.0
        %1956 = vmatprep.subr.mxu0 0.0
        %1957 = vmatpush1.msra.mxu0 0.0
        %1958 = vmatprep.subr.mxu0 0.0
        %1959 = vmatpush1.msra.mxu0 0.0
        %1960 = vmatprep.subr.mxu0 0.0
        %1961 = vmatpush1.msra.mxu0 0.0
        %1962 = vmatprep.subr.mxu0 0.0
        %1963 = vmatpush1.msra.mxu0 0.0
        %1964 = vmatprep.subr.mxu0 0.0
        %1965 = vmatpush1.msra.mxu0 0.0
        %1966 = vmatprep.subr.mxu0 0.0
        %1967 = vmatpush1.msra.mxu0 0.0
        %1968 = vmatprep.subr.mxu0 0.0
        %1969 = vmatpush1.msra.mxu0 0.0
        %1970 = vmatprep.subr.mxu0 0.0
        %1971 = vmatpush1.msra.mxu0 0.0
        %1972 = vmatprep.subr.mxu0 0.0
        %1973 = vmatpush1.msra.mxu0 0.0
        %1974 = vmatprep.subr.mxu0 0.0
        %1975 = vmatpush1.msra.mxu0 0.0
        %1976 = vmatprep.subr.mxu0 0.0
        %1977 = vmatpush1.msra.mxu0 0.0
        %1978 = vmatprep.subr.mxu0 0.0
        %1979 = vmatpush1.msra.mxu0 0.0
        %1980 = vmatprep.subr.mxu0 0.0
        %1981 = vmatpush1.msra.mxu0 0.0
        %1982 = vmatprep.subr.mxu0 0.0
        %1983 = vmatpush1.msra.mxu0 0.0
        %1984 = vmatprep.mubr.f32.mxu0 0.0
        %1985 = vmatmul.mubr.f32.gmra.mrb[0].mxu0 %v331
        %v1986 = vpop.f32.mrb[0].mxu0
        %v1987 = vadd.f32 0.0, %v1986
        %v1988 = vpop.f32.mrb[0].mxu0
        %v1989 = vadd.f32 0.0, %v1988
        %1990 = vmatprep.mubr.f32.mxu0 0.0
        %1991 = vmatmul.mubr.f32.gmra.mrb[0].mxu0 %v334
        %v1992 = vpop.f32.mrb[0].mxu0
        %v1993 = vadd.f32 0.0, %v1992
        %v1994 = vpop.f32.mrb[0].mxu0
        %v1995 = vadd.f32 0.0, %v1994
        %1996 = vmatprep.mubr.f32.mxu0 0.0
        %1997 = vmatmul.mubr.f32.gmra.mrb[0].mxu0 %v337
        %v1998 = vpop.f32.mrb[0].mxu0
        %v1999 = vadd.f32 0.0, %v1998
        %v2000 = vpop.f32.mrb[0].mxu0
        %v2001 = vadd.f32 0.0, %v2000
        %2002 = vmatprep.mubr.f32.mxu0 0.0
        %2003 = vmatmul.mubr.f32.gmra.mrb[0].mxu0 %v340
        %v2004 = vpop.f32.mrb[0].mxu0
        %v2005 = vadd.f32 0.0, %v2004
        %v2006 = vpop.f32.mrb[0].mxu0
        %v2007 = vadd.f32 0.0, %v2006
        %2008 = vmatprep.mubr.f32.mxu0 0.0
        %2009 = vmatmul.mubr.f32.gmra.mrb[0].mxu0 %v343
        %v2010 = vpop.f32.mrb[0].mxu0
        %v2011 = vadd.f32 0.0, %v2010
        %v2012 = vpop.f32.mrb[0].mxu0
        %v2013 = vadd.f32 0.0, %v2012
        %2014 = vmatprep.mubr.f32.mxu0 0.0
        %2015 = vmatmul.mubr.f32.gmra.mrb[0].mxu0 %v346
        %v2016 = vpop.f32.mrb[0].mxu0
        %v2017 = vadd.f32 0.0, %v2016
        %v2018 = vpop.f32.mrb[0].mxu0
        %v2019 = vadd.f32 0.0, %v2018
        %2020 = vmatprep.mubr.f32.mxu0 0.0
        %2021 = vmatmul.mubr.f32.gmra.mrb[0].mxu0 %v349
        %v2022 = vpop.f32.mrb[0].mxu0
        %v2023 = vadd.f32 0.0, %v2022
        %v2024 = vpop.f32.mrb[0].mxu0
        %v2025 = vadd.f32 0.0, %v2024
        %2026 = vmatprep.mubr.f32.mxu0 0.0
        %2027 = vmatmul.mubr.f32.gmra.mrb[0].mxu0 %v352
        %v2028 = vpop.f32.mrb[0].mxu0
        %v2029 = vadd.f32 0.0, %v2028
        %v2030 = vpop.f32.mrb[0].mxu0
        %v2031 = vadd.f32 0.0, %v2030
        %2032 = vdwg.mxu0
        %2033 = vmatprep.subr.mxu0 %v222
        %2034 = vmatpush1.msra.mxu0 %v221
        %2035 = vmatprep.subr.mxu0 %v254
        %2036 = vmatpush1.msra.mxu0 %v253
        %2037 = vmatprep.subr.mxu0 %v286
        %2038 = vmatpush1.msra.mxu0 %v285
        %2039 = vmatprep.subr.mxu0 %v443
        %2040 = vmatpush1.msra.mxu0 %v440
        %2041 = vmatprep.subr.mxu0 0.0
        %2042 = vmatpush1.msra.mxu0 0.0
        %2043 = vmatprep.subr.mxu0 0.0
        %2044 = vmatpush1.msra.mxu0 0.0
        %2045 = vmatprep.subr.mxu0 0.0
        %2046 = vmatpush1.msra.mxu0 0.0
        %2047 = vmatprep.subr.mxu0 0.0
        %2048 = vmatpush1.msra.mxu0 0.0
        %2049 = vmatprep.subr.mxu0 0.0
        %2050 = vmatpush1.msra.mxu0 0.0
        %2051 = vmatprep.subr.mxu0 0.0
        %2052 = vmatpush1.msra.mxu0 0.0
        %2053 = vmatprep.subr.mxu0 0.0
        %2054 = vmatpush1.msra.mxu0 0.0
        %2055 = vmatprep.subr.mxu0 0.0
        %2056 = vmatpush1.msra.mxu0 0.0
        %2057 = vmatprep.subr.mxu0 0.0
        %2058 = vmatpush1.msra.mxu0 0.0
        %2059 = vmatprep.subr.mxu0 0.0
        %2060 = vmatpush1.msra.mxu0 0.0
        %2061 = vmatprep.subr.mxu0 0.0
        %2062 = vmatpush1.msra.mxu0 0.0
        %2063 = vmatprep.subr.mxu0 0.0
        %2064 = vmatpush1.msra.mxu0 0.0
        %2065 = vmatprep.subr.mxu0 0.0
        %2066 = vmatpush1.msra.mxu0 0.0
        %2067 = vmatprep.subr.mxu0 0.0
        %2068 = vmatpush1.msra.mxu0 0.0
        %2069 = vmatprep.subr.mxu0 0.0
        %2070 = vmatpush1.msra.mxu0 0.0
        %2071 = vmatprep.subr.mxu0 0.0
        %2072 = vmatpush1.msra.mxu0 0.0
        %2073 = vmatprep.subr.mxu0 0.0
        %2074 = vmatpush1.msra.mxu0 0.0
        %2075 = vmatprep.subr.mxu0 0.0
        %2076 = vmatpush1.msra.mxu0 0.0
        %2077 = vmatprep.subr.mxu0 0.0
        %2078 = vmatpush1.msra.mxu0 0.0
        %2079 = vmatprep.subr.mxu0 0.0
        %2080 = vmatpush1.msra.mxu0 0.0
        %2081 = vmatprep.subr.mxu0 0.0
        %2082 = vmatpush1.msra.mxu0 0.0
        %2083 = vmatprep.subr.mxu0 0.0
        %2084 = vmatpush1.msra.mxu0 0.0
        %2085 = vmatprep.subr.mxu0 0.0
        %2086 = vmatpush1.msra.mxu0 0.0
        %2087 = vmatprep.subr.mxu0 0.0
        %2088 = vmatpush1.msra.mxu0 0.0
        %2089 = vmatprep.subr.mxu0 0.0
        %2090 = vmatpush1.msra.mxu0 0.0
        %2091 = vmatprep.subr.mxu0 0.0
        %2092 = vmatpush1.msra.mxu0 0.0
        %2093 = vmatprep.subr.mxu0 0.0
        %2094 = vmatpush1.msra.mxu0 0.0
        %2095 = vmatprep.subr.mxu0 0.0
        %2096 = vmatpush1.msra.mxu0 0.0
        %2097 = vmatprep.mubr.f32.mxu0 0.0
        %2098 = vmatmul.mubr.f32.gmra.mrb[0].mxu0 %v331
        %v2099 = vpop.f32.mrb[0].mxu0
        %v2100 = vadd.f32 0.0, %v2099
        %v2101 = vpop.f32.mrb[0].mxu0
        %v2102 = vadd.f32 0.0, %v2101
        %2103 = vmatprep.mubr.f32.mxu0 0.0
        %2104 = vmatmul.mubr.f32.gmra.mrb[0].mxu0 %v334
        %v2105 = vpop.f32.mrb[0].mxu0
        %v2106 = vadd.f32 0.0, %v2105
        %v2107 = vpop.f32.mrb[0].mxu0
        %v2108 = vadd.f32 0.0, %v2107
        %2109 = vmatprep.mubr.f32.mxu0 0.0
        %2110 = vmatmul.mubr.f32.gmra.mrb[0].mxu0 %v337
        %v2111 = vpop.f32.mrb[0].mxu0
        %v2112 = vadd.f32 0.0, %v2111
        %v2113 = vpop.f32.mrb[0].mxu0
        %v2114 = vadd.f32 0.0, %v2113
        %2115 = vmatprep.mubr.f32.mxu0 0.0
        %2116 = vmatmul.mubr.f32.gmra.mrb[0].mxu0 %v340
        %v2117 = vpop.f32.mrb[0].mxu0
        %v2118 = vadd.f32 0.0, %v2117
        %v2119 = vpop.f32.mrb[0].mxu0
        %v2120 = vadd.f32 0.0, %v2119
        %2121 = vmatprep.mubr.f32.mxu0 0.0
        %2122 = vmatmul.mubr.f32.gmra.mrb[0].mxu0 %v343
        %v2123 = vpop.f32.mrb[0].mxu0
        %v2124 = vadd.f32 0.0, %v2123
        %v2125 = vpop.f32.mrb[0].mxu0
        %v2126 = vadd.f32 0.0, %v2125
        %2127 = vmatprep.mubr.f32.mxu0 0.0
        %2128 = vmatmul.mubr.f32.gmra.mrb[0].mxu0 %v346
        %v2129 = vpop.f32.mrb[0].mxu0
        %v2130 = vadd.f32 0.0, %v2129
        %v2131 = vpop.f32.mrb[0].mxu0
        %v2132 = vadd.f32 0.0, %v2131
        %2133 = vmatprep.mubr.f32.mxu0 0.0
        %2134 = vmatmul.mubr.f32.gmra.mrb[0].mxu0 %v349
        %v2135 = vpop.f32.mrb[0].mxu0
        %v2136 = vadd.f32 0.0, %v2135
        %v2137 = vpop.f32.mrb[0].mxu0
        %v2138 = vadd.f32 0.0, %v2137
        %2139 = vmatprep.mubr.f32.mxu0 0.0
        %2140 = vmatmul.mubr.f32.gmra.mrb[0].mxu0 %v352
        %v2141 = vpop.f32.mrb[0].mxu0
        %v2142 = vadd.f32 0.0, %v2141
        %v2143 = vpop.f32.mrb[0].mxu0
        %v2144 = vadd.f32 0.0, %v2143
        %2145 = vdwg.mxu0
        %2146 = vmatprep.subr.mxu0 %v224
        %2147 = vmatpush1.msra.mxu0 %v223
        %2148 = vmatprep.subr.mxu0 %v256
        %2149 = vmatpush1.msra.mxu0 %v255
        %2150 = vmatprep.subr.mxu0 %v288
        %2151 = vmatpush1.msra.mxu0 %v287
        %2152 = vmatprep.subr.mxu0 %v449
        %2153 = vmatpush1.msra.mxu0 %v446
        %2154 = vmatprep.subr.mxu0 0.0
        %2155 = vmatpush1.msra.mxu0 0.0
        %2156 = vmatprep.subr.mxu0 0.0
        %2157 = vmatpush1.msra.mxu0 0.0
        %2158 = vmatprep.subr.mxu0 0.0
        %2159 = vmatpush1.msra.mxu0 0.0
        %2160 = vmatprep.subr.mxu0 0.0
        %2161 = vmatpush1.msra.mxu0 0.0
        %2162 = vmatprep.subr.mxu0 0.0
        %2163 = vmatpush1.msra.mxu0 0.0
        %2164 = vmatprep.subr.mxu0 0.0
        %2165 = vmatpush1.msra.mxu0 0.0
        %2166 = vmatprep.subr.mxu0 0.0
        %2167 = vmatpush1.msra.mxu0 0.0
        %2168 = vmatprep.subr.mxu0 0.0
        %2169 = vmatpush1.msra.mxu0 0.0
        %2170 = vmatprep.subr.mxu0 0.0
        %2171 = vmatpush1.msra.mxu0 0.0
        %2172 = vmatprep.subr.mxu0 0.0
        %2173 = vmatpush1.msra.mxu0 0.0
        %2174 = vmatprep.subr.mxu0 0.0
        %2175 = vmatpush1.msra.mxu0 0.0
        %2176 = vmatprep.subr.mxu0 0.0
        %2177 = vmatpush1.msra.mxu0 0.0
        %2178 = vmatprep.subr.mxu0 0.0
        %2179 = vmatpush1.msra.mxu0 0.0
        %2180 = vmatprep.subr.mxu0 0.0
        %2181 = vmatpush1.msra.mxu0 0.0
        %2182 = vmatprep.subr.mxu0 0.0
        %2183 = vmatpush1.msra.mxu0 0.0
        %2184 = vmatprep.subr.mxu0 0.0
        %2185 = vmatpush1.msra.mxu0 0.0
        %2186 = vmatprep.subr.mxu0 0.0
        %2187 = vmatpush1.msra.mxu0 0.0
        %2188 = vmatprep.subr.mxu0 0.0
        %2189 = vmatpush1.msra.mxu0 0.0
        %2190 = vmatprep.subr.mxu0 0.0
        %2191 = vmatpush1.msra.mxu0 0.0
        %2192 = vmatprep.subr.mxu0 0.0
        %2193 = vmatpush1.msra.mxu0 0.0
        %2194 = vmatprep.subr.mxu0 0.0
        %2195 = vmatpush1.msra.mxu0 0.0
        %2196 = vmatprep.subr.mxu0 0.0
        %2197 = vmatpush1.msra.mxu0 0.0
        %2198 = vmatprep.subr.mxu0 0.0
        %2199 = vmatpush1.msra.mxu0 0.0
        %2200 = vmatprep.subr.mxu0 0.0
        %2201 = vmatpush1.msra.mxu0 0.0
        %2202 = vmatprep.subr.mxu0 0.0
        %2203 = vmatpush1.msra.mxu0 0.0
        %2204 = vmatprep.subr.mxu0 0.0
        %2205 = vmatpush1.msra.mxu0 0.0
        %2206 = vmatprep.subr.mxu0 0.0
        %2207 = vmatpush1.msra.mxu0 0.0
        %2208 = vmatprep.subr.mxu0 0.0
        %2209 = vmatpush1.msra.mxu0 0.0
        %2210 = vmatprep.mubr.f32.mxu0 0.0
        %2211 = vmatmul.mubr.f32.gmra.mrb[0].mxu0 %v331
        %v2212 = vpop.f32.mrb[0].mxu0
        %v2213 = vadd.f32 0.0, %v2212
        %v2214 = vpop.f32.mrb[0].mxu0
        %v2215 = vadd.f32 0.0, %v2214
        %2216 = vmatprep.mubr.f32.mxu0 0.0
        %2217 = vmatmul.mubr.f32.gmra.mrb[0].mxu0 %v334
        %v2218 = vpop.f32.mrb[0].mxu0
        %v2219 = vadd.f32 0.0, %v2218
        %v2220 = vpop.f32.mrb[0].mxu0
        %v2221 = vadd.f32 0.0, %v2220
        %2222 = vmatprep.mubr.f32.mxu0 0.0
        %2223 = vmatmul.mubr.f32.gmra.mrb[0].mxu0 %v337
        %v2224 = vpop.f32.mrb[0].mxu0
        %v2225 = vadd.f32 0.0, %v2224
        %v2226 = vpop.f32.mrb[0].mxu0
        %v2227 = vadd.f32 0.0, %v2226
        %2228 = vmatprep.mubr.f32.mxu0 0.0
        %2229 = vmatmul.mubr.f32.gmra.mrb[0].mxu0 %v340
        %v2230 = vpop.f32.mrb[0].mxu0
        %v2231 = vadd.f32 0.0, %v2230
        %v2232 = vpop.f32.mrb[0].mxu0
        %v2233 = vadd.f32 0.0, %v2232
        %2234 = vmatprep.mubr.f32.mxu0 0.0
        %2235 = vmatmul.mubr.f32.gmra.mrb[0].mxu0 %v343
        %v2236 = vpop.f32.mrb[0].mxu0
        %v2237 = vadd.f32 0.0, %v2236
        %v2238 = vpop.f32.mrb[0].mxu0
        %v2239 = vadd.f32 0.0, %v2238
        %2240 = vmatprep.mubr.f32.mxu0 0.0
        %2241 = vmatmul.mubr.f32.gmra.mrb[0].mxu0 %v346
        %v2242 = vpop.f32.mrb[0].mxu0
        %v2243 = vadd.f32 0.0, %v2242
        %v2244 = vpop.f32.mrb[0].mxu0
        %v2245 = vadd.f32 0.0, %v2244
        %2246 = vmatprep.mubr.f32.mxu0 0.0
        %2247 = vmatmul.mubr.f32.gmra.mrb[0].mxu0 %v349
        %v2248 = vpop.f32.mrb[0].mxu0
        %v2249 = vadd.f32 0.0, %v2248
        %v2250 = vpop.f32.mrb[0].mxu0
        %v2251 = vadd.f32 0.0, %v2250
        %2252 = vmatprep.mubr.f32.mxu0 0.0
        %2253 = vmatmul.mubr.f32.gmra.mrb[0].mxu0 %v352
        %v2254 = vpop.f32.mrb[0].mxu0
        %v2255 = vadd.f32 0.0, %v2254
        %v2256 = vpop.f32.mrb[0].mxu0
        %v2257 = vadd.f32 0.0, %v2256
        %2258 = vdwg.mxu0
        %v2259 = vmax.f32 %v518, 0.0
        %v2260 = vmax.f32 %v520, 0.0
        %v2261 = vmax.f32 %v631, 0.0
        %v2262 = vmax.f32 %v633, 0.0
        %v2263 = vmax.f32 %v744, 0.0
        %v2264 = vmax.f32 %v746, 0.0
        %v2265 = vmax.f32 %v857, 0.0
        %v2266 = vmax.f32 %v859, 0.0
        %v2267 = vmax.f32 %v970, 0.0
        %v2268 = vmax.f32 %v972, 0.0
        %v2269 = vmax.f32 %v1083, 0.0
        %v2270 = vmax.f32 %v1085, 0.0
        %v2271 = vmax.f32 %v1196, 0.0
        %v2272 = vmax.f32 %v1198, 0.0
        %v2273 = vmax.f32 %v1309, 0.0
        %v2274 = vmax.f32 %v1311, 0.0
        %v2275 = vmax.f32 %v1422, 0.0
        %v2276 = vmax.f32 %v1424, 0.0
        %v2277 = vmax.f32 %v1535, 0.0
        %v2278 = vmax.f32 %v1537, 0.0
        %v2279 = vmax.f32 %v1648, 0.0
        %v2280 = vmax.f32 %v1650, 0.0
        %v2281 = vmax.f32 %v1761, 0.0
        %v2282 = vmax.f32 %v1763, 0.0
        %v2283 = vmax.f32 %v1874, 0.0
        %v2284 = vmax.f32 %v1876, 0.0
        %v2285 = vmax.f32 %v1987, 0.0
        %v2286 = vmax.f32 %v1989, 0.0
        %v2287 = vmax.f32 %v2100, 0.0
        %v2288 = vmax.f32 %v2102, 0.0
        %v2289 = vmax.f32 %v2213, 0.0
        %v2290 = vmax.f32 %v2215, 0.0
        %v2291 = vmax.f32 %v524, 0.0
        %v2292 = vmax.f32 %v526, 0.0
        %v2293 = vmax.f32 %v637, 0.0
        %v2294 = vmax.f32 %v639, 0.0
        %v2295 = vmax.f32 %v750, 0.0
        %v2296 = vmax.f32 %v752, 0.0
        %v2297 = vmax.f32 %v863, 0.0
        %v2298 = vmax.f32 %v865, 0.0
        %v2299 = vmax.f32 %v976, 0.0
        %v2300 = vmax.f32 %v978, 0.0
        %v2301 = vmax.f32 %v1089, 0.0
        %v2302 = vmax.f32 %v1091, 0.0
        %v2303 = vmax.f32 %v1202, 0.0
        %v2304 = vmax.f32 %v1204, 0.0
        %v2305 = vmax.f32 %v1315, 0.0
        %v2306 = vmax.f32 %v1317, 0.0
        %v2307 = vmax.f32 %v1428, 0.0
        %v2308 = vmax.f32 %v1430, 0.0
        %v2309 = vmax.f32 %v1541, 0.0
        %v2310 = vmax.f32 %v1543, 0.0
        %v2311 = vmax.f32 %v1654, 0.0
        %v2312 = vmax.f32 %v1656, 0.0
        %v2313 = vmax.f32 %v1767, 0.0
        %v2314 = vmax.f32 %v1769, 0.0
        %v2315 = vmax.f32 %v1880, 0.0
        %v2316 = vmax.f32 %v1882, 0.0
        %v2317 = vmax.f32 %v1993, 0.0
        %v2318 = vmax.f32 %v1995, 0.0
        %v2319 = vmax.f32 %v2106, 0.0
        %v2320 = vmax.f32 %v2108, 0.0
        %v2321 = vmax.f32 %v2219, 0.0
        %v2322 = vmax.f32 %v2221, 0.0
        %v2323 = vmax.f32 %v530, 0.0
        %v2324 = vmax.f32 %v532, 0.0
        %v2325 = vmax.f32 %v643, 0.0
        %v2326 = vmax.f32 %v645, 0.0
        %v2327 = vmax.f32 %v756, 0.0
        %v2328 = vmax.f32 %v758, 0.0
        %v2329 = vmax.f32 %v869, 0.0
        %v2330 = vmax.f32 %v871, 0.0
        %v2331 = vmax.f32 %v982, 0.0
        %v2332 = vmax.f32 %v984, 0.0
        %v2333 = vmax.f32 %v1095, 0.0
        %v2334 = vmax.f32 %v1097, 0.0
        %v2335 = vmax.f32 %v1208, 0.0
        %v2336 = vmax.f32 %v1210, 0.0
        %v2337 = vmax.f32 %v1321, 0.0
        %v2338 = vmax.f32 %v1323, 0.0
        %v2339 = vmax.f32 %v1434, 0.0
        %v2340 = vmax.f32 %v1436, 0.0
        %v2341 = vmax.f32 %v1547, 0.0
        %v2342 = vmax.f32 %v1549, 0.0
        %v2343 = vmax.f32 %v1660, 0.0
        %v2344 = vmax.f32 %v1662, 0.0
        %v2345 = vmax.f32 %v1773, 0.0
        %v2346 = vmax.f32 %v1775, 0.0
        %v2347 = vmax.f32 %v1886, 0.0
        %v2348 = vmax.f32 %v1888, 0.0
        %v2349 = vmax.f32 %v1999, 0.0
        %v2350 = vmax.f32 %v2001, 0.0
        %v2351 = vmax.f32 %v2112, 0.0
        %v2352 = vmax.f32 %v2114, 0.0
        %v2353 = vmax.f32 %v2225, 0.0
        %v2354 = vmax.f32 %v2227, 0.0
        %v2355 = vmax.f32 %v536, 0.0
        %v2356 = vmax.f32 %v538, 0.0
        %v2357 = vmax.f32 %v649, 0.0
        %v2358 = vmax.f32 %v651, 0.0
        %v2359 = vmax.f32 %v762, 0.0
        %v2360 = vmax.f32 %v764, 0.0
        %v2361 = vmax.f32 %v875, 0.0
        %v2362 = vmax.f32 %v877, 0.0
        %v2363 = vmax.f32 %v988, 0.0
        %v2364 = vmax.f32 %v990, 0.0
        %v2365 = vmax.f32 %v1101, 0.0
        %v2366 = vmax.f32 %v1103, 0.0
        %v2367 = vmax.f32 %v1214, 0.0
        %v2368 = vmax.f32 %v1216, 0.0
        %v2369 = vmax.f32 %v1327, 0.0
        %v2370 = vmax.f32 %v1329, 0.0
        %v2371 = vmax.f32 %v1440, 0.0
        %v2372 = vmax.f32 %v1442, 0.0
        %v2373 = vmax.f32 %v1553, 0.0
        %v2374 = vmax.f32 %v1555, 0.0
        %v2375 = vmax.f32 %v1666, 0.0
        %v2376 = vmax.f32 %v1668, 0.0
        %v2377 = vmax.f32 %v1779, 0.0
        %v2378 = vmax.f32 %v1781, 0.0
        %v2379 = vmax.f32 %v1892, 0.0
        %v2380 = vmax.f32 %v1894, 0.0
        %v2381 = vmax.f32 %v2005, 0.0
        %v2382 = vmax.f32 %v2007, 0.0
        %v2383 = vmax.f32 %v2118, 0.0
        %v2384 = vmax.f32 %v2120, 0.0
        %v2385 = vmax.f32 %v2231, 0.0
        %v2386 = vmax.f32 %v2233, 0.0
        %v2387 = vmax.f32 %v542, 0.0
        %v2388 = vmax.f32 %v544, 0.0
        %v2389 = vmax.f32 %v655, 0.0
        %v2390 = vmax.f32 %v657, 0.0
        %v2391 = vmax.f32 %v768, 0.0
        %v2392 = vmax.f32 %v770, 0.0
        %v2393 = vmax.f32 %v881, 0.0
        %v2394 = vmax.f32 %v883, 0.0
        %v2395 = vmax.f32 %v994, 0.0
        %v2396 = vmax.f32 %v996, 0.0
        %v2397 = vmax.f32 %v1107, 0.0
        %v2398 = vmax.f32 %v1109, 0.0
        %v2399 = vmax.f32 %v1220, 0.0
        %v2400 = vmax.f32 %v1222, 0.0
        %v2401 = vmax.f32 %v1333, 0.0
        %v2402 = vmax.f32 %v1335, 0.0
        %v2403 = vmax.f32 %v1446, 0.0
        %v2404 = vmax.f32 %v1448, 0.0
        %v2405 = vmax.f32 %v1559, 0.0
        %v2406 = vmax.f32 %v1561, 0.0
        %v2407 = vmax.f32 %v1672, 0.0
        %v2408 = vmax.f32 %v1674, 0.0
        %v2409 = vmax.f32 %v1785, 0.0
        %v2410 = vmax.f32 %v1787, 0.0
        %v2411 = vmax.f32 %v1898, 0.0
        %v2412 = vmax.f32 %v1900, 0.0
        %v2413 = vmax.f32 %v2011, 0.0
        %v2414 = vmax.f32 %v2013, 0.0
        %v2415 = vmax.f32 %v2124, 0.0
        %v2416 = vmax.f32 %v2126, 0.0
        %v2417 = vmax.f32 %v2237, 0.0
        %v2418 = vmax.f32 %v2239, 0.0
        %v2419 = vmax.f32 %v548, 0.0
        %v2420 = vmax.f32 %v550, 0.0
        %v2421 = vmax.f32 %v661, 0.0
        %v2422 = vmax.f32 %v663, 0.0
        %v2423 = vmax.f32 %v774, 0.0
        %v2424 = vmax.f32 %v776, 0.0
        %v2425 = vmax.f32 %v887, 0.0
        %v2426 = vmax.f32 %v889, 0.0
        %v2427 = vmax.f32 %v1000, 0.0
        %v2428 = vmax.f32 %v1002, 0.0
        %v2429 = vmax.f32 %v1113, 0.0
        %v2430 = vmax.f32 %v1115, 0.0
        %v2431 = vmax.f32 %v1226, 0.0
        %v2432 = vmax.f32 %v1228, 0.0
        %v2433 = vmax.f32 %v1339, 0.0
        %v2434 = vmax.f32 %v1341, 0.0
        %v2435 = vmax.f32 %v1452, 0.0
        %v2436 = vmax.f32 %v1454, 0.0
        %v2437 = vmax.f32 %v1565, 0.0
        %v2438 = vmax.f32 %v1567, 0.0
        %v2439 = vmax.f32 %v1678, 0.0
        %v2440 = vmax.f32 %v1680, 0.0
        %v2441 = vmax.f32 %v1791, 0.0
        %v2442 = vmax.f32 %v1793, 0.0
        %v2443 = vmax.f32 %v1904, 0.0
        %v2444 = vmax.f32 %v1906, 0.0
        %v2445 = vmax.f32 %v2017, 0.0
        %v2446 = vmax.f32 %v2019, 0.0
        %v2447 = vmax.f32 %v2130, 0.0
        %v2448 = vmax.f32 %v2132, 0.0
        %v2449 = vmax.f32 %v2243, 0.0
        %v2450 = vmax.f32 %v2245, 0.0
        %v2451 = vmax.f32 %v554, 0.0
        %v2452 = vmax.f32 %v556, 0.0
        %v2453 = vmax.f32 %v667, 0.0
        %v2454 = vmax.f32 %v669, 0.0
        %v2455 = vmax.f32 %v780, 0.0
        %v2456 = vmax.f32 %v782, 0.0
        %v2457 = vmax.f32 %v893, 0.0
        %v2458 = vmax.f32 %v895, 0.0
        %v2459 = vmax.f32 %v1006, 0.0
        %v2460 = vmax.f32 %v1008, 0.0
        %v2461 = vmax.f32 %v1119, 0.0
        %v2462 = vmax.f32 %v1121, 0.0
        %v2463 = vmax.f32 %v1232, 0.0
        %v2464 = vmax.f32 %v1234, 0.0
        %v2465 = vmax.f32 %v1345, 0.0
        %v2466 = vmax.f32 %v1347, 0.0
        %v2467 = vmax.f32 %v1458, 0.0
        %v2468 = vmax.f32 %v1460, 0.0
        %v2469 = vmax.f32 %v1571, 0.0
        %v2470 = vmax.f32 %v1573, 0.0
        %v2471 = vmax.f32 %v1684, 0.0
        %v2472 = vmax.f32 %v1686, 0.0
        %v2473 = vmax.f32 %v1797, 0.0
        %v2474 = vmax.f32 %v1799, 0.0
        %v2475 = vmax.f32 %v1910, 0.0
        %v2476 = vmax.f32 %v1912, 0.0
        %v2477 = vmax.f32 %v2023, 0.0
        %v2478 = vmax.f32 %v2025, 0.0
        %v2479 = vmax.f32 %v2136, 0.0
        %v2480 = vmax.f32 %v2138, 0.0
        %v2481 = vmax.f32 %v2249, 0.0
        %v2482 = vmax.f32 %v2251, 0.0
        %v2483 = vmax.f32 %v560, 0.0
        %v2484 = vmax.f32 %v562, 0.0
        %v2485 = vmax.f32 %v673, 0.0
        %v2486 = vmax.f32 %v675, 0.0
        %v2487 = vmax.f32 %v786, 0.0
        %v2488 = vmax.f32 %v788, 0.0
        %v2489 = vmax.f32 %v899, 0.0
        %v2490 = vmax.f32 %v901, 0.0
        %v2491 = vmax.f32 %v1012, 0.0
        %v2492 = vmax.f32 %v1014, 0.0
        %v2493 = vmax.f32 %v1125, 0.0
        %v2494 = vmax.f32 %v1127, 0.0
        %v2495 = vmax.f32 %v1238, 0.0
        %v2496 = vmax.f32 %v1240, 0.0
        %v2497 = vmax.f32 %v1351, 0.0
        %v2498 = vmax.f32 %v1353, 0.0
        %v2499 = vmax.f32 %v1464, 0.0
        %v2500 = vmax.f32 %v1466, 0.0
        %v2501 = vmax.f32 %v1577, 0.0
        %v2502 = vmax.f32 %v1579, 0.0
        %v2503 = vmax.f32 %v1690, 0.0
        %v2504 = vmax.f32 %v1692, 0.0
        %v2505 = vmax.f32 %v1803, 0.0
        %v2506 = vmax.f32 %v1805, 0.0
        %v2507 = vmax.f32 %v1916, 0.0
        %v2508 = vmax.f32 %v1918, 0.0
        %v2509 = vmax.f32 %v2029, 0.0
        %v2510 = vmax.f32 %v2031, 0.0
        %v2511 = vmax.f32 %v2142, 0.0
        %v2512 = vmax.f32 %v2144, 0.0
        %v2513 = vmax.f32 %v2255, 0.0
        %v2514 = vmax.f32 %v2257, 0.0
        %v2515 = vadd.f32 %v2259, %v2260
        %2516 = vadd.xlane.f32.xlu0 %v2515
        %v2517 = vpop.xlane.xlu0 %2516
        %v2518 = vadd.f32 %v2291, %v2292
        %2519 = vadd.xlane.f32.xlu0 %v2518
        %v2520 = vpop.xlane.xlu0 %2519
        %v2521 = vadd.f32 %v2323, %v2324
        %2522 = vadd.xlane.f32.xlu0 %v2521
        %v2523 = vpop.xlane.xlu0 %2522
        %v2524 = vadd.f32 %v2355, %v2356
        %2525 = vadd.xlane.f32.xlu0 %v2524
        %v2526 = vpop.xlane.xlu0 %2525
        %v2527 = vadd.f32 %v2387, %v2388
        %2528 = vadd.xlane.f32.xlu0 %v2527
        %v2529 = vpop.xlane.xlu0 %2528
        %v2530 = vadd.f32 %v2419, %v2420
        %2531 = vadd.xlane.f32.xlu0 %v2530
        %v2532 = vpop.xlane.xlu0 %2531
        %v2533 = vadd.f32 %v2451, %v2452
        %2534 = vadd.xlane.f32.xlu0 %v2533
        %v2535 = vpop.xlane.xlu0 %2534
        %v2536 = vadd.f32 %v2483, %v2484
        %2537 = vadd.xlane.f32.xlu0 %v2536
        %v2538 = vpop.xlane.xlu0 %2537
        %v2539 = vrcp.pop 256.0
        %v2540 = vmul.f32 %v2517, %v2539
        %v2541 = vmul.f32 %v2520, %v2539
        %v2542 = vmul.f32 %v2523, %v2539
        %v2543 = vmul.f32 %v2526, %v2539
        %v2544 = vmul.f32 %v2529, %v2539
        %v2545 = vmul.f32 %v2532, %v2539
        %v2546 = vmul.f32 %v2535, %v2539
        %v2547 = vmul.f32 %v2538, %v2539
        %v2548 = vadd.f32 %v2261, %v2262
        %2549 = vadd.xlane.f32.xlu0 %v2548
        %v2550 = vpop.xlane.xlu0 %2549
        %v2551 = vadd.f32 %v2293, %v2294
        %2552 = vadd.xlane.f32.xlu0 %v2551
        %v2553 = vpop.xlane.xlu0 %2552
        %v2554 = vadd.f32 %v2325, %v2326
        %2555 = vadd.xlane.f32.xlu0 %v2554
        %v2556 = vpop.xlane.xlu0 %2555
        %v2557 = vadd.f32 %v2357, %v2358
        %2558 = vadd.xlane.f32.xlu0 %v2557
        %v2559 = vpop.xlane.xlu0 %2558
        %v2560 = vadd.f32 %v2389, %v2390
        %2561 = vadd.xlane.f32.xlu0 %v2560
        %v2562 = vpop.xlane.xlu0 %2561
        %v2563 = vadd.f32 %v2421, %v2422
        %2564 = vadd.xlane.f32.xlu0 %v2563
        %v2565 = vpop.xlane.xlu0 %2564
        %v2566 = vadd.f32 %v2453, %v2454
        %2567 = vadd.xlane.f32.xlu0 %v2566
        %v2568 = vpop.xlane.xlu0 %2567
        %v2569 = vadd.f32 %v2485, %v2486
        %2570 = vadd.xlane.f32.xlu0 %v2569
        %v2571 = vpop.xlane.xlu0 %2570
        %v2572 = vmul.f32 %v2550, %v2539
        %v2573 = vmul.f32 %v2553, %v2539
        %v2574 = vmul.f32 %v2556, %v2539
        %v2575 = vmul.f32 %v2559, %v2539
        %v2576 = vmul.f32 %v2562, %v2539
        %v2577 = vmul.f32 %v2565, %v2539
        %v2578 = vmul.f32 %v2568, %v2539
        %v2579 = vmul.f32 %v2571, %v2539
        %v2580 = vadd.f32 %v2263, %v2264
        %2581 = vadd.xlane.f32.xlu0 %v2580
        %v2582 = vpop.xlane.xlu0 %2581
        %v2583 = vadd.f32 %v2295, %v2296
        %2584 = vadd.xlane.f32.xlu0 %v2583
        %v2585 = vpop.xlane.xlu0 %2584
        %v2586 = vadd.f32 %v2327, %v2328
        %2587 = vadd.xlane.f32.xlu0 %v2586
        %v2588 = vpop.xlane.xlu0 %2587
        %v2589 = vadd.f32 %v2359, %v2360
        %2590 = vadd.xlane.f32.xlu0 %v2589
        %v2591 = vpop.xlane.xlu0 %2590
        %v2592 = vadd.f32 %v2391, %v2392
        %2593 = vadd.xlane.f32.xlu0 %v2592
        %v2594 = vpop.xlane.xlu0 %2593
        %v2595 = vadd.f32 %v2423, %v2424
        %2596 = vadd.xlane.f32.xlu0 %v2595
        %v2597 = vpop.xlane.xlu0 %2596
        %v2598 = vadd.f32 %v2455, %v2456
        %2599 = vadd.xlane.f32.xlu0 %v2598
        %v2600 = vpop.xlane.xlu0 %2599
        %v2601 = vadd.f32 %v2487, %v2488
        %2602 = vadd.xlane.f32.xlu0 %v2601
        %v2603 = vpop.xlane.xlu0 %2602
        %v2604 = vmul.f32 %v2582, %v2539
        %v2605 = vmul.f32 %v2585, %v2539
        %v2606 = vmul.f32 %v2588, %v2539
        %v2607 = vmul.f32 %v2591, %v2539
        %v2608 = vmul.f32 %v2594, %v2539
        %v2609 = vmul.f32 %v2597, %v2539
        %v2610 = vmul.f32 %v2600, %v2539
        %v2611 = vmul.f32 %v2603, %v2539
        %v2612 = vadd.f32 %v2265, %v2266
        %2613 = vadd.xlane.f32.xlu0 %v2612
        %v2614 = vpop.xlane.xlu0 %2613
        %v2615 = vadd.f32 %v2297, %v2298
        %2616 = vadd.xlane.f32.xlu0 %v2615
        %v2617 = vpop.xlane.xlu0 %2616
        %v2618 = vadd.f32 %v2329, %v2330
        %2619 = vadd.xlane.f32.xlu0 %v2618
        %v2620 = vpop.xlane.xlu0 %2619
        %v2621 = vadd.f32 %v2361, %v2362
        %2622 = vadd.xlane.f32.xlu0 %v2621
        %v2623 = vpop.xlane.xlu0 %2622
        %v2624 = vadd.f32 %v2393, %v2394
        %2625 = vadd.xlane.f32.xlu0 %v2624
        %v2626 = vpop.xlane.xlu0 %2625
        %v2627 = vadd.f32 %v2425, %v2426
        %2628 = vadd.xlane.f32.xlu0 %v2627
        %v2629 = vpop.xlane.xlu0 %2628
        %v2630 = vadd.f32 %v2457, %v2458
        %2631 = vadd.xlane.f32.xlu0 %v2630
        %v2632 = vpop.xlane.xlu0 %2631
        %v2633 = vadd.f32 %v2489, %v2490
        %2634 = vadd.xlane.f32.xlu0 %v2633
        %v2635 = vpop.xlane.xlu0 %2634
        %v2636 = vmul.f32 %v2614, %v2539
        %v2637 = vmul.f32 %v2617, %v2539
        %v2638 = vmul.f32 %v2620, %v2539
        %v2639 = vmul.f32 %v2623, %v2539
        %v2640 = vmul.f32 %v2626, %v2539
        %v2641 = vmul.f32 %v2629, %v2539
        %v2642 = vmul.f32 %v2632, %v2539
        %v2643 = vmul.f32 %v2635, %v2539
        %v2644 = vadd.f32 %v2267, %v2268
        %2645 = vadd.xlane.f32.xlu0 %v2644
        %v2646 = vpop.xlane.xlu0 %2645
        %v2647 = vadd.f32 %v2299, %v2300
        %2648 = vadd.xlane.f32.xlu0 %v2647
        %v2649 = vpop.xlane.xlu0 %2648
        %v2650 = vadd.f32 %v2331, %v2332
        %2651 = vadd.xlane.f32.xlu0 %v2650
        %v2652 = vpop.xlane.xlu0 %2651
        %v2653 = vadd.f32 %v2363, %v2364
        %2654 = vadd.xlane.f32.xlu0 %v2653
        %v2655 = vpop.xlane.xlu0 %2654
        %v2656 = vadd.f32 %v2395, %v2396
        %2657 = vadd.xlane.f32.xlu0 %v2656
        %v2658 = vpop.xlane.xlu0 %2657
        %v2659 = vadd.f32 %v2427, %v2428
        %2660 = vadd.xlane.f32.xlu0 %v2659
        %v2661 = vpop.xlane.xlu0 %2660
        %v2662 = vadd.f32 %v2459, %v2460
        %2663 = vadd.xlane.f32.xlu0 %v2662
        %v2664 = vpop.xlane.xlu0 %2663
        %v2665 = vadd.f32 %v2491, %v2492
        %2666 = vadd.xlane.f32.xlu0 %v2665
        %v2667 = vpop.xlane.xlu0 %2666
        %v2668 = vmul.f32 %v2646, %v2539
        %v2669 = vmul.f32 %v2649, %v2539
        %v2670 = vmul.f32 %v2652, %v2539
        %v2671 = vmul.f32 %v2655, %v2539
        %v2672 = vmul.f32 %v2658, %v2539
        %v2673 = vmul.f32 %v2661, %v2539
        %v2674 = vmul.f32 %v2664, %v2539
        %v2675 = vmul.f32 %v2667, %v2539
        %v2676 = vadd.f32 %v2269, %v2270
        %2677 = vadd.xlane.f32.xlu0 %v2676
        %v2678 = vpop.xlane.xlu0 %2677
        %v2679 = vadd.f32 %v2301, %v2302
        %2680 = vadd.xlane.f32.xlu0 %v2679
        %v2681 = vpop.xlane.xlu0 %2680
        %v2682 = vadd.f32 %v2333, %v2334
        %2683 = vadd.xlane.f32.xlu0 %v2682
        %v2684 = vpop.xlane.xlu0 %2683
        %v2685 = vadd.f32 %v2365, %v2366
        %2686 = vadd.xlane.f32.xlu0 %v2685
        %v2687 = vpop.xlane.xlu0 %2686
        %v2688 = vadd.f32 %v2397, %v2398
        %2689 = vadd.xlane.f32.xlu0 %v2688
        %v2690 = vpop.xlane.xlu0 %2689
        %v2691 = vadd.f32 %v2429, %v2430
        %2692 = vadd.xlane.f32.xlu0 %v2691
        %v2693 = vpop.xlane.xlu0 %2692
        %v2694 = vadd.f32 %v2461, %v2462
        %2695 = vadd.xlane.f32.xlu0 %v2694
        %v2696 = vpop.xlane.xlu0 %2695
        %v2697 = vadd.f32 %v2493, %v2494
        %2698 = vadd.xlane.f32.xlu0 %v2697
        %v2699 = vpop.xlane.xlu0 %2698
        %v2700 = vmul.f32 %v2678, %v2539
        %v2701 = vmul.f32 %v2681, %v2539
        %v2702 = vmul.f32 %v2684, %v2539
        %v2703 = vmul.f32 %v2687, %v2539
        %v2704 = vmul.f32 %v2690, %v2539
        %v2705 = vmul.f32 %v2693, %v2539
        %v2706 = vmul.f32 %v2696, %v2539
        %v2707 = vmul.f32 %v2699, %v2539
        %v2708 = vadd.f32 %v2271, %v2272
        %2709 = vadd.xlane.f32.xlu0 %v2708
        %v2710 = vpop.xlane.xlu0 %2709
        %v2711 = vadd.f32 %v2303, %v2304
        %2712 = vadd.xlane.f32.xlu0 %v2711
        %v2713 = vpop.xlane.xlu0 %2712
        %v2714 = vadd.f32 %v2335, %v2336
        %2715 = vadd.xlane.f32.xlu0 %v2714
        %v2716 = vpop.xlane.xlu0 %2715
        %v2717 = vadd.f32 %v2367, %v2368
        %2718 = vadd.xlane.f32.xlu0 %v2717
        %v2719 = vpop.xlane.xlu0 %2718
        %v2720 = vadd.f32 %v2399, %v2400
        %2721 = vadd.xlane.f32.xlu0 %v2720
        %v2722 = vpop.xlane.xlu0 %2721
        %v2723 = vadd.f32 %v2431, %v2432
        %2724 = vadd.xlane.f32.xlu0 %v2723
        %v2725 = vpop.xlane.xlu0 %2724
        %v2726 = vadd.f32 %v2463, %v2464
        %2727 = vadd.xlane.f32.xlu0 %v2726
        %v2728 = vpop.xlane.xlu0 %2727
        %v2729 = vadd.f32 %v2495, %v2496
        %2730 = vadd.xlane.f32.xlu0 %v2729
        %v2731 = vpop.xlane.xlu0 %2730
        %v2732 = vmul.f32 %v2710, %v2539
        %v2733 = vmul.f32 %v2713, %v2539
        %v2734 = vmul.f32 %v2716, %v2539
        %v2735 = vmul.f32 %v2719, %v2539
        %v2736 = vmul.f32 %v2722, %v2539
        %v2737 = vmul.f32 %v2725, %v2539
        %v2738 = vmul.f32 %v2728, %v2539
        %v2739 = vmul.f32 %v2731, %v2539
        %v2740 = vadd.f32 %v2273, %v2274
        %2741 = vadd.xlane.f32.xlu0 %v2740
        %v2742 = vpop.xlane.xlu0 %2741
        %v2743 = vadd.f32 %v2305, %v2306
        %2744 = vadd.xlane.f32.xlu0 %v2743
        %v2745 = vpop.xlane.xlu0 %2744
        %v2746 = vadd.f32 %v2337, %v2338
        %2747 = vadd.xlane.f32.xlu0 %v2746
        %v2748 = vpop.xlane.xlu0 %2747
        %v2749 = vadd.f32 %v2369, %v2370
        %2750 = vadd.xlane.f32.xlu0 %v2749
        %v2751 = vpop.xlane.xlu0 %2750
        %v2752 = vadd.f32 %v2401, %v2402
        %2753 = vadd.xlane.f32.xlu0 %v2752
        %v2754 = vpop.xlane.xlu0 %2753
        %v2755 = vadd.f32 %v2433, %v2434
        %2756 = vadd.xlane.f32.xlu0 %v2755
        %v2757 = vpop.xlane.xlu0 %2756
        %v2758 = vadd.f32 %v2465, %v2466
        %2759 = vadd.xlane.f32.xlu0 %v2758
        %v2760 = vpop.xlane.xlu0 %2759
        %v2761 = vadd.f32 %v2497, %v2498
        %2762 = vadd.xlane.f32.xlu0 %v2761
        %v2763 = vpop.xlane.xlu0 %2762
        %v2764 = vmul.f32 %v2742, %v2539
        %v2765 = vmul.f32 %v2745, %v2539
        %v2766 = vmul.f32 %v2748, %v2539
        %v2767 = vmul.f32 %v2751, %v2539
        %v2768 = vmul.f32 %v2754, %v2539
        %v2769 = vmul.f32 %v2757, %v2539
        %v2770 = vmul.f32 %v2760, %v2539
        %v2771 = vmul.f32 %v2763, %v2539
        %v2772 = vadd.f32 %v2275, %v2276
        %2773 = vadd.xlane.f32.xlu0 %v2772
        %v2774 = vpop.xlane.xlu0 %2773
        %v2775 = vadd.f32 %v2307, %v2308
        %2776 = vadd.xlane.f32.xlu0 %v2775
        %v2777 = vpop.xlane.xlu0 %2776
        %v2778 = vadd.f32 %v2339, %v2340
        %2779 = vadd.xlane.f32.xlu0 %v2778
        %v2780 = vpop.xlane.xlu0 %2779
        %v2781 = vadd.f32 %v2371, %v2372
        %2782 = vadd.xlane.f32.xlu0 %v2781
        %v2783 = vpop.xlane.xlu0 %2782
        %v2784 = vadd.f32 %v2403, %v2404
        %2785 = vadd.xlane.f32.xlu0 %v2784
        %v2786 = vpop.xlane.xlu0 %2785
        %v2787 = vadd.f32 %v2435, %v2436
        %2788 = vadd.xlane.f32.xlu0 %v2787
        %v2789 = vpop.xlane.xlu0 %2788
        %v2790 = vadd.f32 %v2467, %v2468
        %2791 = vadd.xlane.f32.xlu0 %v2790
        %v2792 = vpop.xlane.xlu0 %2791
        %v2793 = vadd.f32 %v2499, %v2500
        %2794 = vadd.xlane.f32.xlu0 %v2793
        %v2795 = vpop.xlane.xlu0 %2794
        %v2796 = vmul.f32 %v2774, %v2539
        %v2797 = vmul.f32 %v2777, %v2539
        %v2798 = vmul.f32 %v2780, %v2539
        %v2799 = vmul.f32 %v2783, %v2539
        %v2800 = vmul.f32 %v2786, %v2539
        %v2801 = vmul.f32 %v2789, %v2539
        %v2802 = vmul.f32 %v2792, %v2539
        %v2803 = vmul.f32 %v2795, %v2539
        %v2804 = vadd.f32 %v2277, %v2278
        %2805 = vadd.xlane.f32.xlu0 %v2804
        %v2806 = vpop.xlane.xlu0 %2805
        %v2807 = vadd.f32 %v2309, %v2310
        %2808 = vadd.xlane.f32.xlu0 %v2807
        %v2809 = vpop.xlane.xlu0 %2808
        %v2810 = vadd.f32 %v2341, %v2342
        %2811 = vadd.xlane.f32.xlu0 %v2810
        %v2812 = vpop.xlane.xlu0 %2811
        %v2813 = vadd.f32 %v2373, %v2374
        %2814 = vadd.xlane.f32.xlu0 %v2813
        %v2815 = vpop.xlane.xlu0 %2814
        %v2816 = vadd.f32 %v2405, %v2406
        %2817 = vadd.xlane.f32.xlu0 %v2816
        %v2818 = vpop.xlane.xlu0 %2817
        %v2819 = vadd.f32 %v2437, %v2438
        %2820 = vadd.xlane.f32.xlu0 %v2819
        %v2821 = vpop.xlane.xlu0 %2820
        %v2822 = vadd.f32 %v2469, %v2470
        %2823 = vadd.xlane.f32.xlu0 %v2822
        %v2824 = vpop.xlane.xlu0 %2823
        %v2825 = vadd.f32 %v2501, %v2502
        %2826 = vadd.xlane.f32.xlu0 %v2825
        %v2827 = vpop.xlane.xlu0 %2826
        %v2828 = vmul.f32 %v2806, %v2539
        %v2829 = vmul.f32 %v2809, %v2539
        %v2830 = vmul.f32 %v2812, %v2539
        %v2831 = vmul.f32 %v2815, %v2539
        %v2832 = vmul.f32 %v2818, %v2539
        %v2833 = vmul.f32 %v2821, %v2539
        %v2834 = vmul.f32 %v2824, %v2539
        %v2835 = vmul.f32 %v2827, %v2539
        %v2836 = vadd.f32 %v2279, %v2280
        %2837 = vadd.xlane.f32.xlu0 %v2836
        %v2838 = vpop.xlane.xlu0 %2837
        %v2839 = vadd.f32 %v2311, %v2312
        %2840 = vadd.xlane.f32.xlu0 %v2839
        %v2841 = vpop.xlane.xlu0 %2840
        %v2842 = vadd.f32 %v2343, %v2344
        %2843 = vadd.xlane.f32.xlu0 %v2842
        %v2844 = vpop.xlane.xlu0 %2843
        %v2845 = vadd.f32 %v2375, %v2376
        %2846 = vadd.xlane.f32.xlu0 %v2845
        %v2847 = vpop.xlane.xlu0 %2846
        %v2848 = vadd.f32 %v2407, %v2408
        %2849 = vadd.xlane.f32.xlu0 %v2848
        %v2850 = vpop.xlane.xlu0 %2849
        %v2851 = vadd.f32 %v2439, %v2440
        %2852 = vadd.xlane.f32.xlu0 %v2851
        %v2853 = vpop.xlane.xlu0 %2852
        %v2854 = vadd.f32 %v2471, %v2472
        %2855 = vadd.xlane.f32.xlu0 %v2854
        %v2856 = vpop.xlane.xlu0 %2855
        %v2857 = vadd.f32 %v2503, %v2504
        %2858 = vadd.xlane.f32.xlu0 %v2857
        %v2859 = vpop.xlane.xlu0 %2858
        %v2860 = vmul.f32 %v2838, %v2539
        %v2861 = vmul.f32 %v2841, %v2539
        %v2862 = vmul.f32 %v2844, %v2539
        %v2863 = vmul.f32 %v2847, %v2539
        %v2864 = vmul.f32 %v2850, %v2539
        %v2865 = vmul.f32 %v2853, %v2539
        %v2866 = vmul.f32 %v2856, %v2539
        %v2867 = vmul.f32 %v2859, %v2539
        %v2868 = vadd.f32 %v2281, %v2282
        %2869 = vadd.xlane.f32.xlu0 %v2868
        %v2870 = vpop.xlane.xlu0 %2869
        %v2871 = vadd.f32 %v2313, %v2314
        %2872 = vadd.xlane.f32.xlu0 %v2871
        %v2873 = vpop.xlane.xlu0 %2872
        %v2874 = vadd.f32 %v2345, %v2346
        %2875 = vadd.xlane.f32.xlu0 %v2874
        %v2876 = vpop.xlane.xlu0 %2875
        %v2877 = vadd.f32 %v2377, %v2378
        %2878 = vadd.xlane.f32.xlu0 %v2877
        %v2879 = vpop.xlane.xlu0 %2878
        %v2880 = vadd.f32 %v2409, %v2410
        %2881 = vadd.xlane.f32.xlu0 %v2880
        %v2882 = vpop.xlane.xlu0 %2881
        %v2883 = vadd.f32 %v2441, %v2442
        %2884 = vadd.xlane.f32.xlu0 %v2883
        %v2885 = vpop.xlane.xlu0 %2884
        %v2886 = vadd.f32 %v2473, %v2474
        %2887 = vadd.xlane.f32.xlu0 %v2886
        %v2888 = vpop.xlane.xlu0 %2887
        %v2889 = vadd.f32 %v2505, %v2506
        %2890 = vadd.xlane.f32.xlu0 %v2889
        %v2891 = vpop.xlane.xlu0 %2890
        %v2892 = vmul.f32 %v2870, %v2539
        %v2893 = vmul.f32 %v2873, %v2539
        %v2894 = vmul.f32 %v2876, %v2539
        %v2895 = vmul.f32 %v2879, %v2539
        %v2896 = vmul.f32 %v2882, %v2539
        %v2897 = vmul.f32 %v2885, %v2539
        %v2898 = vmul.f32 %v2888, %v2539
        %v2899 = vmul.f32 %v2891, %v2539
        %v2900 = vadd.f32 %v2283, %v2284
        %2901 = vadd.xlane.f32.xlu0 %v2900
        %v2902 = vpop.xlane.xlu0 %2901
        %v2903 = vadd.f32 %v2315, %v2316
        %2904 = vadd.xlane.f32.xlu0 %v2903
        %v2905 = vpop.xlane.xlu0 %2904
        %v2906 = vadd.f32 %v2347, %v2348
        %2907 = vadd.xlane.f32.xlu0 %v2906
        %v2908 = vpop.xlane.xlu0 %2907
        %v2909 = vadd.f32 %v2379, %v2380
        %2910 = vadd.xlane.f32.xlu0 %v2909
        %v2911 = vpop.xlane.xlu0 %2910
        %v2912 = vadd.f32 %v2411, %v2412
        %2913 = vadd.xlane.f32.xlu0 %v2912
        %v2914 = vpop.xlane.xlu0 %2913
        %v2915 = vadd.f32 %v2443, %v2444
        %2916 = vadd.xlane.f32.xlu0 %v2915
        %v2917 = vpop.xlane.xlu0 %2916
        %v2918 = vadd.f32 %v2475, %v2476
        %2919 = vadd.xlane.f32.xlu0 %v2918
        %v2920 = vpop.xlane.xlu0 %2919
        %v2921 = vadd.f32 %v2507, %v2508
        %2922 = vadd.xlane.f32.xlu0 %v2921
        %v2923 = vpop.xlane.xlu0 %2922
        %v2924 = vmul.f32 %v2902, %v2539
        %v2925 = vmul.f32 %v2905, %v2539
        %v2926 = vmul.f32 %v2908, %v2539
        %v2927 = vmul.f32 %v2911, %v2539
        %v2928 = vmul.f32 %v2914, %v2539
        %v2929 = vmul.f32 %v2917, %v2539
        %v2930 = vmul.f32 %v2920, %v2539
        %v2931 = vmul.f32 %v2923, %v2539
        %v2932 = vadd.f32 %v2285, %v2286
        %2933 = vadd.xlane.f32.xlu0 %v2932
        %v2934 = vpop.xlane.xlu0 %2933
        %v2935 = vadd.f32 %v2317, %v2318
        %2936 = vadd.xlane.f32.xlu0 %v2935
        %v2937 = vpop.xlane.xlu0 %2936
        %v2938 = vadd.f32 %v2349, %v2350
        %2939 = vadd.xlane.f32.xlu0 %v2938
        %v2940 = vpop.xlane.xlu0 %2939
        %v2941 = vadd.f32 %v2381, %v2382
        %2942 = vadd.xlane.f32.xlu0 %v2941
        %v2943 = vpop.xlane.xlu0 %2942
        %v2944 = vadd.f32 %v2413, %v2414
        %2945 = vadd.xlane.f32.xlu0 %v2944
        %v2946 = vpop.xlane.xlu0 %2945
        %v2947 = vadd.f32 %v2445, %v2446
        %2948 = vadd.xlane.f32.xlu0 %v2947
        %v2949 = vpop.xlane.xlu0 %2948
        %v2950 = vadd.f32 %v2477, %v2478
        %2951 = vadd.xlane.f32.xlu0 %v2950
        %v2952 = vpop.xlane.xlu0 %2951
        %v2953 = vadd.f32 %v2509, %v2510
        %2954 = vadd.xlane.f32.xlu0 %v2953
        %v2955 = vpop.xlane.xlu0 %2954
        %v2956 = vmul.f32 %v2934, %v2539
        %v2957 = vmul.f32 %v2937, %v2539
        %v2958 = vmul.f32 %v2940, %v2539
        %v2959 = vmul.f32 %v2943, %v2539
        %v2960 = vmul.f32 %v2946, %v2539
        %v2961 = vmul.f32 %v2949, %v2539
        %v2962 = vmul.f32 %v2952, %v2539
        %v2963 = vmul.f32 %v2955, %v2539
        %v2964 = vadd.f32 %v2287, %v2288
        %2965 = vadd.xlane.f32.xlu0 %v2964
        %v2966 = vpop.xlane.xlu0 %2965
        %v2967 = vadd.f32 %v2319, %v2320
        %2968 = vadd.xlane.f32.xlu0 %v2967
        %v2969 = vpop.xlane.xlu0 %2968
        %v2970 = vadd.f32 %v2351, %v2352
        %2971 = vadd.xlane.f32.xlu0 %v2970
        %v2972 = vpop.xlane.xlu0 %2971
        %v2973 = vadd.f32 %v2383, %v2384
        %2974 = vadd.xlane.f32.xlu0 %v2973
        %v2975 = vpop.xlane.xlu0 %2974
        %v2976 = vadd.f32 %v2415, %v2416
        %2977 = vadd.xlane.f32.xlu0 %v2976
        %v2978 = vpop.xlane.xlu0 %2977
        %v2979 = vadd.f32 %v2447, %v2448
        %2980 = vadd.xlane.f32.xlu0 %v2979
        %v2981 = vpop.xlane.xlu0 %2980
        %v2982 = vadd.f32 %v2479, %v2480
        %2983 = vadd.xlane.f32.xlu0 %v2982
        %v2984 = vpop.xlane.xlu0 %2983
        %v2985 = vadd.f32 %v2511, %v2512
        %2986 = vadd.xlane.f32.xlu0 %v2985
        %v2987 = vpop.xlane.xlu0 %2986
        %v2988 = vmul.f32 %v2966, %v2539
        %v2989 = vmul.f32 %v2969, %v2539
        %v2990 = vmul.f32 %v2972, %v2539
        %v2991 = vmul.f32 %v2975, %v2539
        %v2992 = vmul.f32 %v2978, %v2539
        %v2993 = vmul.f32 %v2981, %v2539
        %v2994 = vmul.f32 %v2984, %v2539
        %v2995 = vmul.f32 %v2987, %v2539
        %v2996 = vadd.f32 %v2289, %v2290
        %2997 = vadd.xlane.f32.xlu0 %v2996
        %v2998 = vpop.xlane.xlu0 %2997
        %v2999 = vadd.f32 %v2321, %v2322
        %3000 = vadd.xlane.f32.xlu0 %v2999
        %v3001 = vpop.xlane.xlu0 %3000
        %v3002 = vadd.f32 %v2353, %v2354
        %3003 = vadd.xlane.f32.xlu0 %v3002
        %v3004 = vpop.xlane.xlu0 %3003
        %v3005 = vadd.f32 %v2385, %v2386
        %3006 = vadd.xlane.f32.xlu0 %v3005
        %v3007 = vpop.xlane.xlu0 %3006
        %v3008 = vadd.f32 %v2417, %v2418
        %3009 = vadd.xlane.f32.xlu0 %v3008
        %v3010 = vpop.xlane.xlu0 %3009
        %v3011 = vadd.f32 %v2449, %v2450
        %3012 = vadd.xlane.f32.xlu0 %v3011
        %v3013 = vpop.xlane.xlu0 %3012
        %v3014 = vadd.f32 %v2481, %v2482
        %3015 = vadd.xlane.f32.xlu0 %v3014
        %v3016 = vpop.xlane.xlu0 %3015
        %v3017 = vadd.f32 %v2513, %v2514
        %3018 = vadd.xlane.f32.xlu0 %v3017
        %v3019 = vpop.xlane.xlu0 %3018
        %v3020 = vmul.f32 %v2998, %v2539
        %v3021 = vmul.f32 %v3001, %v2539
        %v3022 = vmul.f32 %v3004, %v2539
        %v3023 = vmul.f32 %v3007, %v2539
        %v3024 = vmul.f32 %v3010, %v2539
        %v3025 = vmul.f32 %v3013, %v2539
        %v3026 = vmul.f32 %v3016, %v2539
        %v3027 = vmul.f32 %v3019, %v2539
        %vm3028 = vcmask 7168
        %v3029 = vsel %vm3028, %v2540, %v2572
        %v3030 = vsel %vm3028, %v2541, %v2573
        %v3031 = vsel %vm3028, %v2542, %v2574
        %v3032 = vsel %vm3028, %v2543, %v2575
        %v3033 = vsel %vm3028, %v2544, %v2576
        %v3034 = vsel %vm3028, %v2545, %v2577
        %v3035 = vsel %vm3028, %v2546, %v2578
        %v3036 = vsel %vm3028, %v2547, %v2579
        %vm3037 = vcmask 15360
        %v3038 = vsel %vm3037, %v3029, %v2604
        %v3039 = vsel %vm3037, %v3030, %v2605
        %v3040 = vsel %vm3037, %v3031, %v2606
        %v3041 = vsel %vm3037, %v3032, %v2607
        %v3042 = vsel %vm3037, %v3033, %v2608
        %v3043 = vsel %vm3037, %v3034, %v2609
        %v3044 = vsel %vm3037, %v3035, %v2610
        %v3045 = vsel %vm3037, %v3036, %v2611
        %vm3046 = vcmask 23552
        %v3047 = vsel %vm3046, %v3038, %v2636
        %v3048 = vsel %vm3046, %v3039, %v2637
        %v3049 = vsel %vm3046, %v3040, %v2638
        %v3050 = vsel %vm3046, %v3041, %v2639
        %v3051 = vsel %vm3046, %v3042, %v2640
        %v3052 = vsel %vm3046, %v3043, %v2641
        %v3053 = vsel %vm3046, %v3044, %v2642
        %v3054 = vsel %vm3046, %v3045, %v2643
        %vm3055 = vcmask 31744
        %v3056 = vsel %vm3055, %v3047, %v2668
        %v3057 = vsel %vm3055, %v3048, %v2669
        %v3058 = vsel %vm3055, %v3049, %v2670
        %v3059 = vsel %vm3055, %v3050, %v2671
        %v3060 = vsel %vm3055, %v3051, %v2672
        %v3061 = vsel %vm3055, %v3052, %v2673
        %v3062 = vsel %vm3055, %v3053, %v2674
        %v3063 = vsel %vm3055, %v3054, %v2675
        %vm3064 = vcmask 39936
        %v3065 = vsel %vm3064, %v3056, %v2700
        %v3066 = vsel %vm3064, %v3057, %v2701
        %v3067 = vsel %vm3064, %v3058, %v2702
        %v3068 = vsel %vm3064, %v3059, %v2703
        %v3069 = vsel %vm3064, %v3060, %v2704
        %v3070 = vsel %vm3064, %v3061, %v2705
        %v3071 = vsel %vm3064, %v3062, %v2706
        %v3072 = vsel %vm3064, %v3063, %v2707
        %vm3073 = vcmask 48128
        %v3074 = vsel %vm3073, %v3065, %v2732
        %v3075 = vsel %vm3073, %v3066, %v2733
        %v3076 = vsel %vm3073, %v3067, %v2734
        %v3077 = vsel %vm3073, %v3068, %v2735
        %v3078 = vsel %vm3073, %v3069, %v2736
        %v3079 = vsel %vm3073, %v3070, %v2737
        %v3080 = vsel %vm3073, %v3071, %v2738
        %v3081 = vsel %vm3073, %v3072, %v2739
        %vm3082 = vcmask 56320
        %v3083 = vsel %vm3082, %v3074, %v2764
        %v3084 = vsel %vm3082, %v3075, %v2765
        %v3085 = vsel %vm3082, %v3076, %v2766
        %v3086 = vsel %vm3082, %v3077, %v2767
        %v3087 = vsel %vm3082, %v3078, %v2768
        %v3088 = vsel %vm3082, %v3079, %v2769
        %v3089 = vsel %vm3082, %v3080, %v2770
        %v3090 = vsel %vm3082, %v3081, %v2771
        %vm3091 = vcmask 64512
        %v3092 = vsel %vm3091, %v3083, %v2796
        %v3093 = vsel %vm3091, %v3084, %v2797
        %v3094 = vsel %vm3091, %v3085, %v2798
        %v3095 = vsel %vm3091, %v3086, %v2799
        %v3096 = vsel %vm3091, %v3087, %v2800
        %v3097 = vsel %vm3091, %v3088, %v2801
        %v3098 = vsel %vm3091, %v3089, %v2802
        %v3099 = vsel %vm3091, %v3090, %v2803
        %vm3100 = vcmask 72704
        %v3101 = vsel %vm3100, %v3092, %v2828
        %v3102 = vsel %vm3100, %v3093, %v2829
        %v3103 = vsel %vm3100, %v3094, %v2830
        %v3104 = vsel %vm3100, %v3095, %v2831
        %v3105 = vsel %vm3100, %v3096, %v2832
        %v3106 = vsel %vm3100, %v3097, %v2833
        %v3107 = vsel %vm3100, %v3098, %v2834
        %v3108 = vsel %vm3100, %v3099, %v2835
        %vm3109 = vcmask 80896
        %v3110 = vsel %vm3109, %v3101, %v2860
        %v3111 = vsel %vm3109, %v3102, %v2861
        %v3112 = vsel %vm3109, %v3103, %v2862
        %v3113 = vsel %vm3109, %v3104, %v2863
        %v3114 = vsel %vm3109, %v3105, %v2864
        %v3115 = vsel %vm3109, %v3106, %v2865
        %v3116 = vsel %vm3109, %v3107, %v2866
        %v3117 = vsel %vm3109, %v3108, %v2867
        %vm3118 = vcmask 89088
        %v3119 = vsel %vm3118, %v3110, %v2892
        %v3120 = vsel %vm3118, %v3111, %v2893
        %v3121 = vsel %vm3118, %v3112, %v2894
        %v3122 = vsel %vm3118, %v3113, %v2895
        %v3123 = vsel %vm3118, %v3114, %v2896
        %v3124 = vsel %vm3118, %v3115, %v2897
        %v3125 = vsel %vm3118, %v3116, %v2898
        %v3126 = vsel %vm3118, %v3117, %v2899
        %vm3127 = vcmask 97280
        %v3128 = vsel %vm3127, %v3119, %v2924
        %v3129 = vsel %vm3127, %v3120, %v2925
        %v3130 = vsel %vm3127, %v3121, %v2926
        %v3131 = vsel %vm3127, %v3122, %v2927
        %v3132 = vsel %vm3127, %v3123, %v2928
        %v3133 = vsel %vm3127, %v3124, %v2929
        %v3134 = vsel %vm3127, %v3125, %v2930
        %v3135 = vsel %vm3127, %v3126, %v2931
        %vm3136 = vcmask 105472
        %v3137 = vsel %vm3136, %v3128, %v2956
        %v3138 = vsel %vm3136, %v3129, %v2957
        %v3139 = vsel %vm3136, %v3130, %v2958
        %v3140 = vsel %vm3136, %v3131, %v2959
        %v3141 = vsel %vm3136, %v3132, %v2960
        %v3142 = vsel %vm3136, %v3133, %v2961
        %v3143 = vsel %vm3136, %v3134, %v2962
        %v3144 = vsel %vm3136, %v3135, %v2963
        %vm3145 = vcmask 113664
        %v3146 = vsel %vm3145, %v3137, %v2988
        %v3147 = vsel %vm3145, %v3138, %v2989
        %v3148 = vsel %vm3145, %v3139, %v2990
        %v3149 = vsel %vm3145, %v3140, %v2991
        %v3150 = vsel %vm3145, %v3141, %v2992
        %v3151 = vsel %vm3145, %v3142, %v2993
        %v3152 = vsel %vm3145, %v3143, %v2994
        %v3153 = vsel %vm3145, %v3144, %v2995
        %vm3154 = vcmask 121856
        %v3155 = vsel %vm3154, %v3146, %v3020
        %v3156 = vsel %vm3154, %v3147, %v3021
        %v3157 = vsel %vm3154, %v3148, %v3022
        %v3158 = vsel %vm3154, %v3149, %v3023
        %v3159 = vsel %vm3154, %v3150, %v3024
        %v3160 = vsel %vm3154, %v3151, %v3025
        %v3161 = vsel %vm3154, %v3152, %v3026
        %v3162 = vsel %vm3154, %v3153, %v3027
        %3163 = vxpose.xlu0.b32.start [1/16] %v3155, 128
        %3164 = vxpose.xlu0.b32.cont [2/16] %v3156, 128
        %3165 = vxpose.xlu0.b32.cont [3/16] %v3157, 128
        %3166 = vxpose.xlu0.b32.cont [4/16] %v3158, 128
        %3167 = vxpose.xlu0.b32.cont [5/16] %v3159, 128
        %3168 = vxpose.xlu0.b32.cont [6/16] %v3160, 128
        %3169 = vxpose.xlu0.b32.cont [7/16] %v3161, 128
        %3170 = vxpose.xlu0.b32.cont [8/16] %v3162, 128
        %3171 = vxpose.xlu0.b32.cont [9/16] 0.0, 128
        %3172 = vxpose.xlu0.b32.cont [10/16] 0.0, 128
        %3173 = vxpose.xlu0.b32.cont [11/16] 0.0, 128
        %3174 = vxpose.xlu0.b32.cont [12/16] 0.0, 128
        %3175 = vxpose.xlu0.b32.cont [13/16] 0.0, 128
        %3176 = vxpose.xlu0.b32.cont [14/16] 0.0, 128
        %3177 = vxpose.xlu0.b32.cont [15/16] 0.0, 128
        %3178 = vxpose.xlu0.b32.end [16/16] 0.0, 128
        %v3179 = vpop.trf.xlu0
        %v3180 = vpop.trf.xlu0
        %v3181 = vpop.trf.xlu0
        %v3182 = vpop.trf.xlu0
        %v3183 = vpop.trf.xlu0
        %v3184 = vpop.trf.xlu0
        %v3185 = vpop.trf.xlu0
        %v3186 = vpop.trf.xlu0
        %v3187 = vpop.trf.xlu0
        %v3188 = vpop.trf.xlu0
        %v3189 = vpop.trf.xlu0
        %v3190 = vpop.trf.xlu0
        %v3191 = vpop.trf.xlu0
        %v3192 = vpop.trf.xlu0
        %v3193 = vpop.trf.xlu0
        %v3194 = vpop.trf.xlu0
        %v3195 = vld [vmem:[%s2] sm:$0xff]
        %v3196 = vld [vmem:[%s2 + $0x8] sm:$0xff]
        %v3197 = vld [vmem:[%s2 + $0x10] sm:$0xff]
        %v3198 = vld [vmem:[%s2 + $0x18] sm:$0xff]
        %v3199 = vld [vmem:[%s2 + $0x20] sm:$0xff]
        %v3200 = vld [vmem:[%s2 + $0x28] sm:$0xff]
        %v3201 = vld [vmem:[%s2 + $0x30] sm:$0xff]
        %v3202 = vld [vmem:[%s2 + $0x38] sm:$0xff]
        %v3203 = vld [vmem:[%s2 + $0x40] sm:$0xff]
        %v3204 = vld [vmem:[%s2 + $0x48] sm:$0xff]
        %v3205 = vld [vmem:[%s2 + $0x50] sm:$0x7]
        %v3206 = vlaneseq
        %v3207 = vshrl.u32 %v3206, 7
        %v3208 = vsub.s32 0, %v3207
        %v3209 = vrot.slane %v3203, %v3208
        %vm3210 = vcmask 523264
        %v3212 = vsel %vm3210, %v3179, 0
        %v3215 = vsel %vm3210, %v3180, 0
        %3217 = vmatprep.subr.mxu0 0.0
        %3218 = vmatpush1.msra.mxu0 %v3195
        %3219 = vmatprep.subr.mxu0 0.0
        %3220 = vmatpush1.msra.mxu0 %v3196
        %3221 = vmatprep.subr.mxu0 0.0
        %3222 = vmatpush1.msra.mxu0 %v3197
        %3223 = vmatprep.subr.mxu0 0.0
        %3224 = vmatpush1.msra.mxu0 %v3198
        %3225 = vmatprep.subr.mxu0 0.0
        %3226 = vmatpush1.msra.mxu0 %v3199
        %3227 = vmatprep.subr.mxu0 0.0
        %3228 = vmatpush1.msra.mxu0 %v3200
        %3229 = vmatprep.subr.mxu0 0.0
        %3230 = vmatpush1.msra.mxu0 %v3201
        %3231 = vmatprep.subr.mxu0 0.0
        %3232 = vmatpush1.msra.mxu0 %v3202
        %3233 = vmatprep.subr.mxu0 0.0
        %3234 = vmatpush1.msra.mxu0 0.0
        %3235 = vmatprep.subr.mxu0 0.0
        %3236 = vmatpush1.msra.mxu0 0.0
        %3237 = vmatprep.subr.mxu0 0.0
        %3238 = vmatpush1.msra.mxu0 0.0
        %3239 = vmatprep.subr.mxu0 0.0
        %3240 = vmatpush1.msra.mxu0 0.0
        %3241 = vmatprep.subr.mxu0 0.0
        %3242 = vmatpush1.msra.mxu0 0.0
        %3243 = vmatprep.subr.mxu0 0.0
        %3244 = vmatpush1.msra.mxu0 0.0
        %3245 = vmatprep.subr.mxu0 0.0
        %3246 = vmatpush1.msra.mxu0 0.0
        %3247 = vmatprep.subr.mxu0 0.0
        %3248 = vmatpush1.msra.mxu0 0.0
        %3249 = vmatprep.subr.mxu0 0.0
        %3250 = vmatpush1.msra.mxu0 0.0
        %3251 = vmatprep.subr.mxu0 0.0
        %3252 = vmatpush1.msra.mxu0 0.0
        %3253 = vmatprep.subr.mxu0 0.0
        %3254 = vmatpush1.msra.mxu0 0.0
        %3255 = vmatprep.subr.mxu0 0.0
        %3256 = vmatpush1.msra.mxu0 0.0
        %3257 = vmatprep.subr.mxu0 0.0
        %3258 = vmatpush1.msra.mxu0 0.0
        %3259 = vmatprep.subr.mxu0 0.0
        %3260 = vmatpush1.msra.mxu0 0.0
        %3261 = vmatprep.subr.mxu0 0.0
        %3262 = vmatpush1.msra.mxu0 0.0
        %3263 = vmatprep.subr.mxu0 0.0
        %3264 = vmatpush1.msra.mxu0 0.0
        %3265 = vmatprep.subr.mxu0 0.0
        %3266 = vmatpush1.msra.mxu0 0.0
        %3267 = vmatprep.subr.mxu0 0.0
        %3268 = vmatpush1.msra.mxu0 0.0
        %3269 = vmatprep.subr.mxu0 0.0
        %3270 = vmatpush1.msra.mxu0 0.0
        %3271 = vmatprep.subr.mxu0 0.0
        %3272 = vmatpush1.msra.mxu0 0.0
        %3273 = vmatprep.subr.mxu0 0.0
        %3274 = vmatpush1.msra.mxu0 0.0
        %3275 = vmatprep.subr.mxu0 0.0
        %3276 = vmatpush1.msra.mxu0 0.0
        %3277 = vmatprep.subr.mxu0 0.0
        %3278 = vmatpush1.msra.mxu0 0.0
        %3279 = vmatprep.subr.mxu0 0.0
        %3280 = vmatpush1.msra.mxu0 0.0
        %3281 = vmatprep.mubr.f32.mxu0 0.0
        %3282 = vmatmul.mubr.f32.gmra.mrb[0].mxu0 %v3212
        %v3283 = vpop.f32.mrb[0].mxu0
        %v3284 = vadd.f32 %v3209, %v3283
        %v3285 = vpop.f32.mrb[0].mxu0
        %3286 = vmatprep.mubr.f32.mxu0 0.0
        %3287 = vmatmul.mubr.f32.gmra.mrb[0].mxu0 %v3215
        %v3288 = vpop.f32.mrb[0].mxu0
        %v3289 = vadd.f32 %v3209, %v3288
        %v3290 = vpop.f32.mrb[0].mxu0
        %3291 = vdwg.mxu0
        %v3292 = vmax.f32 %v3284, 0.0
        %v3293 = vmax.f32 %v3289, 0.0
        %v3294 = vlaneseq
        %v3295 = vshrl.u32 %v3294, 7
        %v3296 = vsub.s32 1, %v3295
        %v3297 = vrot.slane %v3204, %v3296
        %vm3300 = vcmask 1046528
        %v3301 = vrot.slane %v3203, 1
        %v3302 = vrot.slane %v3204, 1
        %v3303 = vsel %vm3300, %v3301, %v3302
        %v3306 = vsel %vm3091, %v3292, 0
        %v3309 = vsel %vm3091, %v3293, 0
        %3311 = vmatprep.subr.mxu0 0.0
        %3312 = vmatpush1.msra.mxu0 %v3303
        %3313 = vmatprep.subr.mxu0 0.0
        %3314 = vmatpush1.msra.mxu0 0.0
        %3315 = vmatprep.subr.mxu0 0.0
        %3316 = vmatpush1.msra.mxu0 0.0
        %3317 = vmatprep.subr.mxu0 0.0
        %3318 = vmatpush1.msra.mxu0 0.0
        %3319 = vmatprep.subr.mxu0 0.0
        %3320 = vmatpush1.msra.mxu0 0.0
        %3321 = vmatprep.subr.mxu0 0.0
        %3322 = vmatpush1.msra.mxu0 0.0
        %3323 = vmatprep.subr.mxu0 0.0
        %3324 = vmatpush1.msra.mxu0 0.0
        %3325 = vmatprep.subr.mxu0 0.0
        %3326 = vmatpush1.msra.mxu0 0.0
        %3327 = vmatprep.subr.mxu0 0.0
        %3328 = vmatpush1.msra.mxu0 0.0
        %3329 = vmatprep.subr.mxu0 0.0
        %3330 = vmatpush1.msra.mxu0 0.0
        %3331 = vmatprep.subr.mxu0 0.0
        %3332 = vmatpush1.msra.mxu0 0.0
        %3333 = vmatprep.subr.mxu0 0.0
        %3334 = vmatpush1.msra.mxu0 0.0
        %3335 = vmatprep.subr.mxu0 0.0
        %3336 = vmatpush1.msra.mxu0 0.0
        %3337 = vmatprep.subr.mxu0 0.0
        %3338 = vmatpush1.msra.mxu0 0.0
        %3339 = vmatprep.subr.mxu0 0.0
        %3340 = vmatpush1.msra.mxu0 0.0
        %3341 = vmatprep.subr.mxu0 0.0
        %3342 = vmatpush1.msra.mxu0 0.0
        %3343 = vmatprep.subr.mxu0 0.0
        %3344 = vmatpush1.msra.mxu0 0.0
        %3345 = vmatprep.subr.mxu0 0.0
        %3346 = vmatpush1.msra.mxu0 0.0
        %3347 = vmatprep.subr.mxu0 0.0
        %3348 = vmatpush1.msra.mxu0 0.0
        %3349 = vmatprep.subr.mxu0 0.0
        %3350 = vmatpush1.msra.mxu0 0.0
        %3351 = vmatprep.subr.mxu0 0.0
        %3352 = vmatpush1.msra.mxu0 0.0
        %3353 = vmatprep.subr.mxu0 0.0
        %3354 = vmatpush1.msra.mxu0 0.0
        %3355 = vmatprep.subr.mxu0 0.0
        %3356 = vmatpush1.msra.mxu0 0.0
        %3357 = vmatprep.subr.mxu0 0.0
        %3358 = vmatpush1.msra.mxu0 0.0
        %3359 = vmatprep.subr.mxu0 0.0
        %3360 = vmatpush1.msra.mxu0 0.0
        %3361 = vmatprep.subr.mxu0 0.0
        %3362 = vmatpush1.msra.mxu0 0.0
        %3363 = vmatprep.subr.mxu0 0.0
        %3364 = vmatpush1.msra.mxu0 0.0
        %3365 = vmatprep.subr.mxu0 0.0
        %3366 = vmatpush1.msra.mxu0 0.0
        %3367 = vmatprep.subr.mxu0 0.0
        %3368 = vmatpush1.msra.mxu0 0.0
        %3369 = vmatprep.subr.mxu0 0.0
        %3370 = vmatpush1.msra.mxu0 0.0
        %3371 = vmatprep.subr.mxu0 0.0
        %3372 = vmatpush1.msra.mxu0 0.0
        %3373 = vmatprep.subr.mxu0 0.0
        %3374 = vmatpush1.msra.mxu0 0.0
        %3375 = vmatprep.mubr.f32.mxu0 0.0
        %3376 = vmatmul.mubr.f32.gmra.mrb[0].mxu0 %v3306
        %v3377 = vpop.f32.mrb[0].mxu0
        %v3378 = vadd.f32 %v3297, %v3377
        %v3379 = vpop.f32.mrb[0].mxu0
        %3380 = vmatprep.mubr.f32.mxu0 0.0
        %3381 = vmatmul.mubr.f32.gmra.mrb[0].mxu0 %v3309
        %v3382 = vpop.f32.mrb[0].mxu0
        %v3383 = vadd.f32 %v3297, %v3382
        %v3384 = vpop.f32.mrb[0].mxu0
        %3385 = vdwg.mxu0
        %v3386 = vmax.f32 %v3378, 0.0
        %v3387 = vmax.f32 %v3383, 0.0
        %v3388 = vlaneseq
        %v3389 = vshrl.u32 %v3388, 7
        %v3390 = vsub.s32 2, %v3389
        %v3391 = vrot.slane %v3205, %v3390
        %vm3393 = vcmask 1045504
        %v3394 = vrot.slane %v3204, 2
        %v3395 = vrot.slane %v3205, 2
        %v3396 = vsel %vm3393, %v3394, %v3395
        %v3399 = vsel %vm3091, %v3386, 0
        %v3402 = vsel %vm3091, %v3387, 0
        %3404 = vmatprep.subr.mxu0 0.0
        %3405 = vmatpush1.msra.mxu0 %v3396
        %3406 = vmatprep.subr.mxu0 0.0
        %3407 = vmatpush1.msra.mxu0 0.0
        %3408 = vmatprep.subr.mxu0 0.0
        %3409 = vmatpush1.msra.mxu0 0.0
        %3410 = vmatprep.subr.mxu0 0.0
        %3411 = vmatpush1.msra.mxu0 0.0
        %3412 = vmatprep.subr.mxu0 0.0
        %3413 = vmatpush1.msra.mxu0 0.0
        %3414 = vmatprep.subr.mxu0 0.0
        %3415 = vmatpush1.msra.mxu0 0.0
        %3416 = vmatprep.subr.mxu0 0.0
        %3417 = vmatpush1.msra.mxu0 0.0
        %3418 = vmatprep.subr.mxu0 0.0
        %3419 = vmatpush1.msra.mxu0 0.0
        %3420 = vmatprep.subr.mxu0 0.0
        %3421 = vmatpush1.msra.mxu0 0.0
        %3422 = vmatprep.subr.mxu0 0.0
        %3423 = vmatpush1.msra.mxu0 0.0
        %3424 = vmatprep.subr.mxu0 0.0
        %3425 = vmatpush1.msra.mxu0 0.0
        %3426 = vmatprep.subr.mxu0 0.0
        %3427 = vmatpush1.msra.mxu0 0.0
        %3428 = vmatprep.subr.mxu0 0.0
        %3429 = vmatpush1.msra.mxu0 0.0
        %3430 = vmatprep.subr.mxu0 0.0
        %3431 = vmatpush1.msra.mxu0 0.0
        %3432 = vmatprep.subr.mxu0 0.0
        %3433 = vmatpush1.msra.mxu0 0.0
        %3434 = vmatprep.subr.mxu0 0.0
        %3435 = vmatpush1.msra.mxu0 0.0
        %3436 = vmatprep.subr.mxu0 0.0
        %3437 = vmatpush1.msra.mxu0 0.0
        %3438 = vmatprep.subr.mxu0 0.0
        %3439 = vmatpush1.msra.mxu0 0.0
        %3440 = vmatprep.subr.mxu0 0.0
        %3441 = vmatpush1.msra.mxu0 0.0
        %3442 = vmatprep.subr.mxu0 0.0
        %3443 = vmatpush1.msra.mxu0 0.0
        %3444 = vmatprep.subr.mxu0 0.0
        %3445 = vmatpush1.msra.mxu0 0.0
        %3446 = vmatprep.subr.mxu0 0.0
        %3447 = vmatpush1.msra.mxu0 0.0
        %3448 = vmatprep.subr.mxu0 0.0
        %3449 = vmatpush1.msra.mxu0 0.0
        %3450 = vmatprep.subr.mxu0 0.0
        %3451 = vmatpush1.msra.mxu0 0.0
        %3452 = vmatprep.subr.mxu0 0.0
        %3453 = vmatpush1.msra.mxu0 0.0
        %3454 = vmatprep.subr.mxu0 0.0
        %3455 = vmatpush1.msra.mxu0 0.0
        %3456 = vmatprep.subr.mxu0 0.0
        %3457 = vmatpush1.msra.mxu0 0.0
        %3458 = vmatprep.subr.mxu0 0.0
        %3459 = vmatpush1.msra.mxu0 0.0
        %3460 = vmatprep.subr.mxu0 0.0
        %3461 = vmatpush1.msra.mxu0 0.0
        %3462 = vmatprep.subr.mxu0 0.0
        %3463 = vmatpush1.msra.mxu0 0.0
        %3464 = vmatprep.subr.mxu0 0.0
        %3465 = vmatpush1.msra.mxu0 0.0
        %3466 = vmatprep.subr.mxu0 0.0
        %3467 = vmatpush1.msra.mxu0 0.0
        %3468 = vmatprep.mubr.f32.mxu0 0.0
        %3469 = vmatmul.mubr.f32.gmra.mrb[0].mxu0 %v3399
        %v3470 = vpop.f32.mrb[0].mxu0
        %v3471 = vadd.f32 %v3391, %v3470
        %v3472 = vpop.f32.mrb[0].mxu0
        %3473 = vmatprep.mubr.f32.mxu0 0.0
        %3474 = vmatmul.mubr.f32.gmra.mrb[0].mxu0 %v3402
        %v3475 = vpop.f32.mrb[0].mxu0
        %v3476 = vadd.f32 %v3391, %v3475
        %v3477 = vpop.f32.mrb[0].mxu0
        %3478 = vdwg.mxu0
        %3479 = vst.msk [vmem:[%s191] sm:$0xff] %vm3055, %v3471
        %3480 = vst.msk [vmem:[%s191 + $0x8] sm:$0xff] %vm3055, %v3476
        %s3481 = smul.u32 2, %s17
        %p3482 = scmp.lt.s32.totalorder %s3481, 3
        %s3483 = scalar_select %p3482, %s3481, 3
        %s3484 = smul.addr %s3483, 8
        %s3485 = scalar_lea.vmem %s3, %s3484
        // Predicated region
        $region37: #{tpu_custom_call.1} parent=31 // pred_check
          %p3486 = pneg %p103
        $region38: #{tpu_custom_call.1} parent=31 // pred_check_branch
          %3488 = sbr.rel (%p3486) target = $region40
        $region39: #{tpu_custom_call.1} parent=31 // pred_region
          %s3489 = smul.u32 2, %s17
        $region40: #{tpu_custom_call.1} parent=31 // pred_fallthru
          _
      $region32: #{tpu_custom_call.1} parent=5 // pred_fallthru
        _
      %p3490 = scmp.le.s32.totalorder 2, %s12
      // Predicated region
      $region41: #{tpu_custom_call.1} parent=5 // pred_check
        %p3491 = pneg %p3490
      $region42: #{tpu_custom_call.1} parent=5 // pred_check_branch
        %3493 = sbr.rel (%p3491) target = $region44
      $region43: #{tpu_custom_call.1} parent=5 // pred_region
        %s3494 = ssub.s32 %s12, 2
        // Predicated region
        $region45: #{tpu_custom_call.1} parent=43 // pred_check
          %p3495 = pneg %p109
        $region46: #{tpu_custom_call.1} parent=43 // pred_check_branch
          %3497 = sbr.rel (%p3495) target = $region48
        $region47: #{tpu_custom_call.1} parent=43 // pred_region
          %s3498 = smul.u32 2, %s18
          %p3499 = scmp.lt.s32.totalorder %s3498, 3
          %s3500 = scalar_select %p3499, %s3498, 3
          %s3501 = smul.addr %s3500, 8
          %s3502 = scalar_lea.vmem %s3, %s3501
        $region48: #{tpu_custom_call.1} parent=43 // pred_fallthru
          _
      $region44: #{tpu_custom_call.1} parent=5 // pred_fallthru
        _
    $region6: #{tpu_custom_call.1} parent=1 // loop_footer
      %s16 = sadd.s32 1, %s12
    $region7: #{tpu_custom_call.1} parent=1 // loop_footer_branch
      %11 = sbr.rel target = $region3
    $region8: #{tpu_custom_call.1} parent=1 // loop_exit
      _
    %3503 = vsyncpa [#allocation3], 1
    %s3504 = scalar_lea.sflag [#allocation3], 1
    %3505 = vsyncpa %s3504, 1

</llo_original>
